<compile_context>
chip_gen: v7x
topology: tpu7x:2x2x1
jax: 0.10.0
libtpu: 0.0.40
codegen_flags: <defaults>
</compile_context>

<pallas_src>
import functools

import jax
import jax.numpy as jnp
from jax.experimental import pallas as pl
from jax.experimental.pallas import tpu as pltpu


def _round_up(x, m):
    return (x + m - 1) // m * m


def _unit_tcn_kernel(x_ref, w_ref, bias_ref, o_ref, *, v_pad, row_tile):
    """Grid step (n, c, r): one (row_tile, cout_tile) output block of batch element n.

    x_ref    : (Rows_in, C_in)         padded input of batch n (VMEM resident across c, r)
    w_ref    : (K, C_in, COUT_TILE)    conv taps with BN scale folded in (resident across r)
    bias_ref : (1, COUT_TILE)          folded conv bias + BN shift
    o_ref    : (row_tile, COUT_TILE)
    """
    k_taps = w_ref.shape[0]
    r = pl.program_id(2)
    row0 = r * row_tile
    acc = jnp.zeros((row_tile, o_ref.shape[-1]), jnp.float32)
    # Static K (=9): unrolled loop of shifted MXU matmuls accumulated in fp32.
    # Shifts are sublane-aligned because row_tile and v_pad are multiples of 8.
    for k in range(k_taps):
        start = pl.multiple_of(row0 + k * v_pad, 8)
        xs = x_ref[pl.ds(start, row_tile), :]                       # (row_tile, C_in)
        acc = acc + jnp.dot(xs, w_ref[k], preferred_element_type=jnp.float32)
    # Fused inference BatchNorm: scale already folded into w, only the shift remains.
    o_ref[...] = (acc + bias_ref[...]).astype(o_ref.dtype)


def unit_tcn_forward(x_nchw, conv_weight, conv_bias, bn_gamma, bn_beta,
                     bn_mean, bn_var, keep_prob=1.0, A=None, *,
                     stride=1, eps=1e-5):
    """unit_tcn forward: Conv2d((K,1), pad=(K//2,0), stride=(s,1)) -> BatchNorm2d (inference) -> DropBlocks.

    x_nchw      : (N, C_in, T, V)       PyTorch NCHW input
    conv_weight : (C_out, C_in, K, 1)   nn.Conv2d weight
    Returns (N, C_out, T_out, V) matching PyTorch.
    """
    N, Cin, T, V = x_nchw.shape
    Cout, _, K, _ = conv_weight.shape
    pad = (K - 1) // 2
    T1 = T + 2 * pad - K + 1                         # stride-1 conv output length
    T_out = (T + 2 * pad - K) // stride + 1          # requested (strided) output length

    V_pad = _round_up(V, 8)                          # sublane-aligned per-tap shifts
    Cout_pad = _round_up(Cout, 128)                  # lane-dense output stores
    cout_tile = 128                                  # acc stays register-resident
    rows_out = T1 * V_pad
    row_tile = 256 if rows_out >= 256 else _round_up(rows_out, 8)
    rows_out_pad = _round_up(rows_out, row_tile)
    rows_in = rows_out_pad + (K - 1) * V_pad         # window needed by the last output row

    # --- layout glue + BN/bias folding (plain JAX, outside the kernel) ---
    x = jnp.transpose(x_nchw, (0, 2, 3, 1))                       # (N, T, V, Cin)
    x = jnp.pad(x, ((0, 0), (pad, pad), (0, V_pad - V), (0, 0)))  # time pad + V pad
    x = x.reshape(N, (T + 2 * pad) * V_pad, Cin)
    x = jnp.pad(x, ((0, 0), (0, rows_in - x.shape[1]), (0, 0)))   # tail pad for row tiles

    scale = bn_gamma / jnp.sqrt(bn_var + eps)                     # (Cout,)
    w = jnp.transpose(conv_weight[..., 0], (2, 1, 0))             # (K, Cin, Cout)
    w = (w * scale[None, None, :]).astype(jnp.float32)            # fold BN scale
    w = jnp.pad(w, ((0, 0), (0, 0), (0, Cout_pad - Cout)))
    bias = (conv_bias - bn_mean) * scale + bn_beta                # fold conv bias + BN shift
    bias = jnp.pad(bias, (0, Cout_pad - Cout)).reshape(1, Cout_pad).astype(jnp.float32)

    n_row_tiles = rows_out_pad // row_tile
    n_cout_tiles = Cout_pad // cout_tile

    # VMEM budget: double-buffered blocks + accumulator + headroom (v7x has 64 MiB/TC).
    vmem_bytes = (2 * rows_in * Cin * 4
                  + 2 * row_tile * cout_tile * 4
                  + 2 * K * Cin * cout_tile * 4
                  + 2 * cout_tile * 4
                  + row_tile * cout_tile * 4)
    vmem_limit = int(min(max(vmem_bytes + (4 << 20), 16 << 20), 64 << 20))

    kern = functools.partial(_unit_tcn_kernel, v_pad=V_pad, row_tile=row_tile)

    out = pl.pallas_call(
        kern,
        out_shape=jax.ShapeDtypeStruct((N, rows_out_pad, Cout_pad), x_nchw.dtype),
        grid=(N, n_cout_tiles, n_row_tiles),
        in_specs=[
            # Full padded input of batch n; block index constant in (c, r) -> stays resident.
            pl.BlockSpec((None, rows_in, Cin), lambda n, c, r: (n, 0, 0)),
            # Weight tile constant across the innermost row axis -> re-DMA only per cout tile.
            pl.BlockSpec((K, Cin, cout_tile), lambda n, c, r: (0, 0, c)),
            pl.BlockSpec((1, cout_tile), lambda n, c, r: (0, c)),
        ],
        out_specs=pl.BlockSpec((None, row_tile, cout_tile), lambda n, c, r: (n, r, c)),
        compiler_params=pltpu.CompilerParams(
            dimension_semantics=("parallel", "parallel", "parallel"),
            vmem_limit_bytes=vmem_limit),
    )(x, w, bias)

    # DropBlock_Ske / DropBlockT_1d are identity when keep_prob == 1 (or eval mode).
    # TODO(synk): training-mode stochastic DropBlock masking (uses A) not implemented.
    out = out[:, :rows_out, :Cout].reshape(N, T1, V_pad, Cout)[:, :, :V, :]
    if stride != 1:
        # TODO(synk): strided temporal conv is computed at stride 1 then time-subsampled
        # (wastes (stride-1)/stride of the MXU work; acceptable at ST-GCN widths).
        out = out[:, ::stride]
    out = out[:, :T_out]
    return jnp.transpose(out, (0, 3, 1, 2))                       # back to NCHW


if __name__ == "__main__":
    key = jax.random.PRNGKey(0)
    N, Cin, Cout, T, V, K = 2, 4, 8, 16, 25, 9

    kx, kw = jax.random.split(key)
    x = jax.random.normal(kx, (N, Cin, T, V), dtype=jnp.float32)

    # conv_init: kaiming_normal_(mode='fan_out') -> std = sqrt(2 / (Cout * K * 1))
    w = jax.random.normal(kw, (Cout, Cin, K, 1), dtype=jnp.float32) * jnp.sqrt(2.0 / (Cout * K))
    conv_b = jnp.zeros((Cout,), jnp.float32)      # conv_init: bias = 0
    gamma = jnp.ones((Cout,), jnp.float32)        # bn_init(bn, 1)
    beta = jnp.zeros((Cout,), jnp.float32)
    running_mean = jnp.zeros((Cout,), jnp.float32)
    running_var = jnp.ones((Cout,), jnp.float32)

    A = jnp.eye(V, dtype=jnp.float32)             # adjacency (unused at keep_prob=1)
    keep_prob = 1.0

    def ref_fn(stride):
        pad = (K - 1) // 2
        r = jax.lax.conv_general_dilated(
            x, w, window_strides=(stride, 1), padding=((pad, pad), (0, 0)),
            dimension_numbers=("NCHW", "OIHW", "NCHW"))
        r = r + conv_b.reshape(1, -1, 1, 1)
        r = (r - running_mean.reshape(1, -1, 1, 1)) / jnp.sqrt(
            running_var + 1e-5).reshape(1, -1, 1, 1)
        r = r * gamma.reshape(1, -1, 1, 1) + beta.reshape(1, -1, 1, 1)
        return r

    for stride in (1, 2):
        out = unit_tcn_forward(x, w, conv_b, gamma, beta, running_mean, running_var,
                               keep_prob=keep_prob, A=A, stride=stride)
        out = jax.block_until_ready(out)
        ref = ref_fn(stride)
        assert out.shape == ref.shape, (out.shape, ref.shape)
        assert jnp.allclose(out, ref, atol=1e-4, rtol=1e-4), float(jnp.max(jnp.abs(out - ref)))

    print("KERNEL_OK")
</pallas_src>

<mosaic_0001>
module attributes {stable_mosaic.version = 11 : i64} {
  func.func @_unit_tcn_kernel(%arg0: i32, %arg1: i32, %arg2: i32, %arg3: memref<1x768x4xf32, #tpu.memory_space<vmem>>, %arg4: memref<9x4x128xf32, #tpu.memory_space<vmem>>, %arg5: memref<1x128xf32, #tpu.memory_space<vmem>>, %arg6: memref<1x256x128xf32, #tpu.memory_space<vmem>>) attributes {dimension_semantics = [#tpu.dimension_semantics<parallel>, #tpu.dimension_semantics<parallel>, #tpu.dimension_semantics<parallel>], iteration_bounds = array<i64: 2, 1, 2>, scalar_prefetch = 0 : i64, scratch_operands = 0 : i64, tpu.core_type = #tpu.core_type<tc>, window_params = [{transform_indices = @transform_0, window_bounds = array<i64: 1, 768, 4>}, {transform_indices = @transform_1, window_bounds = array<i64: 9, 4, 128>}, {transform_indices = @transform_2, window_bounds = array<i64: 1, 128>}, {transform_indices = @transform_3, window_bounds = array<i64: 1, 256, 128>}]} {
    %c256_i32 = arith.constant 256 : i32
    %0 = arith.muli %arg2, %c256_i32 : i32
    %cst = arith.constant 0.000000e+00 : f32
    %1 = vector.broadcast %cst : f32 to vector<256x128xf32>
    %c0_i32 = arith.constant 0 : i32
    %2 = arith.addi %0, %c0_i32 : i32
    %3 = tpu.assume_multiple %2, 8 : i32
    %c0 = arith.constant 0 : index
    %4 = arith.index_cast %3 : i32 to index
    %c0_0 = arith.constant 0 : index
    %5 = vector.load %arg3[%c0, %4, %c0_0] : memref<1x768x4xf32, #tpu.memory_space<vmem>>, vector<1x256x4xf32>
    %6 = vector.shape_cast %5 : vector<1x256x4xf32> to vector<256x4xf32>
    %c0_1 = arith.constant 0 : index
    %c0_2 = arith.constant 0 : index
    %c0_3 = arith.constant 0 : index
    %7 = vector.load %arg4[%c0_1, %c0_2, %c0_3] : memref<9x4x128xf32, #tpu.memory_space<vmem>>, vector<1x4x128xf32>
    %8 = vector.shape_cast %7 : vector<1x4x128xf32> to vector<4x128xf32>
    %cst_4 = arith.constant dense<0.000000e+00> : vector<256x128xf32>
    %9 = tpu.matmul %6, %8, %cst_4 {dimension_numbers = #tpu.dot_dimension_numbers<[1], [0], [0], [1], [0, 0, 1, 1], [], []>} : vector<256x4xf32>, vector<4x128xf32>, vector<256x128xf32> -> vector<256x128xf32>
    %10 = arith.addf %1, %9 : vector<256x128xf32>
    %c32_i32 = arith.constant 32 : i32
    %11 = arith.addi %0, %c32_i32 : i32
    %12 = tpu.assume_multiple %11, 8 : i32
    %c0_5 = arith.constant 0 : index
    %13 = arith.index_cast %12 : i32 to index
    %c0_6 = arith.constant 0 : index
    %14 = vector.load %arg3[%c0_5, %13, %c0_6] : memref<1x768x4xf32, #tpu.memory_space<vmem>>, vector<1x256x4xf32>
    %15 = vector.shape_cast %14 : vector<1x256x4xf32> to vector<256x4xf32>
    %c1 = arith.constant 1 : index
    %c0_7 = arith.constant 0 : index
    %c0_8 = arith.constant 0 : index
    %16 = vector.load %arg4[%c1, %c0_7, %c0_8] : memref<9x4x128xf32, #tpu.memory_space<vmem>>, vector<1x4x128xf32>
    %17 = vector.shape_cast %16 : vector<1x4x128xf32> to vector<4x128xf32>
    %cst_9 = arith.constant dense<0.000000e+00> : vector<256x128xf32>
    %18 = tpu.matmul %15, %17, %cst_9 {dimension_numbers = #tpu.dot_dimension_numbers<[1], [0], [0], [1], [0, 0, 1, 1], [], []>} : vector<256x4xf32>, vector<4x128xf32>, vector<256x128xf32> -> vector<256x128xf32>
    %19 = arith.addf %10, %18 : vector<256x128xf32>
    %c64_i32 = arith.constant 64 : i32
    %20 = arith.addi %0, %c64_i32 : i32
    %21 = tpu.assume_multiple %20, 8 : i32
    %c0_10 = arith.constant 0 : index
    %22 = arith.index_cast %21 : i32 to index
    %c0_11 = arith.constant 0 : index
    %23 = vector.load %arg3[%c0_10, %22, %c0_11] : memref<1x768x4xf32, #tpu.memory_space<vmem>>, vector<1x256x4xf32>
    %24 = vector.shape_cast %23 : vector<1x256x4xf32> to vector<256x4xf32>
    %c2 = arith.constant 2 : index
    %c0_12 = arith.constant 0 : index
    %c0_13 = arith.constant 0 : index
    %25 = vector.load %arg4[%c2, %c0_12, %c0_13] : memref<9x4x128xf32, #tpu.memory_space<vmem>>, vector<1x4x128xf32>
    %26 = vector.shape_cast %25 : vector<1x4x128xf32> to vector<4x128xf32>
    %cst_14 = arith.constant dense<0.000000e+00> : vector<256x128xf32>
    %27 = tpu.matmul %24, %26, %cst_14 {dimension_numbers = #tpu.dot_dimension_numbers<[1], [0], [0], [1], [0, 0, 1, 1], [], []>} : vector<256x4xf32>, vector<4x128xf32>, vector<256x128xf32> -> vector<256x128xf32>
    %28 = arith.addf %19, %27 : vector<256x128xf32>
    %c96_i32 = arith.constant 96 : i32
    %29 = arith.addi %0, %c96_i32 : i32
    %30 = tpu.assume_multiple %29, 8 : i32
    %c0_15 = arith.constant 0 : index
    %31 = arith.index_cast %30 : i32 to index
    %c0_16 = arith.constant 0 : index
    %32 = vector.load %arg3[%c0_15, %31, %c0_16] : memref<1x768x4xf32, #tpu.memory_space<vmem>>, vector<1x256x4xf32>
    %33 = vector.shape_cast %32 : vector<1x256x4xf32> to vector<256x4xf32>
    %c3 = arith.constant 3 : index
    %c0_17 = arith.constant 0 : index
    %c0_18 = arith.constant 0 : index
    %34 = vector.load %arg4[%c3, %c0_17, %c0_18] : memref<9x4x128xf32, #tpu.memory_space<vmem>>, vector<1x4x128xf32>
    %35 = vector.shape_cast %34 : vector<1x4x128xf32> to vector<4x128xf32>
    %cst_19 = arith.constant dense<0.000000e+00> : vector<256x128xf32>
    %36 = tpu.matmul %33, %35, %cst_19 {dimension_numbers = #tpu.dot_dimension_numbers<[1], [0], [0], [1], [0, 0, 1, 1], [], []>} : vector<256x4xf32>, vector<4x128xf32>, vector<256x128xf32> -> vector<256x128xf32>
    %37 = arith.addf %28, %36 : vector<256x128xf32>
    %c128_i32 = arith.constant 128 : i32
    %38 = arith.addi %0, %c128_i32 : i32
    %39 = tpu.assume_multiple %38, 8 : i32
    %c0_20 = arith.constant 0 : index
    %40 = arith.index_cast %39 : i32 to index
    %c0_21 = arith.constant 0 : index
    %41 = vector.load %arg3[%c0_20, %40, %c0_21] : memref<1x768x4xf32, #tpu.memory_space<vmem>>, vector<1x256x4xf32>
    %42 = vector.shape_cast %41 : vector<1x256x4xf32> to vector<256x4xf32>
    %c4 = arith.constant 4 : index
    %c0_22 = arith.constant 0 : index
    %c0_23 = arith.constant 0 : index
    %43 = vector.load %arg4[%c4, %c0_22, %c0_23] : memref<9x4x128xf32, #tpu.memory_space<vmem>>, vector<1x4x128xf32>
    %44 = vector.shape_cast %43 : vector<1x4x128xf32> to vector<4x128xf32>
    %cst_24 = arith.constant dense<0.000000e+00> : vector<256x128xf32>
    %45 = tpu.matmul %42, %44, %cst_24 {dimension_numbers = #tpu.dot_dimension_numbers<[1], [0], [0], [1], [0, 0, 1, 1], [], []>} : vector<256x4xf32>, vector<4x128xf32>, vector<256x128xf32> -> vector<256x128xf32>
    %46 = arith.addf %37, %45 : vector<256x128xf32>
    %c160_i32 = arith.constant 160 : i32
    %47 = arith.addi %0, %c160_i32 : i32
    %48 = tpu.assume_multiple %47, 8 : i32
    %c0_25 = arith.constant 0 : index
    %49 = arith.index_cast %48 : i32 to index
    %c0_26 = arith.constant 0 : index
    %50 = vector.load %arg3[%c0_25, %49, %c0_26] : memref<1x768x4xf32, #tpu.memory_space<vmem>>, vector<1x256x4xf32>
    %51 = vector.shape_cast %50 : vector<1x256x4xf32> to vector<256x4xf32>
    %c5 = arith.constant 5 : index
    %c0_27 = arith.constant 0 : index
    %c0_28 = arith.constant 0 : index
    %52 = vector.load %arg4[%c5, %c0_27, %c0_28] : memref<9x4x128xf32, #tpu.memory_space<vmem>>, vector<1x4x128xf32>
    %53 = vector.shape_cast %52 : vector<1x4x128xf32> to vector<4x128xf32>
    %cst_29 = arith.constant dense<0.000000e+00> : vector<256x128xf32>
    %54 = tpu.matmul %51, %53, %cst_29 {dimension_numbers = #tpu.dot_dimension_numbers<[1], [0], [0], [1], [0, 0, 1, 1], [], []>} : vector<256x4xf32>, vector<4x128xf32>, vector<256x128xf32> -> vector<256x128xf32>
    %55 = arith.addf %46, %54 : vector<256x128xf32>
    %c192_i32 = arith.constant 192 : i32
    %56 = arith.addi %0, %c192_i32 : i32
    %57 = tpu.assume_multiple %56, 8 : i32
    %c0_30 = arith.constant 0 : index
    %58 = arith.index_cast %57 : i32 to index
    %c0_31 = arith.constant 0 : index
    %59 = vector.load %arg3[%c0_30, %58, %c0_31] : memref<1x768x4xf32, #tpu.memory_space<vmem>>, vector<1x256x4xf32>
    %60 = vector.shape_cast %59 : vector<1x256x4xf32> to vector<256x4xf32>
    %c6 = arith.constant 6 : index
    %c0_32 = arith.constant 0 : index
    %c0_33 = arith.constant 0 : index
    %61 = vector.load %arg4[%c6, %c0_32, %c0_33] : memref<9x4x128xf32, #tpu.memory_space<vmem>>, vector<1x4x128xf32>
    %62 = vector.shape_cast %61 : vector<1x4x128xf32> to vector<4x128xf32>
    %cst_34 = arith.constant dense<0.000000e+00> : vector<256x128xf32>
    %63 = tpu.matmul %60, %62, %cst_34 {dimension_numbers = #tpu.dot_dimension_numbers<[1], [0], [0], [1], [0, 0, 1, 1], [], []>} : vector<256x4xf32>, vector<4x128xf32>, vector<256x128xf32> -> vector<256x128xf32>
    %64 = arith.addf %55, %63 : vector<256x128xf32>
    %c224_i32 = arith.constant 224 : i32
    %65 = arith.addi %0, %c224_i32 : i32
    %66 = tpu.assume_multiple %65, 8 : i32
    %c0_35 = arith.constant 0 : index
    %67 = arith.index_cast %66 : i32 to index
    %c0_36 = arith.constant 0 : index
    %68 = vector.load %arg3[%c0_35, %67, %c0_36] : memref<1x768x4xf32, #tpu.memory_space<vmem>>, vector<1x256x4xf32>
    %69 = vector.shape_cast %68 : vector<1x256x4xf32> to vector<256x4xf32>
    %c7 = arith.constant 7 : index
    %c0_37 = arith.constant 0 : index
    %c0_38 = arith.constant 0 : index
    %70 = vector.load %arg4[%c7, %c0_37, %c0_38] : memref<9x4x128xf32, #tpu.memory_space<vmem>>, vector<1x4x128xf32>
    %71 = vector.shape_cast %70 : vector<1x4x128xf32> to vector<4x128xf32>
    %cst_39 = arith.constant dense<0.000000e+00> : vector<256x128xf32>
    %72 = tpu.matmul %69, %71, %cst_39 {dimension_numbers = #tpu.dot_dimension_numbers<[1], [0], [0], [1], [0, 0, 1, 1], [], []>} : vector<256x4xf32>, vector<4x128xf32>, vector<256x128xf32> -> vector<256x128xf32>
    %73 = arith.addf %64, %72 : vector<256x128xf32>
    %c256_i32_40 = arith.constant 256 : i32
    %74 = arith.addi %0, %c256_i32_40 : i32
    %75 = tpu.assume_multiple %74, 8 : i32
    %c0_41 = arith.constant 0 : index
    %76 = arith.index_cast %75 : i32 to index
    %c0_42 = arith.constant 0 : index
    %77 = vector.load %arg3[%c0_41, %76, %c0_42] : memref<1x768x4xf32, #tpu.memory_space<vmem>>, vector<1x256x4xf32>
    %78 = vector.shape_cast %77 : vector<1x256x4xf32> to vector<256x4xf32>
    %c8 = arith.constant 8 : index
    %c0_43 = arith.constant 0 : index
    %c0_44 = arith.constant 0 : index
    %79 = vector.load %arg4[%c8, %c0_43, %c0_44] : memref<9x4x128xf32, #tpu.memory_space<vmem>>, vector<1x4x128xf32>
    %80 = vector.shape_cast %79 : vector<1x4x128xf32> to vector<4x128xf32>
    %cst_45 = arith.constant dense<0.000000e+00> : vector<256x128xf32>
    %81 = tpu.matmul %78, %80, %cst_45 {dimension_numbers = #tpu.dot_dimension_numbers<[1], [0], [0], [1], [0, 0, 1, 1], [], []>} : vector<256x4xf32>, vector<4x128xf32>, vector<256x128xf32> -> vector<256x128xf32>
    %82 = arith.addf %73, %81 : vector<256x128xf32>
    %c0_46 = arith.constant 0 : index
    %c0_47 = arith.constant 0 : index
    %83 = vector.load %arg5[%c0_46, %c0_47] : memref<1x128xf32, #tpu.memory_space<vmem>>, vector<1x128xf32>
    %84 = vector.broadcast %83 : vector<1x128xf32> to vector<256x128xf32>
    %85 = arith.addf %82, %84 : vector<256x128xf32>
    %c0_48 = arith.constant 0 : index
    %c0_49 = arith.constant 0 : index
    %c0_50 = arith.constant 0 : index
    %86 = vector.load %arg6[%c0_48, %c0_49, %c0_50] : memref<1x256x128xf32, #tpu.memory_space<vmem>>, vector<1x256x128xf32>
    %87 = vector.shape_cast %86 : vector<1x256x128xf32> to vector<256x128xf32>
    %88 = vector.shape_cast %85 : vector<256x128xf32> to vector<1x256x128xf32>
    tpu.vector_store %arg6[%c0_48, %c0_49, %c0_50], %88 {strides = array<i32>} : memref<1x256x128xf32, #tpu.memory_space<vmem>>, vector<1x256x128xf32>,
    return
  }
  func.func @transform_0(%arg0: i32, %arg1: i32, %arg2: i32) -> (i32, i32, i32) {
    %c0_i32 = arith.constant 0 : i32
    %c0_i32_0 = arith.constant 0 : i32
    %c0_i32_1 = arith.constant 0 : i32
    return %arg0, %c0_i32, %c0_i32_0 : i32, i32, i32
  }
  func.func @transform_1(%arg0: i32, %arg1: i32, %arg2: i32) -> (i32, i32, i32) {
    %c0_i32 = arith.constant 0 : i32
    %c0_i32_0 = arith.constant 0 : i32
    %c0_i32_1 = arith.constant 0 : i32
    return %c0_i32, %c0_i32_0, %arg1 : i32, i32, i32
  }
  func.func @transform_2(%arg0: i32, %arg1: i32, %arg2: i32) -> (i32, i32) {
    %c0_i32 = arith.constant 0 : i32
    %c0_i32_0 = arith.constant 0 : i32
    return %c0_i32, %arg1 : i32, i32
  }
  func.func @transform_3(%arg0: i32, %arg1: i32, %arg2: i32) -> (i32, i32, i32) {
    %c0_i32 = arith.constant 0 : i32
    return %arg0, %arg2, %arg1 : i32, i32, i32
  }
}

</mosaic_0001>

<llo_original>
// kernel: tpu_custom_call.1
$region0: #{tpu_custom_call.1}
  #allocation0 [shape = 'u32[]', space=smem, size = 0x4, offset = 0x4, fixed_abs, tag = 'smem constant byte address 0x4 - core index']
  #allocation1 [shape = 'u32[144,128]{1,0:T(1,128)}', space=vmem, size = 0x12000, scoped, tag = 'internal scratch']
  %s0 = inlined_call_operand.vmem [shape: f32[2,768,4], index: 0, kind: input, shape index: {}]
  %s1 = inlined_call_operand.vmem [shape: f32[9,4,128], index: 1, kind: input, shape index: {}]
  %s2 = inlined_call_operand.vmem [shape: f32[1,128], index: 2, kind: input, shape index: {}]
  %s3 = inlined_call_operand.hbm [shape: f32[2,512,128], index: 3, kind: output, shape index: {}]
  %s4 = sld [smem:[#allocation0]]
  $region45: #{tpu_custom_call.1} parent=0
    _
  %s6 = ssub.s32 1, %s4
  %s7 = scalar_select 0, %s6, %s4
  $region1: #{tpu_custom_call.1} parent=0
    #allocation2 [shape = 'u8[262144]{0}', space=vmem, size = 0x40000, scoped, tag = 'output window, operand 0']
    #allocation3 [shape = 's32[2]{0}', space=sflag, size = 0x8, scoped, tag = 'scoped memory for tpu_custom_call.1']
    %8 = vsyncpa [#allocation3], 0
    %s9 = scalar_lea.sflag [#allocation3], 1
    %10 = vsyncpa %s9, 0
    loop: start=0, step=1, limit=6
    $region2: #{tpu_custom_call.1} parent=1 // loop_pre_header
      _
    $region3: #{tpu_custom_call.1} parent=1 // loop_header
      %s12 = sphi 0, %s16
      %p13 = scmp.ge.s32.totalorder %s12, 6
      %s19 = sphi 0, %s38
      %s20 = sphi 0, %s34
      %s21 = sphi 0, %s30
      %s22 = sphi 0, %s19
      %s23 = sphi 0, %s20
      %s24 = sphi 0, %s21
      %s25 = sphi 0, %s22
      %s26 = sphi 0, %s23
      %s27 = sphi 0, %s24
      %s41 = sphi 0, %s43
      %s44 = sphi 0, %s41
      %s45 = sphi 0, %s44
      %s61 = sphi 0, %s45
      %s67 = sphi 0, %s69
      %s70 = sphi 0, %s67
      %s71 = sphi 0, %s70
      %s87 = sphi 0, %s71
      %s93 = sphi 0, %s95
      %s96 = sphi 0, %s93
      %s97 = sphi 0, %s96
      %s113 = sphi 0, %s97
      %s123 = sphi 0, %s125
      %s126 = sphi 0, %s123
      %s127 = sphi 0, %s126
      %s143 = sphi 0, %s127
    $region4: #{tpu_custom_call.1} parent=1 // loop_header_branch
      %15 = sbr.rel (%p13) target = $region8
    $region5: #{tpu_custom_call.1} parent=1 // loop_body
      %s17 = ssub.s32 %s12, 1
      %s18 = ssub.s32 %s12, 2
      %s28 = sadd.s32 1, %s21
      %p29 = scmp.ge.s32.totalorder %s28, 2
      %s30 = scalar_select %p29, 0, %s28
      %s31 = sadd.s32 1, %s20
      %s32 = scalar_select %p29, %s31, %s20
      %p33 = scmp.ge.s32.totalorder %s32, 1
      %s34 = scalar_select %p33, 0, %s32
      %s35 = sadd.s32 1, %s19
      %s36 = scalar_select %p33, %s35, %s19
      %p37 = scmp.ge.s32.totalorder %s36, 2
      %s38 = scalar_select %p37, 0, %s36
      %s39 = ssub.s32 %s19, %s38
      %p40 = scmp.eq.s32.totalorder %s39, 0
      %s42 = sadd.s32 %s41, 1
      %s43 = scalar_select %p40, %s41, %s42
      %p46 = pneg %p40
      %p47 = scmp.eq.s32.totalorder %s12, 3
      %p48 = por %p46, %p47
      %p49 = scmp.ne.s32.totalorder %s41, %s44
      %p50 = scmp.eq.s32.totalorder %s12, 0
      %p51 = por %p49, %p50
      %p52 = scmp.ne.s32.totalorder %s41, %s44
      %p53 = scmp.eq.s32.totalorder %s17, 3
      %p54 = por %p52, %p53
      %p55 = scmp.ne.s32.totalorder %s44, %s45
      %p56 = scmp.eq.s32.totalorder %s17, 0
      %p57 = por %p55, %p56
      %p58 = scmp.ne.s32.totalorder %s44, %s45
      %p59 = scmp.eq.s32.totalorder %s18, 3
      %p60 = por %p58, %p59
      %p62 = scmp.ne.s32.totalorder %s45, %s61
      %p63 = scmp.eq.s32.totalorder %s18, 0
      %p64 = por %p62, %p63
      %s65 = ssub.s32 %s20, %s34
      %p66 = scmp.eq.s32.totalorder %s65, 0
      %s68 = sadd.s32 %s67, 1
      %s69 = scalar_select %p66, %s67, %s68
      %p72 = pneg %p66
      %p73 = scmp.eq.s32.totalorder %s12, 3
      %p74 = por %p72, %p73
      %p75 = scmp.ne.s32.totalorder %s67, %s70
      %p76 = scmp.eq.s32.totalorder %s12, 0
      %p77 = por %p75, %p76
      %p78 = scmp.ne.s32.totalorder %s67, %s70
      %p79 = scmp.eq.s32.totalorder %s17, 3
      %p80 = por %p78, %p79
      %p81 = scmp.ne.s32.totalorder %s70, %s71
      %p82 = scmp.eq.s32.totalorder %s17, 0
      %p83 = por %p81, %p82
      %p84 = scmp.ne.s32.totalorder %s70, %s71
      %p85 = scmp.eq.s32.totalorder %s18, 3
      %p86 = por %p84, %p85
      %p88 = scmp.ne.s32.totalorder %s71, %s87
      %p89 = scmp.eq.s32.totalorder %s18, 0
      %p90 = por %p88, %p89
      %s91 = ssub.s32 %s20, %s34
      %p92 = scmp.eq.s32.totalorder %s91, 0
      %s94 = sadd.s32 %s93, 1
      %s95 = scalar_select %p92, %s93, %s94
      %p98 = pneg %p92
      %p99 = scmp.eq.s32.totalorder %s12, 3
      %p100 = por %p98, %p99
      %p101 = scmp.ne.s32.totalorder %s93, %s96
      %p102 = scmp.eq.s32.totalorder %s12, 0
      %p103 = por %p101, %p102
      %p104 = scmp.ne.s32.totalorder %s93, %s96
      %p105 = scmp.eq.s32.totalorder %s17, 3
      %p106 = por %p104, %p105
      %p107 = scmp.ne.s32.totalorder %s96, %s97
      %p108 = scmp.eq.s32.totalorder %s17, 0
      %p109 = por %p107, %p108
      %p110 = scmp.ne.s32.totalorder %s96, %s97
      %p111 = scmp.eq.s32.totalorder %s18, 3
      %p112 = por %p110, %p111
      %p114 = scmp.ne.s32.totalorder %s97, %s113
      %p115 = scmp.eq.s32.totalorder %s18, 0
      %p116 = por %p114, %p115
      %s117 = ssub.s32 %s19, %s38
      %s118 = ssub.s32 %s21, %s30
      %s119 = sor.u32 %s117, %s118
      %s120 = ssub.s32 %s20, %s34
      %s121 = sor.u32 %s119, %s120
      %p122 = scmp.eq.s32.totalorder %s121, 0
      %s124 = sadd.s32 %s123, 1
      %s125 = scalar_select %p122, %s123, %s124
      %p128 = pneg %p122
      %p129 = scmp.eq.s32.totalorder %s12, 3
      %p130 = por %p128, %p129
      %p131 = scmp.ne.s32.totalorder %s123, %s126
      %p132 = scmp.eq.s32.totalorder %s12, 0
      %p133 = por %p131, %p132
      %p134 = scmp.ne.s32.totalorder %s123, %s126
      %p135 = scmp.eq.s32.totalorder %s17, 3
      %p136 = por %p134, %p135
      %p137 = scmp.ne.s32.totalorder %s126, %s127
      %p138 = scmp.eq.s32.totalorder %s17, 0
      %p139 = por %p137, %p138
      %p140 = scmp.ne.s32.totalorder %s126, %s127
      %p141 = scmp.eq.s32.totalorder %s18, 3
      %p142 = por %p140, %p141
      %p144 = scmp.ne.s32.totalorder %s127, %s143
      %p145 = scmp.eq.s32.totalorder %s18, 0
      %p146 = por %p144, %p145
      %p147 = scmp.le.s32.totalorder 1, %s12
      %p148 = scmp.lt.s32.totalorder %s12, 5
      %p149 = pnand %p147, %p148
      %p150 = pneg %p149
      // Predicated region
      $region9: #{tpu_custom_call.1} parent=5 // pred_check
        _
      $region10: #{tpu_custom_call.1} parent=5 // pred_check_branch
        %152 = sbr.rel (%p149) target = $region12
      $region11: #{tpu_custom_call.1} parent=5 // pred_region
        %s153 = ssub.s32 %s12, 1
        // Predicated region
        $region13: #{tpu_custom_call.1} parent=11 // pred_check
          %p154 = pneg %p83
        $region14: #{tpu_custom_call.1} parent=11 // pred_check_branch
          %156 = sbr.rel (%p154) target = $region16
        $region15: #{tpu_custom_call.1} parent=11 // pred_region
          %p157 = scmp.lt.s32.totalorder %s23, 0
          %s158 = scalar_select %p157, %s23, 0
          %s159 = smul.addr %s158, 4
          %s160 = scalar_lea.vmem %s1, %s159
        $region16: #{tpu_custom_call.1} parent=11 // pred_fallthru
          _
        // Predicated region
        $region17: #{tpu_custom_call.1} parent=11 // pred_check
          %p161 = pneg %p109
        $region18: #{tpu_custom_call.1} parent=11 // pred_check_branch
          %163 = sbr.rel (%p161) target = $region20
        $region19: #{tpu_custom_call.1} parent=11 // pred_region
          %p164 = scmp.lt.s32.totalorder %s23, 0
          %s165 = scalar_select %p164, %s23, 0
          %s166 = scalar_lea.vmem %s2, %s165
        $region20: #{tpu_custom_call.1} parent=11 // pred_fallthru
          _
      $region12: #{tpu_custom_call.1} parent=5 // pred_fallthru
        _
      %p167 = scmp.lt.s32.totalorder %s12, 4
      // Predicated region
      $region21: #{tpu_custom_call.1} parent=5 // pred_check
        %p168 = pneg %p167
      $region22: #{tpu_custom_call.1} parent=5 // pred_check_branch
        %170 = sbr.rel (%p168) target = $region24
      $region23: #{tpu_custom_call.1} parent=5 // pred_region
        // Predicated region
        $region25: #{tpu_custom_call.1} parent=23 // pred_check
          %p171 = pneg %p51
        $region26: #{tpu_custom_call.1} parent=23 // pred_check_branch
          %173 = sbr.rel (%p171) target = $region28
        $region27: #{tpu_custom_call.1} parent=23 // pred_region
          %p174 = scmp.lt.s32.totalorder %s19, 1
          %s175 = scalar_select %p174, %s19, 1
          %s176 = smul.addr %s175, 96
          %s177 = smul.addr %s176, 8
          %s178 = scalar_lea.vmem %s0, %s177
        $region28: #{tpu_custom_call.1} parent=23 // pred_fallthru
          _
      $region24: #{tpu_custom_call.1} parent=5 // pred_fallthru
        _
      %p179 = scmp.le.s32.totalorder 1, %s12
      %p180 = scmp.lt.s32.totalorder %s12, 5
      %p181 = pnand %p179, %p180
      %p182 = pneg %p181
      // Predicated region
      $region29: #{tpu_custom_call.1} parent=5 // pred_check
        _
      $region30: #{tpu_custom_call.1} parent=5 // pred_check_branch
        %184 = sbr.rel (%p181) target = $region32
      $region31: #{tpu_custom_call.1} parent=5 // pred_region
        %s185 = ssub.s32 %s12, 1
        %p186 = scmp.lt.s32.totalorder %s22, 1
        %s187 = scalar_select %p186, %s22, 1
        %s188 = smul.addr %s187, 96
        %s189 = smul.addr %s188, 8
        %s190 = scalar_lea.vmem %s0, %s189
        %p191 = pneg %p57
        %p192 = pneg %p54
        %p193 = scmp.lt.s32.totalorder %s23, 0
        %s194 = scalar_select %p193, %s23, 0
        %s195 = smul.addr %s194, 4
        %s196 = scalar_lea.vmem %s1, %s195
        %p197 = pneg %p83
        %p198 = pneg %p80
        %p199 = scmp.lt.s32.totalorder %s23, 0
        %s200 = scalar_select %p199, %s23, 0
        %s201 = scalar_lea.vmem %s2, %s200
        %p202 = pneg %p109
        %p203 = pneg %p106
        %p204 = pneg %p139
        %p205 = pneg %p136
        %s206 = sand.u32 %s126, 1
        %s207 = scalar_lea.sflag [#allocation3], %s206
        %s208 = sand.u32 %s126, 1
        %s209 = smul.addr %s208, 256
        %s210 = scalar_lea.vmem [#allocation2], %s209
        %p211 = scmp.lt.s32.totalorder %s22, 1
        %s212 = scalar_select %p211, %s22, 1
        %s213 = smul.addr %s212, 96
        %s214 = smul.addr %s213, 8
        %s215 = scalar_lea.vmem %s0, %s214
        %p216 = scmp.lt.s32.totalorder %s23, 0
        %s217 = scalar_select %p216, %s23, 0
        %s218 = smul.addr %s217, 4
        %s219 = scalar_lea.vmem %s1, %s218
        %p220 = scmp.lt.s32.totalorder %s23, 0
        %s221 = scalar_select %p220, %s23, 0
        %s222 = scalar_lea.vmem %s2, %s221
        %s223 = smul.u32 32, %s24
        %s224 = smul.u32 %s24, 256
        %s225 = scalar_lea.vmem %s215, %s224
        %v226 = vld [vmem:[%s225] sm:$0xff]
        %v227 = vld [vmem:[%s225 + $0x8] sm:$0xff]
        %v228 = vld [vmem:[%s225 + $0x10] sm:$0xff]
        %v229 = vld [vmem:[%s225 + $0x18] sm:$0xff]
        %v230 = vld [vmem:[%s225 + $0x20] sm:$0xff]
        %v231 = vld [vmem:[%s225 + $0x28] sm:$0xff]
        %v232 = vld [vmem:[%s225 + $0x30] sm:$0xff]
        %v233 = vld [vmem:[%s225 + $0x38] sm:$0xff]
        %v234 = vld [vmem:[%s225 + $0x40] sm:$0xff]
        %v235 = vld [vmem:[%s225 + $0x48] sm:$0xff]
        %v236 = vld [vmem:[%s225 + $0x50] sm:$0xff]
        %v237 = vld [vmem:[%s225 + $0x58] sm:$0xff]
        %v238 = vld [vmem:[%s225 + $0x60] sm:$0xff]
        %v239 = vld [vmem:[%s225 + $0x68] sm:$0xff]
        %v240 = vld [vmem:[%s225 + $0x70] sm:$0xff]
        %v241 = vld [vmem:[%s225 + $0x78] sm:$0xff]
        %v242 = vld [vmem:[%s225 + $0x80] sm:$0xff]
        %v243 = vld [vmem:[%s225 + $0x88] sm:$0xff]
        %v244 = vld [vmem:[%s225 + $0x90] sm:$0xff]
        %v245 = vld [vmem:[%s225 + $0x98] sm:$0xff]
        %v246 = vld [vmem:[%s225 + $0xa0] sm:$0xff]
        %v247 = vld [vmem:[%s225 + $0xa8] sm:$0xff]
        %v248 = vld [vmem:[%s225 + $0xb0] sm:$0xff]
        %v249 = vld [vmem:[%s225 + $0xb8] sm:$0xff]
        %v250 = vld [vmem:[%s225 + $0xc0] sm:$0xff]
        %v251 = vld [vmem:[%s225 + $0xc8] sm:$0xff]
        %v252 = vld [vmem:[%s225 + $0xd0] sm:$0xff]
        %v253 = vld [vmem:[%s225 + $0xd8] sm:$0xff]
        %v254 = vld [vmem:[%s225 + $0xe0] sm:$0xff]
        %v255 = vld [vmem:[%s225 + $0xe8] sm:$0xff]
        %v256 = vld [vmem:[%s225 + $0xf0] sm:$0xff]
        %v257 = vld [vmem:[%s225 + $0xf8] sm:$0xff]
        %v258 = vld [vmem:[%s219] sm:$0xf]
        %s259 = sadd.s32 %s224, 32
        %s260 = scalar_lea.vmem %s215, %s259
        %v261 = vld [vmem:[%s260] sm:$0xff]
        %v262 = vld [vmem:[%s260 + $0x8] sm:$0xff]
        %v263 = vld [vmem:[%s260 + $0x10] sm:$0xff]
        %v264 = vld [vmem:[%s260 + $0x18] sm:$0xff]
        %v265 = vld [vmem:[%s260 + $0x20] sm:$0xff]
        %v266 = vld [vmem:[%s260 + $0x28] sm:$0xff]
        %v267 = vld [vmem:[%s260 + $0x30] sm:$0xff]
        %v268 = vld [vmem:[%s260 + $0x38] sm:$0xff]
        %v269 = vld [vmem:[%s260 + $0x40] sm:$0xff]
        %v270 = vld [vmem:[%s260 + $0x48] sm:$0xff]
        %v271 = vld [vmem:[%s260 + $0x50] sm:$0xff]
        %v272 = vld [vmem:[%s260 + $0x58] sm:$0xff]
        %v273 = vld [vmem:[%s260 + $0x60] sm:$0xff]
        %v274 = vld [vmem:[%s260 + $0x68] sm:$0xff]
        %v275 = vld [vmem:[%s260 + $0x70] sm:$0xff]
        %v276 = vld [vmem:[%s260 + $0x78] sm:$0xff]
        %v277 = vld [vmem:[%s260 + $0x80] sm:$0xff]
        %v278 = vld [vmem:[%s260 + $0x88] sm:$0xff]
        %v279 = vld [vmem:[%s260 + $0x90] sm:$0xff]
        %v280 = vld [vmem:[%s260 + $0x98] sm:$0xff]
        %v281 = vld [vmem:[%s260 + $0xa0] sm:$0xff]
        %v282 = vld [vmem:[%s260 + $0xa8] sm:$0xff]
        %v283 = vld [vmem:[%s260 + $0xb0] sm:$0xff]
        %v284 = vld [vmem:[%s260 + $0xb8] sm:$0xff]
        %v285 = vld [vmem:[%s260 + $0xc0] sm:$0xff]
        %v286 = vld [vmem:[%s260 + $0xc8] sm:$0xff]
        %v287 = vld [vmem:[%s260 + $0xd0] sm:$0xff]
        %v288 = vld [vmem:[%s260 + $0xd8] sm:$0xff]
        %v289 = vld [vmem:[%s260 + $0xe0] sm:$0xff]
        %v290 = vld [vmem:[%s260 + $0xe8] sm:$0xff]
        %v291 = vld [vmem:[%s260 + $0xf0] sm:$0xff]
        %v292 = vld [vmem:[%s260 + $0xf8] sm:$0xff]
        %s293 = scalar_lea.vmem %s219, 4
        %v294 = vld [vmem:[%s293] sm:$0xf]
        %vm295 = vcmask 31744
        %v297 = vsel %vm295, %v261, 0
        %v300 = vsel %vm295, %v262, 0
        %v303 = vsel %vm295, %v263, 0
        %v306 = vsel %vm295, %v264, 0
        %v309 = vsel %vm295, %v265, 0
        %v312 = vsel %vm295, %v266, 0
        %v315 = vsel %vm295, %v267, 0
        %v318 = vsel %vm295, %v268, 0
        %v321 = vsel %vm295, %v269, 0
        %v324 = vsel %vm295, %v270, 0
        %v327 = vsel %vm295, %v271, 0
        %v330 = vsel %vm295, %v272, 0
        %v333 = vsel %vm295, %v273, 0
        %v336 = vsel %vm295, %v274, 0
        %v339 = vsel %vm295, %v275, 0
        %v342 = vsel %vm295, %v276, 0
        %v345 = vsel %vm295, %v277, 0
        %v348 = vsel %vm295, %v278, 0
        %v351 = vsel %vm295, %v279, 0
        %v354 = vsel %vm295, %v280, 0
        %v357 = vsel %vm295, %v281, 0
        %v360 = vsel %vm295, %v282, 0
        %v363 = vsel %vm295, %v283, 0
        %v366 = vsel %vm295, %v284, 0
        %v369 = vsel %vm295, %v285, 0
        %v372 = vsel %vm295, %v286, 0
        %v375 = vsel %vm295, %v287, 0
        %v378 = vsel %vm295, %v288, 0
        %v381 = vsel %vm295, %v289, 0
        %v384 = vsel %vm295, %v290, 0
        %v387 = vsel %vm295, %v291, 0
        %v390 = vsel %vm295, %v292, 0
        %vm392 = vcmask 1043456
        %v394 = vsel %vm392, %v294, 0
        %396 = vmatprep.subr.mxu0 0.0
        %397 = vmatpush1.msra.mxu0 %v394
        %398 = vmatprep.subr.mxu0 0.0
        %399 = vmatpush1.msra.mxu0 0.0
        %400 = vmatprep.subr.mxu0 0.0
        %401 = vmatpush1.msra.mxu0 0.0
        %402 = vmatprep.subr.mxu0 0.0
        %403 = vmatpush1.msra.mxu0 0.0
        %404 = vmatprep.subr.mxu0 0.0
        %405 = vmatpush1.msra.mxu0 0.0
        %406 = vmatprep.subr.mxu0 0.0
        %407 = vmatpush1.msra.mxu0 0.0
        %408 = vmatprep.subr.mxu0 0.0
        %409 = vmatpush1.msra.mxu0 0.0
        %410 = vmatprep.subr.mxu0 0.0
        %411 = vmatpush1.msra.mxu0 0.0
        %412 = vmatprep.subr.mxu0 0.0
        %413 = vmatpush1.msra.mxu0 0.0
        %414 = vmatprep.subr.mxu0 0.0
        %415 = vmatpush1.msra.mxu0 0.0
        %416 = vmatprep.subr.mxu0 0.0
        %417 = vmatpush1.msra.mxu0 0.0
        %418 = vmatprep.subr.mxu0 0.0
        %419 = vmatpush1.msra.mxu0 0.0
        %420 = vmatprep.subr.mxu0 0.0
        %421 = vmatpush1.msra.mxu0 0.0
        %422 = vmatprep.subr.mxu0 0.0
        %423 = vmatpush1.msra.mxu0 0.0
        %424 = vmatprep.subr.mxu0 0.0
        %425 = vmatpush1.msra.mxu0 0.0
        %426 = vmatprep.subr.mxu0 0.0
        %427 = vmatpush1.msra.mxu0 0.0
        %428 = vmatprep.subr.mxu0 0.0
        %429 = vmatpush1.msra.mxu0 0.0
        %430 = vmatprep.subr.mxu0 0.0
        %431 = vmatpush1.msra.mxu0 0.0
        %432 = vmatprep.subr.mxu0 0.0
        %433 = vmatpush1.msra.mxu0 0.0
        %434 = vmatprep.subr.mxu0 0.0
        %435 = vmatpush1.msra.mxu0 0.0
        %436 = vmatprep.subr.mxu0 0.0
        %437 = vmatpush1.msra.mxu0 0.0
        %438 = vmatprep.subr.mxu0 0.0
        %439 = vmatpush1.msra.mxu0 0.0
        %440 = vmatprep.subr.mxu0 0.0
        %441 = vmatpush1.msra.mxu0 0.0
        %442 = vmatprep.subr.mxu0 0.0
        %443 = vmatpush1.msra.mxu0 0.0
        %444 = vmatprep.subr.mxu0 0.0
        %445 = vmatpush1.msra.mxu0 0.0
        %446 = vmatprep.subr.mxu0 0.0
        %447 = vmatpush1.msra.mxu0 0.0
        %448 = vmatprep.subr.mxu0 0.0
        %449 = vmatpush1.msra.mxu0 0.0
        %450 = vmatprep.subr.mxu0 0.0
        %451 = vmatpush1.msra.mxu0 0.0
        %452 = vmatprep.subr.mxu0 0.0
        %453 = vmatpush1.msra.mxu0 0.0
        %454 = vmatprep.subr.mxu0 0.0
        %455 = vmatpush1.msra.mxu0 0.0
        %456 = vmatprep.subr.mxu0 0.0
        %457 = vmatpush1.msra.mxu0 0.0
        %458 = vmatprep.subr.mxu0 0.0
        %459 = vmatpush1.msra.mxu0 0.0
        %460 = vmatprep.mubr.f32.mxu0 0.0
        %461 = vmatmul.mubr.f32.gmra.mrb[0].mxu0 %v297
        %v462 = vpop.f32.mrb[0].mxu0
        %v463 = vadd.f32 0.0, %v462
        %v464 = vpop.f32.mrb[0].mxu0
        %465 = vmatprep.mubr.f32.mxu0 0.0
        %466 = vmatmul.mubr.f32.gmra.mrb[0].mxu0 %v300
        %v467 = vpop.f32.mrb[0].mxu0
        %v468 = vadd.f32 0.0, %v467
        %v469 = vpop.f32.mrb[0].mxu0
        %470 = vmatprep.mubr.f32.mxu0 0.0
        %471 = vmatmul.mubr.f32.gmra.mrb[0].mxu0 %v303
        %v472 = vpop.f32.mrb[0].mxu0
        %v473 = vadd.f32 0.0, %v472
        %v474 = vpop.f32.mrb[0].mxu0
        %475 = vmatprep.mubr.f32.mxu0 0.0
        %476 = vmatmul.mubr.f32.gmra.mrb[0].mxu0 %v306
        %v477 = vpop.f32.mrb[0].mxu0
        %v478 = vadd.f32 0.0, %v477
        %v479 = vpop.f32.mrb[0].mxu0
        %480 = vmatprep.mubr.f32.mxu0 0.0
        %481 = vmatmul.mubr.f32.gmra.mrb[0].mxu0 %v309
        %v482 = vpop.f32.mrb[0].mxu0
        %v483 = vadd.f32 0.0, %v482
        %v484 = vpop.f32.mrb[0].mxu0
        %485 = vmatprep.mubr.f32.mxu0 0.0
        %486 = vmatmul.mubr.f32.gmra.mrb[0].mxu0 %v312
        %v487 = vpop.f32.mrb[0].mxu0
        %v488 = vadd.f32 0.0, %v487
        %v489 = vpop.f32.mrb[0].mxu0
        %490 = vmatprep.mubr.f32.mxu0 0.0
        %491 = vmatmul.mubr.f32.gmra.mrb[0].mxu0 %v315
        %v492 = vpop.f32.mrb[0].mxu0
        %v493 = vadd.f32 0.0, %v492
        %v494 = vpop.f32.mrb[0].mxu0
        %495 = vmatprep.mubr.f32.mxu0 0.0
        %496 = vmatmul.mubr.f32.gmra.mrb[0].mxu0 %v318
        %v497 = vpop.f32.mrb[0].mxu0
        %v498 = vadd.f32 0.0, %v497
        %v499 = vpop.f32.mrb[0].mxu0
        %500 = vmatprep.mubr.f32.mxu0 0.0
        %501 = vmatmul.mubr.f32.gmra.mrb[0].mxu0 %v321
        %v502 = vpop.f32.mrb[0].mxu0
        %v503 = vadd.f32 0.0, %v502
        %v504 = vpop.f32.mrb[0].mxu0
        %505 = vmatprep.mubr.f32.mxu0 0.0
        %506 = vmatmul.mubr.f32.gmra.mrb[0].mxu0 %v324
        %v507 = vpop.f32.mrb[0].mxu0
        %v508 = vadd.f32 0.0, %v507
        %v509 = vpop.f32.mrb[0].mxu0
        %510 = vmatprep.mubr.f32.mxu0 0.0
        %511 = vmatmul.mubr.f32.gmra.mrb[0].mxu0 %v327
        %v512 = vpop.f32.mrb[0].mxu0
        %v513 = vadd.f32 0.0, %v512
        %v514 = vpop.f32.mrb[0].mxu0
        %515 = vmatprep.mubr.f32.mxu0 0.0
        %516 = vmatmul.mubr.f32.gmra.mrb[0].mxu0 %v330
        %v517 = vpop.f32.mrb[0].mxu0
        %v518 = vadd.f32 0.0, %v517
        %v519 = vpop.f32.mrb[0].mxu0
        %520 = vmatprep.mubr.f32.mxu0 0.0
        %521 = vmatmul.mubr.f32.gmra.mrb[0].mxu0 %v333
        %v522 = vpop.f32.mrb[0].mxu0
        %v523 = vadd.f32 0.0, %v522
        %v524 = vpop.f32.mrb[0].mxu0
        %525 = vmatprep.mubr.f32.mxu0 0.0
        %526 = vmatmul.mubr.f32.gmra.mrb[0].mxu0 %v336
        %v527 = vpop.f32.mrb[0].mxu0
        %v528 = vadd.f32 0.0, %v527
        %v529 = vpop.f32.mrb[0].mxu0
        %530 = vmatprep.mubr.f32.mxu0 0.0
        %531 = vmatmul.mubr.f32.gmra.mrb[0].mxu0 %v339
        %v532 = vpop.f32.mrb[0].mxu0
        %v533 = vadd.f32 0.0, %v532
        %v534 = vpop.f32.mrb[0].mxu0
        %535 = vmatprep.mubr.f32.mxu0 0.0
        %536 = vmatmul.mubr.f32.gmra.mrb[0].mxu0 %v342
        %v537 = vpop.f32.mrb[0].mxu0
        %v538 = vadd.f32 0.0, %v537
        %v539 = vpop.f32.mrb[0].mxu0
        %540 = vmatprep.mubr.f32.mxu0 0.0
        %541 = vmatmul.mubr.f32.gmra.mrb[0].mxu0 %v345
        %v542 = vpop.f32.mrb[0].mxu0
        %v543 = vadd.f32 0.0, %v542
        %v544 = vpop.f32.mrb[0].mxu0
        %545 = vmatprep.mubr.f32.mxu0 0.0
        %546 = vmatmul.mubr.f32.gmra.mrb[0].mxu0 %v348
        %v547 = vpop.f32.mrb[0].mxu0
        %v548 = vadd.f32 0.0, %v547
        %v549 = vpop.f32.mrb[0].mxu0
        %550 = vmatprep.mubr.f32.mxu0 0.0
        %551 = vmatmul.mubr.f32.gmra.mrb[0].mxu0 %v351
        %v552 = vpop.f32.mrb[0].mxu0
        %v553 = vadd.f32 0.0, %v552
        %v554 = vpop.f32.mrb[0].mxu0
        %555 = vmatprep.mubr.f32.mxu0 0.0
        %556 = vmatmul.mubr.f32.gmra.mrb[0].mxu0 %v354
        %v557 = vpop.f32.mrb[0].mxu0
        %v558 = vadd.f32 0.0, %v557
        %v559 = vpop.f32.mrb[0].mxu0
        %560 = vmatprep.mubr.f32.mxu0 0.0
        %561 = vmatmul.mubr.f32.gmra.mrb[0].mxu0 %v357
        %v562 = vpop.f32.mrb[0].mxu0
        %v563 = vadd.f32 0.0, %v562
        %v564 = vpop.f32.mrb[0].mxu0
        %565 = vmatprep.mubr.f32.mxu0 0.0
        %566 = vmatmul.mubr.f32.gmra.mrb[0].mxu0 %v360
        %v567 = vpop.f32.mrb[0].mxu0
        %v568 = vadd.f32 0.0, %v567
        %v569 = vpop.f32.mrb[0].mxu0
        %570 = vmatprep.mubr.f32.mxu0 0.0
        %571 = vmatmul.mubr.f32.gmra.mrb[0].mxu0 %v363
        %v572 = vpop.f32.mrb[0].mxu0
        %v573 = vadd.f32 0.0, %v572
        %v574 = vpop.f32.mrb[0].mxu0
        %575 = vmatprep.mubr.f32.mxu0 0.0
        %576 = vmatmul.mubr.f32.gmra.mrb[0].mxu0 %v366
        %v577 = vpop.f32.mrb[0].mxu0
        %v578 = vadd.f32 0.0, %v577
        %v579 = vpop.f32.mrb[0].mxu0
        %580 = vmatprep.mubr.f32.mxu0 0.0
        %581 = vmatmul.mubr.f32.gmra.mrb[0].mxu0 %v369
        %v582 = vpop.f32.mrb[0].mxu0
        %v583 = vadd.f32 0.0, %v582
        %v584 = vpop.f32.mrb[0].mxu0
        %585 = vmatprep.mubr.f32.mxu0 0.0
        %586 = vmatmul.mubr.f32.gmra.mrb[0].mxu0 %v372
        %v587 = vpop.f32.mrb[0].mxu0
        %v588 = vadd.f32 0.0, %v587
        %v589 = vpop.f32.mrb[0].mxu0
        %590 = vmatprep.mubr.f32.mxu0 0.0
        %591 = vmatmul.mubr.f32.gmra.mrb[0].mxu0 %v375
        %v592 = vpop.f32.mrb[0].mxu0
        %v593 = vadd.f32 0.0, %v592
        %v594 = vpop.f32.mrb[0].mxu0
        %595 = vmatprep.mubr.f32.mxu0 0.0
        %596 = vmatmul.mubr.f32.gmra.mrb[0].mxu0 %v378
        %v597 = vpop.f32.mrb[0].mxu0
        %v598 = vadd.f32 0.0, %v597
        %v599 = vpop.f32.mrb[0].mxu0
        %600 = vmatprep.mubr.f32.mxu0 0.0
        %601 = vmatmul.mubr.f32.gmra.mrb[0].mxu0 %v381
        %v602 = vpop.f32.mrb[0].mxu0
        %v603 = vadd.f32 0.0, %v602
        %v604 = vpop.f32.mrb[0].mxu0
        %605 = vmatprep.mubr.f32.mxu0 0.0
        %606 = vmatmul.mubr.f32.gmra.mrb[0].mxu0 %v384
        %v607 = vpop.f32.mrb[0].mxu0
        %v608 = vadd.f32 0.0, %v607
        %v609 = vpop.f32.mrb[0].mxu0
        %610 = vmatprep.mubr.f32.mxu0 0.0
        %611 = vmatmul.mubr.f32.gmra.mrb[0].mxu0 %v387
        %v612 = vpop.f32.mrb[0].mxu0
        %v613 = vadd.f32 0.0, %v612
        %v614 = vpop.f32.mrb[0].mxu0
        %615 = vmatprep.mubr.f32.mxu0 0.0
        %616 = vmatmul.mubr.f32.gmra.mrb[0].mxu0 %v390
        %v617 = vpop.f32.mrb[0].mxu0
        %v618 = vadd.f32 0.0, %v617
        %v619 = vpop.f32.mrb[0].mxu0
        %620 = vdwg.mxu0
        %v622 = vsel %vm295, %v226, 0
        %v625 = vsel %vm295, %v227, 0
        %v628 = vsel %vm295, %v228, 0
        %v631 = vsel %vm295, %v229, 0
        %v634 = vsel %vm295, %v230, 0
        %v637 = vsel %vm295, %v231, 0
        %v640 = vsel %vm295, %v232, 0
        %v643 = vsel %vm295, %v233, 0
        %v646 = vsel %vm295, %v234, 0
        %v649 = vsel %vm295, %v235, 0
        %v652 = vsel %vm295, %v236, 0
        %v655 = vsel %vm295, %v237, 0
        %v658 = vsel %vm295, %v238, 0
        %v661 = vsel %vm295, %v239, 0
        %v664 = vsel %vm295, %v240, 0
        %v667 = vsel %vm295, %v241, 0
        %v670 = vsel %vm295, %v242, 0
        %v673 = vsel %vm295, %v243, 0
        %v676 = vsel %vm295, %v244, 0
        %v679 = vsel %vm295, %v245, 0
        %v682 = vsel %vm295, %v246, 0
        %v685 = vsel %vm295, %v247, 0
        %v688 = vsel %vm295, %v248, 0
        %v691 = vsel %vm295, %v249, 0
        %v694 = vsel %vm295, %v250, 0
        %v697 = vsel %vm295, %v251, 0
        %v700 = vsel %vm295, %v252, 0
        %v703 = vsel %vm295, %v253, 0
        %v706 = vsel %vm295, %v254, 0
        %v709 = vsel %vm295, %v255, 0
        %v712 = vsel %vm295, %v256, 0
        %v715 = vsel %vm295, %v257, 0
        %v718 = vsel %vm392, %v258, 0
        %720 = vmatprep.subr.mxu0 0.0
        %721 = vmatpush1.msra.mxu0 %v718
        %722 = vmatprep.subr.mxu0 0.0
        %723 = vmatpush1.msra.mxu0 0.0
        %724 = vmatprep.subr.mxu0 0.0
        %725 = vmatpush1.msra.mxu0 0.0
        %726 = vmatprep.subr.mxu0 0.0
        %727 = vmatpush1.msra.mxu0 0.0
        %728 = vmatprep.subr.mxu0 0.0
        %729 = vmatpush1.msra.mxu0 0.0
        %730 = vmatprep.subr.mxu0 0.0
        %731 = vmatpush1.msra.mxu0 0.0
        %732 = vmatprep.subr.mxu0 0.0
        %733 = vmatpush1.msra.mxu0 0.0
        %734 = vmatprep.subr.mxu0 0.0
        %735 = vmatpush1.msra.mxu0 0.0
        %736 = vmatprep.subr.mxu0 0.0
        %737 = vmatpush1.msra.mxu0 0.0
        %738 = vmatprep.subr.mxu0 0.0
        %739 = vmatpush1.msra.mxu0 0.0
        %740 = vmatprep.subr.mxu0 0.0
        %741 = vmatpush1.msra.mxu0 0.0
        %742 = vmatprep.subr.mxu0 0.0
        %743 = vmatpush1.msra.mxu0 0.0
        %744 = vmatprep.subr.mxu0 0.0
        %745 = vmatpush1.msra.mxu0 0.0
        %746 = vmatprep.subr.mxu0 0.0
        %747 = vmatpush1.msra.mxu0 0.0
        %748 = vmatprep.subr.mxu0 0.0
        %749 = vmatpush1.msra.mxu0 0.0
        %750 = vmatprep.subr.mxu0 0.0
        %751 = vmatpush1.msra.mxu0 0.0
        %752 = vmatprep.subr.mxu0 0.0
        %753 = vmatpush1.msra.mxu0 0.0
        %754 = vmatprep.subr.mxu0 0.0
        %755 = vmatpush1.msra.mxu0 0.0
        %756 = vmatprep.subr.mxu0 0.0
        %757 = vmatpush1.msra.mxu0 0.0
        %758 = vmatprep.subr.mxu0 0.0
        %759 = vmatpush1.msra.mxu0 0.0
        %760 = vmatprep.subr.mxu0 0.0
        %761 = vmatpush1.msra.mxu0 0.0
        %762 = vmatprep.subr.mxu0 0.0
        %763 = vmatpush1.msra.mxu0 0.0
        %764 = vmatprep.subr.mxu0 0.0
        %765 = vmatpush1.msra.mxu0 0.0
        %766 = vmatprep.subr.mxu0 0.0
        %767 = vmatpush1.msra.mxu0 0.0
        %768 = vmatprep.subr.mxu0 0.0
        %769 = vmatpush1.msra.mxu0 0.0
        %770 = vmatprep.subr.mxu0 0.0
        %771 = vmatpush1.msra.mxu0 0.0
        %772 = vmatprep.subr.mxu0 0.0
        %773 = vmatpush1.msra.mxu0 0.0
        %774 = vmatprep.subr.mxu0 0.0
        %775 = vmatpush1.msra.mxu0 0.0
        %776 = vmatprep.subr.mxu0 0.0
        %777 = vmatpush1.msra.mxu0 0.0
        %778 = vmatprep.subr.mxu0 0.0
        %779 = vmatpush1.msra.mxu0 0.0
        %780 = vmatprep.subr.mxu0 0.0
        %781 = vmatpush1.msra.mxu0 0.0
        %782 = vmatprep.subr.mxu0 0.0
        %783 = vmatpush1.msra.mxu0 0.0
        %784 = vmatprep.mubr.f32.mxu0 0.0
        %785 = vmatmul.mubr.f32.gmra.mrb[0].mxu0 %v622
        %v786 = vpop.f32.mrb[0].mxu0
        %v787 = vadd.f32 %v463, %v786
        %v788 = vpop.f32.mrb[0].mxu0
        %789 = vmatprep.mubr.f32.mxu0 0.0
        %790 = vmatmul.mubr.f32.gmra.mrb[0].mxu0 %v625
        %v791 = vpop.f32.mrb[0].mxu0
        %v792 = vadd.f32 %v468, %v791
        %v793 = vpop.f32.mrb[0].mxu0
        %794 = vmatprep.mubr.f32.mxu0 0.0
        %795 = vmatmul.mubr.f32.gmra.mrb[0].mxu0 %v628
        %v796 = vpop.f32.mrb[0].mxu0
        %v797 = vadd.f32 %v473, %v796
        %v798 = vpop.f32.mrb[0].mxu0
        %799 = vmatprep.mubr.f32.mxu0 0.0
        %800 = vmatmul.mubr.f32.gmra.mrb[0].mxu0 %v631
        %v801 = vpop.f32.mrb[0].mxu0
        %v802 = vadd.f32 %v478, %v801
        %v803 = vpop.f32.mrb[0].mxu0
        %804 = vmatprep.mubr.f32.mxu0 0.0
        %805 = vmatmul.mubr.f32.gmra.mrb[0].mxu0 %v634
        %v806 = vpop.f32.mrb[0].mxu0
        %v807 = vadd.f32 %v483, %v806
        %v808 = vpop.f32.mrb[0].mxu0
        %809 = vmatprep.mubr.f32.mxu0 0.0
        %810 = vmatmul.mubr.f32.gmra.mrb[0].mxu0 %v637
        %v811 = vpop.f32.mrb[0].mxu0
        %v812 = vadd.f32 %v488, %v811
        %v813 = vpop.f32.mrb[0].mxu0
        %814 = vmatprep.mubr.f32.mxu0 0.0
        %815 = vmatmul.mubr.f32.gmra.mrb[0].mxu0 %v640
        %v816 = vpop.f32.mrb[0].mxu0
        %v817 = vadd.f32 %v493, %v816
        %v818 = vpop.f32.mrb[0].mxu0
        %819 = vmatprep.mubr.f32.mxu0 0.0
        %820 = vmatmul.mubr.f32.gmra.mrb[0].mxu0 %v643
        %v821 = vpop.f32.mrb[0].mxu0
        %v822 = vadd.f32 %v498, %v821
        %v823 = vpop.f32.mrb[0].mxu0
        %824 = vmatprep.mubr.f32.mxu0 0.0
        %825 = vmatmul.mubr.f32.gmra.mrb[0].mxu0 %v646
        %v826 = vpop.f32.mrb[0].mxu0
        %v827 = vadd.f32 %v503, %v826
        %v828 = vpop.f32.mrb[0].mxu0
        %829 = vmatprep.mubr.f32.mxu0 0.0
        %830 = vmatmul.mubr.f32.gmra.mrb[0].mxu0 %v649
        %v831 = vpop.f32.mrb[0].mxu0
        %v832 = vadd.f32 %v508, %v831
        %v833 = vpop.f32.mrb[0].mxu0
        %834 = vmatprep.mubr.f32.mxu0 0.0
        %835 = vmatmul.mubr.f32.gmra.mrb[0].mxu0 %v652
        %v836 = vpop.f32.mrb[0].mxu0
        %v837 = vadd.f32 %v513, %v836
        %v838 = vpop.f32.mrb[0].mxu0
        %839 = vmatprep.mubr.f32.mxu0 0.0
        %840 = vmatmul.mubr.f32.gmra.mrb[0].mxu0 %v655
        %v841 = vpop.f32.mrb[0].mxu0
        %v842 = vadd.f32 %v518, %v841
        %v843 = vpop.f32.mrb[0].mxu0
        %844 = vmatprep.mubr.f32.mxu0 0.0
        %845 = vmatmul.mubr.f32.gmra.mrb[0].mxu0 %v658
        %v846 = vpop.f32.mrb[0].mxu0
        %v847 = vadd.f32 %v523, %v846
        %v848 = vpop.f32.mrb[0].mxu0
        %849 = vmatprep.mubr.f32.mxu0 0.0
        %850 = vmatmul.mubr.f32.gmra.mrb[0].mxu0 %v661
        %v851 = vpop.f32.mrb[0].mxu0
        %v852 = vadd.f32 %v528, %v851
        %v853 = vpop.f32.mrb[0].mxu0
        %854 = vmatprep.mubr.f32.mxu0 0.0
        %855 = vmatmul.mubr.f32.gmra.mrb[0].mxu0 %v664
        %v856 = vpop.f32.mrb[0].mxu0
        %v857 = vadd.f32 %v533, %v856
        %v858 = vpop.f32.mrb[0].mxu0
        %859 = vmatprep.mubr.f32.mxu0 0.0
        %860 = vmatmul.mubr.f32.gmra.mrb[0].mxu0 %v667
        %v861 = vpop.f32.mrb[0].mxu0
        %v862 = vadd.f32 %v538, %v861
        %v863 = vpop.f32.mrb[0].mxu0
        %864 = vmatprep.mubr.f32.mxu0 0.0
        %865 = vmatmul.mubr.f32.gmra.mrb[0].mxu0 %v670
        %v866 = vpop.f32.mrb[0].mxu0
        %v867 = vadd.f32 %v543, %v866
        %v868 = vpop.f32.mrb[0].mxu0
        %869 = vmatprep.mubr.f32.mxu0 0.0
        %870 = vmatmul.mubr.f32.gmra.mrb[0].mxu0 %v673
        %v871 = vpop.f32.mrb[0].mxu0
        %v872 = vadd.f32 %v548, %v871
        %v873 = vpop.f32.mrb[0].mxu0
        %874 = vmatprep.mubr.f32.mxu0 0.0
        %875 = vmatmul.mubr.f32.gmra.mrb[0].mxu0 %v676
        %v876 = vpop.f32.mrb[0].mxu0
        %v877 = vadd.f32 %v553, %v876
        %v878 = vpop.f32.mrb[0].mxu0
        %879 = vmatprep.mubr.f32.mxu0 0.0
        %880 = vmatmul.mubr.f32.gmra.mrb[0].mxu0 %v679
        %v881 = vpop.f32.mrb[0].mxu0
        %v882 = vadd.f32 %v558, %v881
        %v883 = vpop.f32.mrb[0].mxu0
        %884 = vmatprep.mubr.f32.mxu0 0.0
        %885 = vmatmul.mubr.f32.gmra.mrb[0].mxu0 %v682
        %v886 = vpop.f32.mrb[0].mxu0
        %v887 = vadd.f32 %v563, %v886
        %v888 = vpop.f32.mrb[0].mxu0
        %889 = vmatprep.mubr.f32.mxu0 0.0
        %890 = vmatmul.mubr.f32.gmra.mrb[0].mxu0 %v685
        %v891 = vpop.f32.mrb[0].mxu0
        %v892 = vadd.f32 %v568, %v891
        %v893 = vpop.f32.mrb[0].mxu0
        %894 = vmatprep.mubr.f32.mxu0 0.0
        %895 = vmatmul.mubr.f32.gmra.mrb[0].mxu0 %v688
        %v896 = vpop.f32.mrb[0].mxu0
        %v897 = vadd.f32 %v573, %v896
        %v898 = vpop.f32.mrb[0].mxu0
        %899 = vmatprep.mubr.f32.mxu0 0.0
        %900 = vmatmul.mubr.f32.gmra.mrb[0].mxu0 %v691
        %v901 = vpop.f32.mrb[0].mxu0
        %v902 = vadd.f32 %v578, %v901
        %v903 = vpop.f32.mrb[0].mxu0
        %904 = vmatprep.mubr.f32.mxu0 0.0
        %905 = vmatmul.mubr.f32.gmra.mrb[0].mxu0 %v694
        %v906 = vpop.f32.mrb[0].mxu0
        %v907 = vadd.f32 %v583, %v906
        %v908 = vpop.f32.mrb[0].mxu0
        %909 = vmatprep.mubr.f32.mxu0 0.0
        %910 = vmatmul.mubr.f32.gmra.mrb[0].mxu0 %v697
        %v911 = vpop.f32.mrb[0].mxu0
        %v912 = vadd.f32 %v588, %v911
        %v913 = vpop.f32.mrb[0].mxu0
        %914 = vmatprep.mubr.f32.mxu0 0.0
        %915 = vmatmul.mubr.f32.gmra.mrb[0].mxu0 %v700
        %v916 = vpop.f32.mrb[0].mxu0
        %v917 = vadd.f32 %v593, %v916
        %v918 = vpop.f32.mrb[0].mxu0
        %919 = vmatprep.mubr.f32.mxu0 0.0
        %920 = vmatmul.mubr.f32.gmra.mrb[0].mxu0 %v703
        %v921 = vpop.f32.mrb[0].mxu0
        %v922 = vadd.f32 %v598, %v921
        %v923 = vpop.f32.mrb[0].mxu0
        %924 = vmatprep.mubr.f32.mxu0 0.0
        %925 = vmatmul.mubr.f32.gmra.mrb[0].mxu0 %v706
        %v926 = vpop.f32.mrb[0].mxu0
        %v927 = vadd.f32 %v603, %v926
        %v928 = vpop.f32.mrb[0].mxu0
        %929 = vmatprep.mubr.f32.mxu0 0.0
        %930 = vmatmul.mubr.f32.gmra.mrb[0].mxu0 %v709
        %v931 = vpop.f32.mrb[0].mxu0
        %v932 = vadd.f32 %v608, %v931
        %v933 = vpop.f32.mrb[0].mxu0
        %934 = vmatprep.mubr.f32.mxu0 0.0
        %935 = vmatmul.mubr.f32.gmra.mrb[0].mxu0 %v712
        %v936 = vpop.f32.mrb[0].mxu0
        %v937 = vadd.f32 %v613, %v936
        %v938 = vpop.f32.mrb[0].mxu0
        %939 = vmatprep.mubr.f32.mxu0 0.0
        %940 = vmatmul.mubr.f32.gmra.mrb[0].mxu0 %v715
        %v941 = vpop.f32.mrb[0].mxu0
        %v942 = vadd.f32 %v618, %v941
        %v943 = vpop.f32.mrb[0].mxu0
        %944 = vdwg.mxu0
        %s945 = sadd.s32 %s224, 64
        %s946 = scalar_lea.vmem %s215, %s945
        %v947 = vld [vmem:[%s946] sm:$0xff]
        %v948 = vld [vmem:[%s946 + $0x8] sm:$0xff]
        %v949 = vld [vmem:[%s946 + $0x10] sm:$0xff]
        %v950 = vld [vmem:[%s946 + $0x18] sm:$0xff]
        %v951 = vld [vmem:[%s946 + $0x20] sm:$0xff]
        %v952 = vld [vmem:[%s946 + $0x28] sm:$0xff]
        %v953 = vld [vmem:[%s946 + $0x30] sm:$0xff]
        %v954 = vld [vmem:[%s946 + $0x38] sm:$0xff]
        %v955 = vld [vmem:[%s946 + $0x40] sm:$0xff]
        %v956 = vld [vmem:[%s946 + $0x48] sm:$0xff]
        %v957 = vld [vmem:[%s946 + $0x50] sm:$0xff]
        %v958 = vld [vmem:[%s946 + $0x58] sm:$0xff]
        %v959 = vld [vmem:[%s946 + $0x60] sm:$0xff]
        %v960 = vld [vmem:[%s946 + $0x68] sm:$0xff]
        %v961 = vld [vmem:[%s946 + $0x70] sm:$0xff]
        %v962 = vld [vmem:[%s946 + $0x78] sm:$0xff]
        %v963 = vld [vmem:[%s946 + $0x80] sm:$0xff]
        %v964 = vld [vmem:[%s946 + $0x88] sm:$0xff]
        %v965 = vld [vmem:[%s946 + $0x90] sm:$0xff]
        %v966 = vld [vmem:[%s946 + $0x98] sm:$0xff]
        %v967 = vld [vmem:[%s946 + $0xa0] sm:$0xff]
        %v968 = vld [vmem:[%s946 + $0xa8] sm:$0xff]
        %v969 = vld [vmem:[%s946 + $0xb0] sm:$0xff]
        %v970 = vld [vmem:[%s946 + $0xb8] sm:$0xff]
        %v971 = vld [vmem:[%s946 + $0xc0] sm:$0xff]
        %v972 = vld [vmem:[%s946 + $0xc8] sm:$0xff]
        %v973 = vld [vmem:[%s946 + $0xd0] sm:$0xff]
        %v974 = vld [vmem:[%s946 + $0xd8] sm:$0xff]
        %v975 = vld [vmem:[%s946 + $0xe0] sm:$0xff]
        %v976 = vld [vmem:[%s946 + $0xe8] sm:$0xff]
        %v977 = vld [vmem:[%s946 + $0xf0] sm:$0xff]
        %v978 = vld [vmem:[%s946 + $0xf8] sm:$0xff]
        %s979 = scalar_lea.vmem %s219, 8
        %v980 = vld [vmem:[%s979] sm:$0xf]
        %v982 = vsel %vm295, %v947, 0
        %v985 = vsel %vm295, %v948, 0
        %v988 = vsel %vm295, %v949, 0
        %v991 = vsel %vm295, %v950, 0
        %v994 = vsel %vm295, %v951, 0
        %v997 = vsel %vm295, %v952, 0
        %v1000 = vsel %vm295, %v953, 0
        %v1003 = vsel %vm295, %v954, 0
        %v1006 = vsel %vm295, %v955, 0
        %v1009 = vsel %vm295, %v956, 0
        %v1012 = vsel %vm295, %v957, 0
        %v1015 = vsel %vm295, %v958, 0
        %v1018 = vsel %vm295, %v959, 0
        %v1021 = vsel %vm295, %v960, 0
        %v1024 = vsel %vm295, %v961, 0
        %v1027 = vsel %vm295, %v962, 0
        %v1030 = vsel %vm295, %v963, 0
        %v1033 = vsel %vm295, %v964, 0
        %v1036 = vsel %vm295, %v965, 0
        %v1039 = vsel %vm295, %v966, 0
        %v1042 = vsel %vm295, %v967, 0
        %v1045 = vsel %vm295, %v968, 0
        %v1048 = vsel %vm295, %v969, 0
        %v1051 = vsel %vm295, %v970, 0
        %v1054 = vsel %vm295, %v971, 0
        %v1057 = vsel %vm295, %v972, 0
        %v1060 = vsel %vm295, %v973, 0
        %v1063 = vsel %vm295, %v974, 0
        %v1066 = vsel %vm295, %v975, 0
        %v1069 = vsel %vm295, %v976, 0
        %v1072 = vsel %vm295, %v977, 0
        %v1075 = vsel %vm295, %v978, 0
        %v1078 = vsel %vm392, %v980, 0
        %1080 = vmatprep.subr.mxu0 0.0
        %1081 = vmatpush1.msra.mxu0 %v1078
        %1082 = vmatprep.subr.mxu0 0.0
        %1083 = vmatpush1.msra.mxu0 0.0
        %1084 = vmatprep.subr.mxu0 0.0
        %1085 = vmatpush1.msra.mxu0 0.0
        %1086 = vmatprep.subr.mxu0 0.0
        %1087 = vmatpush1.msra.mxu0 0.0
        %1088 = vmatprep.subr.mxu0 0.0
        %1089 = vmatpush1.msra.mxu0 0.0
        %1090 = vmatprep.subr.mxu0 0.0
        %1091 = vmatpush1.msra.mxu0 0.0
        %1092 = vmatprep.subr.mxu0 0.0
        %1093 = vmatpush1.msra.mxu0 0.0
        %1094 = vmatprep.subr.mxu0 0.0
        %1095 = vmatpush1.msra.mxu0 0.0
        %1096 = vmatprep.subr.mxu0 0.0
        %1097 = vmatpush1.msra.mxu0 0.0
        %1098 = vmatprep.subr.mxu0 0.0
        %1099 = vmatpush1.msra.mxu0 0.0
        %1100 = vmatprep.subr.mxu0 0.0
        %1101 = vmatpush1.msra.mxu0 0.0
        %1102 = vmatprep.subr.mxu0 0.0
        %1103 = vmatpush1.msra.mxu0 0.0
        %1104 = vmatprep.subr.mxu0 0.0
        %1105 = vmatpush1.msra.mxu0 0.0
        %1106 = vmatprep.subr.mxu0 0.0
        %1107 = vmatpush1.msra.mxu0 0.0
        %1108 = vmatprep.subr.mxu0 0.0
        %1109 = vmatpush1.msra.mxu0 0.0
        %1110 = vmatprep.subr.mxu0 0.0
        %1111 = vmatpush1.msra.mxu0 0.0
        %1112 = vmatprep.subr.mxu0 0.0
        %1113 = vmatpush1.msra.mxu0 0.0
        %1114 = vmatprep.subr.mxu0 0.0
        %1115 = vmatpush1.msra.mxu0 0.0
        %1116 = vmatprep.subr.mxu0 0.0
        %1117 = vmatpush1.msra.mxu0 0.0
        %1118 = vmatprep.subr.mxu0 0.0
        %1119 = vmatpush1.msra.mxu0 0.0
        %1120 = vmatprep.subr.mxu0 0.0
        %1121 = vmatpush1.msra.mxu0 0.0
        %1122 = vmatprep.subr.mxu0 0.0
        %1123 = vmatpush1.msra.mxu0 0.0
        %1124 = vmatprep.subr.mxu0 0.0
        %1125 = vmatpush1.msra.mxu0 0.0
        %1126 = vmatprep.subr.mxu0 0.0
        %1127 = vmatpush1.msra.mxu0 0.0
        %1128 = vmatprep.subr.mxu0 0.0
        %1129 = vmatpush1.msra.mxu0 0.0
        %1130 = vmatprep.subr.mxu0 0.0
        %1131 = vmatpush1.msra.mxu0 0.0
        %1132 = vmatprep.subr.mxu0 0.0
        %1133 = vmatpush1.msra.mxu0 0.0
        %1134 = vmatprep.subr.mxu0 0.0
        %1135 = vmatpush1.msra.mxu0 0.0
        %1136 = vmatprep.subr.mxu0 0.0
        %1137 = vmatpush1.msra.mxu0 0.0
        %1138 = vmatprep.subr.mxu0 0.0
        %1139 = vmatpush1.msra.mxu0 0.0
        %1140 = vmatprep.subr.mxu0 0.0
        %1141 = vmatpush1.msra.mxu0 0.0
        %1142 = vmatprep.subr.mxu0 0.0
        %1143 = vmatpush1.msra.mxu0 0.0
        %1144 = vmatprep.mubr.f32.mxu0 0.0
        %1145 = vmatmul.mubr.f32.gmra.mrb[0].mxu0 %v982
        %v1146 = vpop.f32.mrb[0].mxu0
        %v1147 = vadd.f32 0.0, %v1146
        %v1148 = vpop.f32.mrb[0].mxu0
        %1149 = vmatprep.mubr.f32.mxu0 0.0
        %1150 = vmatmul.mubr.f32.gmra.mrb[0].mxu0 %v985
        %v1151 = vpop.f32.mrb[0].mxu0
        %v1152 = vadd.f32 0.0, %v1151
        %v1153 = vpop.f32.mrb[0].mxu0
        %1154 = vmatprep.mubr.f32.mxu0 0.0
        %1155 = vmatmul.mubr.f32.gmra.mrb[0].mxu0 %v988
        %v1156 = vpop.f32.mrb[0].mxu0
        %v1157 = vadd.f32 0.0, %v1156
        %v1158 = vpop.f32.mrb[0].mxu0
        %1159 = vmatprep.mubr.f32.mxu0 0.0
        %1160 = vmatmul.mubr.f32.gmra.mrb[0].mxu0 %v991
        %v1161 = vpop.f32.mrb[0].mxu0
        %v1162 = vadd.f32 0.0, %v1161
        %v1163 = vpop.f32.mrb[0].mxu0
        %1164 = vmatprep.mubr.f32.mxu0 0.0
        %1165 = vmatmul.mubr.f32.gmra.mrb[0].mxu0 %v994
        %v1166 = vpop.f32.mrb[0].mxu0
        %v1167 = vadd.f32 0.0, %v1166
        %v1168 = vpop.f32.mrb[0].mxu0
        %1169 = vmatprep.mubr.f32.mxu0 0.0
        %1170 = vmatmul.mubr.f32.gmra.mrb[0].mxu0 %v997
        %v1171 = vpop.f32.mrb[0].mxu0
        %v1172 = vadd.f32 0.0, %v1171
        %v1173 = vpop.f32.mrb[0].mxu0
        %1174 = vmatprep.mubr.f32.mxu0 0.0
        %1175 = vmatmul.mubr.f32.gmra.mrb[0].mxu0 %v1000
        %v1176 = vpop.f32.mrb[0].mxu0
        %v1177 = vadd.f32 0.0, %v1176
        %v1178 = vpop.f32.mrb[0].mxu0
        %1179 = vmatprep.mubr.f32.mxu0 0.0
        %1180 = vmatmul.mubr.f32.gmra.mrb[0].mxu0 %v1003
        %v1181 = vpop.f32.mrb[0].mxu0
        %v1182 = vadd.f32 0.0, %v1181
        %v1183 = vpop.f32.mrb[0].mxu0
        %1184 = vmatprep.mubr.f32.mxu0 0.0
        %1185 = vmatmul.mubr.f32.gmra.mrb[0].mxu0 %v1006
        %v1186 = vpop.f32.mrb[0].mxu0
        %v1187 = vadd.f32 0.0, %v1186
        %v1188 = vpop.f32.mrb[0].mxu0
        %1189 = vmatprep.mubr.f32.mxu0 0.0
        %1190 = vmatmul.mubr.f32.gmra.mrb[0].mxu0 %v1009
        %v1191 = vpop.f32.mrb[0].mxu0
        %v1192 = vadd.f32 0.0, %v1191
        %v1193 = vpop.f32.mrb[0].mxu0
        %1194 = vmatprep.mubr.f32.mxu0 0.0
        %1195 = vmatmul.mubr.f32.gmra.mrb[0].mxu0 %v1012
        %v1196 = vpop.f32.mrb[0].mxu0
        %v1197 = vadd.f32 0.0, %v1196
        %v1198 = vpop.f32.mrb[0].mxu0
        %1199 = vmatprep.mubr.f32.mxu0 0.0
        %1200 = vmatmul.mubr.f32.gmra.mrb[0].mxu0 %v1015
        %v1201 = vpop.f32.mrb[0].mxu0
        %v1202 = vadd.f32 0.0, %v1201
        %v1203 = vpop.f32.mrb[0].mxu0
        %1204 = vmatprep.mubr.f32.mxu0 0.0
        %1205 = vmatmul.mubr.f32.gmra.mrb[0].mxu0 %v1018
        %v1206 = vpop.f32.mrb[0].mxu0
        %v1207 = vadd.f32 0.0, %v1206
        %v1208 = vpop.f32.mrb[0].mxu0
        %1209 = vmatprep.mubr.f32.mxu0 0.0
        %1210 = vmatmul.mubr.f32.gmra.mrb[0].mxu0 %v1021
        %v1211 = vpop.f32.mrb[0].mxu0
        %v1212 = vadd.f32 0.0, %v1211
        %v1213 = vpop.f32.mrb[0].mxu0
        %1214 = vmatprep.mubr.f32.mxu0 0.0
        %1215 = vmatmul.mubr.f32.gmra.mrb[0].mxu0 %v1024
        %v1216 = vpop.f32.mrb[0].mxu0
        %v1217 = vadd.f32 0.0, %v1216
        %v1218 = vpop.f32.mrb[0].mxu0
        %1219 = vmatprep.mubr.f32.mxu0 0.0
        %1220 = vmatmul.mubr.f32.gmra.mrb[0].mxu0 %v1027
        %v1221 = vpop.f32.mrb[0].mxu0
        %v1222 = vadd.f32 0.0, %v1221
        %v1223 = vpop.f32.mrb[0].mxu0
        %1224 = vmatprep.mubr.f32.mxu0 0.0
        %1225 = vmatmul.mubr.f32.gmra.mrb[0].mxu0 %v1030
        %v1226 = vpop.f32.mrb[0].mxu0
        %v1227 = vadd.f32 0.0, %v1226
        %v1228 = vpop.f32.mrb[0].mxu0
        %1229 = vmatprep.mubr.f32.mxu0 0.0
        %1230 = vmatmul.mubr.f32.gmra.mrb[0].mxu0 %v1033
        %v1231 = vpop.f32.mrb[0].mxu0
        %v1232 = vadd.f32 0.0, %v1231
        %v1233 = vpop.f32.mrb[0].mxu0
        %1234 = vmatprep.mubr.f32.mxu0 0.0
        %1235 = vmatmul.mubr.f32.gmra.mrb[0].mxu0 %v1036
        %v1236 = vpop.f32.mrb[0].mxu0
        %v1237 = vadd.f32 0.0, %v1236
        %v1238 = vpop.f32.mrb[0].mxu0
        %1239 = vmatprep.mubr.f32.mxu0 0.0
        %1240 = vmatmul.mubr.f32.gmra.mrb[0].mxu0 %v1039
        %v1241 = vpop.f32.mrb[0].mxu0
        %v1242 = vadd.f32 0.0, %v1241
        %v1243 = vpop.f32.mrb[0].mxu0
        %1244 = vmatprep.mubr.f32.mxu0 0.0
        %1245 = vmatmul.mubr.f32.gmra.mrb[0].mxu0 %v1042
        %v1246 = vpop.f32.mrb[0].mxu0
        %v1247 = vadd.f32 0.0, %v1246
        %v1248 = vpop.f32.mrb[0].mxu0
        %1249 = vmatprep.mubr.f32.mxu0 0.0
        %1250 = vmatmul.mubr.f32.gmra.mrb[0].mxu0 %v1045
        %v1251 = vpop.f32.mrb[0].mxu0
        %v1252 = vadd.f32 0.0, %v1251
        %v1253 = vpop.f32.mrb[0].mxu0
        %1254 = vmatprep.mubr.f32.mxu0 0.0
        %1255 = vmatmul.mubr.f32.gmra.mrb[0].mxu0 %v1048
        %v1256 = vpop.f32.mrb[0].mxu0
        %v1257 = vadd.f32 0.0, %v1256
        %v1258 = vpop.f32.mrb[0].mxu0
        %1259 = vmatprep.mubr.f32.mxu0 0.0
        %1260 = vmatmul.mubr.f32.gmra.mrb[0].mxu0 %v1051
        %v1261 = vpop.f32.mrb[0].mxu0
        %v1262 = vadd.f32 0.0, %v1261
        %v1263 = vpop.f32.mrb[0].mxu0
        %1264 = vmatprep.mubr.f32.mxu0 0.0
        %1265 = vmatmul.mubr.f32.gmra.mrb[0].mxu0 %v1054
        %v1266 = vpop.f32.mrb[0].mxu0
        %v1267 = vadd.f32 0.0, %v1266
        %v1268 = vpop.f32.mrb[0].mxu0
        %1269 = vmatprep.mubr.f32.mxu0 0.0
        %1270 = vmatmul.mubr.f32.gmra.mrb[0].mxu0 %v1057
        %v1271 = vpop.f32.mrb[0].mxu0
        %v1272 = vadd.f32 0.0, %v1271
        %v1273 = vpop.f32.mrb[0].mxu0
        %1274 = vmatprep.mubr.f32.mxu0 0.0
        %1275 = vmatmul.mubr.f32.gmra.mrb[0].mxu0 %v1060
        %v1276 = vpop.f32.mrb[0].mxu0
        %v1277 = vadd.f32 0.0, %v1276
        %v1278 = vpop.f32.mrb[0].mxu0
        %1279 = vmatprep.mubr.f32.mxu0 0.0
        %1280 = vmatmul.mubr.f32.gmra.mrb[0].mxu0 %v1063
        %v1281 = vpop.f32.mrb[0].mxu0
        %v1282 = vadd.f32 0.0, %v1281
        %v1283 = vpop.f32.mrb[0].mxu0
        %1284 = vmatprep.mubr.f32.mxu0 0.0
        %1285 = vmatmul.mubr.f32.gmra.mrb[0].mxu0 %v1066
        %v1286 = vpop.f32.mrb[0].mxu0
        %v1287 = vadd.f32 0.0, %v1286
        %v1288 = vpop.f32.mrb[0].mxu0
        %1289 = vmatprep.mubr.f32.mxu0 0.0
        %1290 = vmatmul.mubr.f32.gmra.mrb[0].mxu0 %v1069
        %v1291 = vpop.f32.mrb[0].mxu0
        %v1292 = vadd.f32 0.0, %v1291
        %v1293 = vpop.f32.mrb[0].mxu0
        %1294 = vmatprep.mubr.f32.mxu0 0.0
        %1295 = vmatmul.mubr.f32.gmra.mrb[0].mxu0 %v1072
        %v1296 = vpop.f32.mrb[0].mxu0
        %v1297 = vadd.f32 0.0, %v1296
        %v1298 = vpop.f32.mrb[0].mxu0
        %1299 = vmatprep.mubr.f32.mxu0 0.0
        %1300 = vmatmul.mubr.f32.gmra.mrb[0].mxu0 %v1075
        %v1301 = vpop.f32.mrb[0].mxu0
        %v1302 = vadd.f32 0.0, %v1301
        %v1303 = vpop.f32.mrb[0].mxu0
        %1304 = vdwg.mxu0
        %v1305 = vadd.f32 %v787, %v1147
        %v1306 = vadd.f32 %v792, %v1152
        %v1307 = vadd.f32 %v797, %v1157
        %v1308 = vadd.f32 %v802, %v1162
        %v1309 = vadd.f32 %v807, %v1167
        %v1310 = vadd.f32 %v812, %v1172
        %v1311 = vadd.f32 %v817, %v1177
        %v1312 = vadd.f32 %v822, %v1182
        %v1313 = vadd.f32 %v827, %v1187
        %v1314 = vadd.f32 %v832, %v1192
        %v1315 = vadd.f32 %v837, %v1197
        %v1316 = vadd.f32 %v842, %v1202
        %v1317 = vadd.f32 %v847, %v1207
        %v1318 = vadd.f32 %v852, %v1212
        %v1319 = vadd.f32 %v857, %v1217
        %v1320 = vadd.f32 %v862, %v1222
        %v1321 = vadd.f32 %v867, %v1227
        %v1322 = vadd.f32 %v872, %v1232
        %v1323 = vadd.f32 %v877, %v1237
        %v1324 = vadd.f32 %v882, %v1242
        %v1325 = vadd.f32 %v887, %v1247
        %v1326 = vadd.f32 %v892, %v1252
        %v1327 = vadd.f32 %v897, %v1257
        %v1328 = vadd.f32 %v902, %v1262
        %v1329 = vadd.f32 %v907, %v1267
        %v1330 = vadd.f32 %v912, %v1272
        %v1331 = vadd.f32 %v917, %v1277
        %v1332 = vadd.f32 %v922, %v1282
        %v1333 = vadd.f32 %v927, %v1287
        %v1334 = vadd.f32 %v932, %v1292
        %v1335 = vadd.f32 %v937, %v1297
        %v1336 = vadd.f32 %v942, %v1302
        %s1337 = sadd.s32 %s224, 96
        %s1338 = scalar_lea.vmem %s215, %s1337
        %v1339 = vld [vmem:[%s1338] sm:$0xff]
        %v1340 = vld [vmem:[%s1338 + $0x8] sm:$0xff]
        %v1341 = vld [vmem:[%s1338 + $0x10] sm:$0xff]
        %v1342 = vld [vmem:[%s1338 + $0x18] sm:$0xff]
        %v1343 = vld [vmem:[%s1338 + $0x20] sm:$0xff]
        %v1344 = vld [vmem:[%s1338 + $0x28] sm:$0xff]
        %v1345 = vld [vmem:[%s1338 + $0x30] sm:$0xff]
        %v1346 = vld [vmem:[%s1338 + $0x38] sm:$0xff]
        %v1347 = vld [vmem:[%s1338 + $0x40] sm:$0xff]
        %v1348 = vld [vmem:[%s1338 + $0x48] sm:$0xff]
        %v1349 = vld [vmem:[%s1338 + $0x50] sm:$0xff]
        %v1350 = vld [vmem:[%s1338 + $0x58] sm:$0xff]
        %v1351 = vld [vmem:[%s1338 + $0x60] sm:$0xff]
        %v1352 = vld [vmem:[%s1338 + $0x68] sm:$0xff]
        %v1353 = vld [vmem:[%s1338 + $0x70] sm:$0xff]
        %v1354 = vld [vmem:[%s1338 + $0x78] sm:$0xff]
        %v1355 = vld [vmem:[%s1338 + $0x80] sm:$0xff]
        %v1356 = vld [vmem:[%s1338 + $0x88] sm:$0xff]
        %v1357 = vld [vmem:[%s1338 + $0x90] sm:$0xff]
        %v1358 = vld [vmem:[%s1338 + $0x98] sm:$0xff]
        %v1359 = vld [vmem:[%s1338 + $0xa0] sm:$0xff]
        %v1360 = vld [vmem:[%s1338 + $0xa8] sm:$0xff]
        %v1361 = vld [vmem:[%s1338 + $0xb0] sm:$0xff]
        %v1362 = vld [vmem:[%s1338 + $0xb8] sm:$0xff]
        %v1363 = vld [vmem:[%s1338 + $0xc0] sm:$0xff]
        %v1364 = vld [vmem:[%s1338 + $0xc8] sm:$0xff]
        %v1365 = vld [vmem:[%s1338 + $0xd0] sm:$0xff]
        %v1366 = vld [vmem:[%s1338 + $0xd8] sm:$0xff]
        %v1367 = vld [vmem:[%s1338 + $0xe0] sm:$0xff]
        %v1368 = vld [vmem:[%s1338 + $0xe8] sm:$0xff]
        %v1369 = vld [vmem:[%s1338 + $0xf0] sm:$0xff]
        %v1370 = vld [vmem:[%s1338 + $0xf8] sm:$0xff]
        %s1371 = scalar_lea.vmem %s219, 12
        %v1372 = vld [vmem:[%s1371] sm:$0xf]
        %v1374 = vsel %vm295, %v1339, 0
        %v1377 = vsel %vm295, %v1340, 0
        %v1380 = vsel %vm295, %v1341, 0
        %v1383 = vsel %vm295, %v1342, 0
        %v1386 = vsel %vm295, %v1343, 0
        %v1389 = vsel %vm295, %v1344, 0
        %v1392 = vsel %vm295, %v1345, 0
        %v1395 = vsel %vm295, %v1346, 0
        %v1398 = vsel %vm295, %v1347, 0
        %v1401 = vsel %vm295, %v1348, 0
        %v1404 = vsel %vm295, %v1349, 0
        %v1407 = vsel %vm295, %v1350, 0
        %v1410 = vsel %vm295, %v1351, 0
        %v1413 = vsel %vm295, %v1352, 0
        %v1416 = vsel %vm295, %v1353, 0
        %v1419 = vsel %vm295, %v1354, 0
        %v1422 = vsel %vm295, %v1355, 0
        %v1425 = vsel %vm295, %v1356, 0
        %v1428 = vsel %vm295, %v1357, 0
        %v1431 = vsel %vm295, %v1358, 0
        %v1434 = vsel %vm295, %v1359, 0
        %v1437 = vsel %vm295, %v1360, 0
        %v1440 = vsel %vm295, %v1361, 0
        %v1443 = vsel %vm295, %v1362, 0
        %v1446 = vsel %vm295, %v1363, 0
        %v1449 = vsel %vm295, %v1364, 0
        %v1452 = vsel %vm295, %v1365, 0
        %v1455 = vsel %vm295, %v1366, 0
        %v1458 = vsel %vm295, %v1367, 0
        %v1461 = vsel %vm295, %v1368, 0
        %v1464 = vsel %vm295, %v1369, 0
        %v1467 = vsel %vm295, %v1370, 0
        %v1470 = vsel %vm392, %v1372, 0
        %1472 = vmatprep.subr.mxu0 0.0
        %1473 = vmatpush1.msra.mxu0 %v1470
        %1474 = vmatprep.subr.mxu0 0.0
        %1475 = vmatpush1.msra.mxu0 0.0
        %1476 = vmatprep.subr.mxu0 0.0
        %1477 = vmatpush1.msra.mxu0 0.0
        %1478 = vmatprep.subr.mxu0 0.0
        %1479 = vmatpush1.msra.mxu0 0.0
        %1480 = vmatprep.subr.mxu0 0.0
        %1481 = vmatpush1.msra.mxu0 0.0
        %1482 = vmatprep.subr.mxu0 0.0
        %1483 = vmatpush1.msra.mxu0 0.0
        %1484 = vmatprep.subr.mxu0 0.0
        %1485 = vmatpush1.msra.mxu0 0.0
        %1486 = vmatprep.subr.mxu0 0.0
        %1487 = vmatpush1.msra.mxu0 0.0
        %1488 = vmatprep.subr.mxu0 0.0
        %1489 = vmatpush1.msra.mxu0 0.0
        %1490 = vmatprep.subr.mxu0 0.0
        %1491 = vmatpush1.msra.mxu0 0.0
        %1492 = vmatprep.subr.mxu0 0.0
        %1493 = vmatpush1.msra.mxu0 0.0
        %1494 = vmatprep.subr.mxu0 0.0
        %1495 = vmatpush1.msra.mxu0 0.0
        %1496 = vmatprep.subr.mxu0 0.0
        %1497 = vmatpush1.msra.mxu0 0.0
        %1498 = vmatprep.subr.mxu0 0.0
        %1499 = vmatpush1.msra.mxu0 0.0
        %1500 = vmatprep.subr.mxu0 0.0
        %1501 = vmatpush1.msra.mxu0 0.0
        %1502 = vmatprep.subr.mxu0 0.0
        %1503 = vmatpush1.msra.mxu0 0.0
        %1504 = vmatprep.subr.mxu0 0.0
        %1505 = vmatpush1.msra.mxu0 0.0
        %1506 = vmatprep.subr.mxu0 0.0
        %1507 = vmatpush1.msra.mxu0 0.0
        %1508 = vmatprep.subr.mxu0 0.0
        %1509 = vmatpush1.msra.mxu0 0.0
        %1510 = vmatprep.subr.mxu0 0.0
        %1511 = vmatpush1.msra.mxu0 0.0
        %1512 = vmatprep.subr.mxu0 0.0
        %1513 = vmatpush1.msra.mxu0 0.0
        %1514 = vmatprep.subr.mxu0 0.0
        %1515 = vmatpush1.msra.mxu0 0.0
        %1516 = vmatprep.subr.mxu0 0.0
        %1517 = vmatpush1.msra.mxu0 0.0
        %1518 = vmatprep.subr.mxu0 0.0
        %1519 = vmatpush1.msra.mxu0 0.0
        %1520 = vmatprep.subr.mxu0 0.0
        %1521 = vmatpush1.msra.mxu0 0.0
        %1522 = vmatprep.subr.mxu0 0.0
        %1523 = vmatpush1.msra.mxu0 0.0
        %1524 = vmatprep.subr.mxu0 0.0
        %1525 = vmatpush1.msra.mxu0 0.0
        %1526 = vmatprep.subr.mxu0 0.0
        %1527 = vmatpush1.msra.mxu0 0.0
        %1528 = vmatprep.subr.mxu0 0.0
        %1529 = vmatpush1.msra.mxu0 0.0
        %1530 = vmatprep.subr.mxu0 0.0
        %1531 = vmatpush1.msra.mxu0 0.0
        %1532 = vmatprep.subr.mxu0 0.0
        %1533 = vmatpush1.msra.mxu0 0.0
        %1534 = vmatprep.subr.mxu0 0.0
        %1535 = vmatpush1.msra.mxu0 0.0
        %1536 = vmatprep.mubr.f32.mxu0 0.0
        %1537 = vmatmul.mubr.f32.gmra.mrb[0].mxu0 %v1374
        %v1538 = vpop.f32.mrb[0].mxu0
        %v1539 = vadd.f32 0.0, %v1538
        %v1540 = vpop.f32.mrb[0].mxu0
        %1541 = vmatprep.mubr.f32.mxu0 0.0
        %1542 = vmatmul.mubr.f32.gmra.mrb[0].mxu0 %v1377
        %v1543 = vpop.f32.mrb[0].mxu0
        %v1544 = vadd.f32 0.0, %v1543
        %v1545 = vpop.f32.mrb[0].mxu0
        %1546 = vmatprep.mubr.f32.mxu0 0.0
        %1547 = vmatmul.mubr.f32.gmra.mrb[0].mxu0 %v1380
        %v1548 = vpop.f32.mrb[0].mxu0
        %v1549 = vadd.f32 0.0, %v1548
        %v1550 = vpop.f32.mrb[0].mxu0
        %1551 = vmatprep.mubr.f32.mxu0 0.0
        %1552 = vmatmul.mubr.f32.gmra.mrb[0].mxu0 %v1383
        %v1553 = vpop.f32.mrb[0].mxu0
        %v1554 = vadd.f32 0.0, %v1553
        %v1555 = vpop.f32.mrb[0].mxu0
        %1556 = vmatprep.mubr.f32.mxu0 0.0
        %1557 = vmatmul.mubr.f32.gmra.mrb[0].mxu0 %v1386
        %v1558 = vpop.f32.mrb[0].mxu0
        %v1559 = vadd.f32 0.0, %v1558
        %v1560 = vpop.f32.mrb[0].mxu0
        %1561 = vmatprep.mubr.f32.mxu0 0.0
        %1562 = vmatmul.mubr.f32.gmra.mrb[0].mxu0 %v1389
        %v1563 = vpop.f32.mrb[0].mxu0
        %v1564 = vadd.f32 0.0, %v1563
        %v1565 = vpop.f32.mrb[0].mxu0
        %1566 = vmatprep.mubr.f32.mxu0 0.0
        %1567 = vmatmul.mubr.f32.gmra.mrb[0].mxu0 %v1392
        %v1568 = vpop.f32.mrb[0].mxu0
        %v1569 = vadd.f32 0.0, %v1568
        %v1570 = vpop.f32.mrb[0].mxu0
        %1571 = vmatprep.mubr.f32.mxu0 0.0
        %1572 = vmatmul.mubr.f32.gmra.mrb[0].mxu0 %v1395
        %v1573 = vpop.f32.mrb[0].mxu0
        %v1574 = vadd.f32 0.0, %v1573
        %v1575 = vpop.f32.mrb[0].mxu0
        %1576 = vmatprep.mubr.f32.mxu0 0.0
        %1577 = vmatmul.mubr.f32.gmra.mrb[0].mxu0 %v1398
        %v1578 = vpop.f32.mrb[0].mxu0
        %v1579 = vadd.f32 0.0, %v1578
        %v1580 = vpop.f32.mrb[0].mxu0
        %1581 = vmatprep.mubr.f32.mxu0 0.0
        %1582 = vmatmul.mubr.f32.gmra.mrb[0].mxu0 %v1401
        %v1583 = vpop.f32.mrb[0].mxu0
        %v1584 = vadd.f32 0.0, %v1583
        %v1585 = vpop.f32.mrb[0].mxu0
        %1586 = vmatprep.mubr.f32.mxu0 0.0
        %1587 = vmatmul.mubr.f32.gmra.mrb[0].mxu0 %v1404
        %v1588 = vpop.f32.mrb[0].mxu0
        %v1589 = vadd.f32 0.0, %v1588
        %v1590 = vpop.f32.mrb[0].mxu0
        %1591 = vmatprep.mubr.f32.mxu0 0.0
        %1592 = vmatmul.mubr.f32.gmra.mrb[0].mxu0 %v1407
        %v1593 = vpop.f32.mrb[0].mxu0
        %v1594 = vadd.f32 0.0, %v1593
        %v1595 = vpop.f32.mrb[0].mxu0
        %1596 = vmatprep.mubr.f32.mxu0 0.0
        %1597 = vmatmul.mubr.f32.gmra.mrb[0].mxu0 %v1410
        %v1598 = vpop.f32.mrb[0].mxu0
        %v1599 = vadd.f32 0.0, %v1598
        %v1600 = vpop.f32.mrb[0].mxu0
        %1601 = vmatprep.mubr.f32.mxu0 0.0
        %1602 = vmatmul.mubr.f32.gmra.mrb[0].mxu0 %v1413
        %v1603 = vpop.f32.mrb[0].mxu0
        %v1604 = vadd.f32 0.0, %v1603
        %v1605 = vpop.f32.mrb[0].mxu0
        %1606 = vmatprep.mubr.f32.mxu0 0.0
        %1607 = vmatmul.mubr.f32.gmra.mrb[0].mxu0 %v1416
        %v1608 = vpop.f32.mrb[0].mxu0
        %v1609 = vadd.f32 0.0, %v1608
        %v1610 = vpop.f32.mrb[0].mxu0
        %1611 = vmatprep.mubr.f32.mxu0 0.0
        %1612 = vmatmul.mubr.f32.gmra.mrb[0].mxu0 %v1419
        %v1613 = vpop.f32.mrb[0].mxu0
        %v1614 = vadd.f32 0.0, %v1613
        %v1615 = vpop.f32.mrb[0].mxu0
        %1616 = vmatprep.mubr.f32.mxu0 0.0
        %1617 = vmatmul.mubr.f32.gmra.mrb[0].mxu0 %v1422
        %v1618 = vpop.f32.mrb[0].mxu0
        %v1619 = vadd.f32 0.0, %v1618
        %v1620 = vpop.f32.mrb[0].mxu0
        %1621 = vmatprep.mubr.f32.mxu0 0.0
        %1622 = vmatmul.mubr.f32.gmra.mrb[0].mxu0 %v1425
        %v1623 = vpop.f32.mrb[0].mxu0
        %v1624 = vadd.f32 0.0, %v1623
        %v1625 = vpop.f32.mrb[0].mxu0
        %1626 = vmatprep.mubr.f32.mxu0 0.0
        %1627 = vmatmul.mubr.f32.gmra.mrb[0].mxu0 %v1428
        %v1628 = vpop.f32.mrb[0].mxu0
        %v1629 = vadd.f32 0.0, %v1628
        %v1630 = vpop.f32.mrb[0].mxu0
        %1631 = vmatprep.mubr.f32.mxu0 0.0
        %1632 = vmatmul.mubr.f32.gmra.mrb[0].mxu0 %v1431
        %v1633 = vpop.f32.mrb[0].mxu0
        %v1634 = vadd.f32 0.0, %v1633
        %v1635 = vpop.f32.mrb[0].mxu0
        %1636 = vmatprep.mubr.f32.mxu0 0.0
        %1637 = vmatmul.mubr.f32.gmra.mrb[0].mxu0 %v1434
        %v1638 = vpop.f32.mrb[0].mxu0
        %v1639 = vadd.f32 0.0, %v1638
        %v1640 = vpop.f32.mrb[0].mxu0
        %1641 = vmatprep.mubr.f32.mxu0 0.0
        %1642 = vmatmul.mubr.f32.gmra.mrb[0].mxu0 %v1437
        %v1643 = vpop.f32.mrb[0].mxu0
        %v1644 = vadd.f32 0.0, %v1643
        %v1645 = vpop.f32.mrb[0].mxu0
        %1646 = vmatprep.mubr.f32.mxu0 0.0
        %1647 = vmatmul.mubr.f32.gmra.mrb[0].mxu0 %v1440
        %v1648 = vpop.f32.mrb[0].mxu0
        %v1649 = vadd.f32 0.0, %v1648
        %v1650 = vpop.f32.mrb[0].mxu0
        %1651 = vmatprep.mubr.f32.mxu0 0.0
        %1652 = vmatmul.mubr.f32.gmra.mrb[0].mxu0 %v1443
        %v1653 = vpop.f32.mrb[0].mxu0
        %v1654 = vadd.f32 0.0, %v1653
        %v1655 = vpop.f32.mrb[0].mxu0
        %1656 = vmatprep.mubr.f32.mxu0 0.0
        %1657 = vmatmul.mubr.f32.gmra.mrb[0].mxu0 %v1446
        %v1658 = vpop.f32.mrb[0].mxu0
        %v1659 = vadd.f32 0.0, %v1658
        %v1660 = vpop.f32.mrb[0].mxu0
        %1661 = vmatprep.mubr.f32.mxu0 0.0
        %1662 = vmatmul.mubr.f32.gmra.mrb[0].mxu0 %v1449
        %v1663 = vpop.f32.mrb[0].mxu0
        %v1664 = vadd.f32 0.0, %v1663
        %v1665 = vpop.f32.mrb[0].mxu0
        %1666 = vmatprep.mubr.f32.mxu0 0.0
        %1667 = vmatmul.mubr.f32.gmra.mrb[0].mxu0 %v1452
        %v1668 = vpop.f32.mrb[0].mxu0
        %v1669 = vadd.f32 0.0, %v1668
        %v1670 = vpop.f32.mrb[0].mxu0
        %1671 = vmatprep.mubr.f32.mxu0 0.0
        %1672 = vmatmul.mubr.f32.gmra.mrb[0].mxu0 %v1455
        %v1673 = vpop.f32.mrb[0].mxu0
        %v1674 = vadd.f32 0.0, %v1673
        %v1675 = vpop.f32.mrb[0].mxu0
        %1676 = vmatprep.mubr.f32.mxu0 0.0
        %1677 = vmatmul.mubr.f32.gmra.mrb[0].mxu0 %v1458
        %v1678 = vpop.f32.mrb[0].mxu0
        %v1679 = vadd.f32 0.0, %v1678
        %v1680 = vpop.f32.mrb[0].mxu0
        %1681 = vmatprep.mubr.f32.mxu0 0.0
        %1682 = vmatmul.mubr.f32.gmra.mrb[0].mxu0 %v1461
        %v1683 = vpop.f32.mrb[0].mxu0
        %v1684 = vadd.f32 0.0, %v1683
        %v1685 = vpop.f32.mrb[0].mxu0
        %1686 = vmatprep.mubr.f32.mxu0 0.0
        %1687 = vmatmul.mubr.f32.gmra.mrb[0].mxu0 %v1464
        %v1688 = vpop.f32.mrb[0].mxu0
        %v1689 = vadd.f32 0.0, %v1688
        %v1690 = vpop.f32.mrb[0].mxu0
        %1691 = vmatprep.mubr.f32.mxu0 0.0
        %1692 = vmatmul.mubr.f32.gmra.mrb[0].mxu0 %v1467
        %v1693 = vpop.f32.mrb[0].mxu0
        %v1694 = vadd.f32 0.0, %v1693
        %v1695 = vpop.f32.mrb[0].mxu0
        %1696 = vdwg.mxu0
        %v1697 = vadd.f32 %v1305, %v1539
        %v1698 = vadd.f32 %v1306, %v1544
        %v1699 = vadd.f32 %v1307, %v1549
        %v1700 = vadd.f32 %v1308, %v1554
        %v1701 = vadd.f32 %v1309, %v1559
        %v1702 = vadd.f32 %v1310, %v1564
        %v1703 = vadd.f32 %v1311, %v1569
        %v1704 = vadd.f32 %v1312, %v1574
        %v1705 = vadd.f32 %v1313, %v1579
        %v1706 = vadd.f32 %v1314, %v1584
        %v1707 = vadd.f32 %v1315, %v1589
        %v1708 = vadd.f32 %v1316, %v1594
        %v1709 = vadd.f32 %v1317, %v1599
        %v1710 = vadd.f32 %v1318, %v1604
        %v1711 = vadd.f32 %v1319, %v1609
        %v1712 = vadd.f32 %v1320, %v1614
        %v1713 = vadd.f32 %v1321, %v1619
        %v1714 = vadd.f32 %v1322, %v1624
        %v1715 = vadd.f32 %v1323, %v1629
        %v1716 = vadd.f32 %v1324, %v1634
        %v1717 = vadd.f32 %v1325, %v1639
        %v1718 = vadd.f32 %v1326, %v1644
        %v1719 = vadd.f32 %v1327, %v1649
        %v1720 = vadd.f32 %v1328, %v1654
        %v1721 = vadd.f32 %v1329, %v1659
        %v1722 = vadd.f32 %v1330, %v1664
        %v1723 = vadd.f32 %v1331, %v1669
        %v1724 = vadd.f32 %v1332, %v1674
        %v1725 = vadd.f32 %v1333, %v1679
        %v1726 = vadd.f32 %v1334, %v1684
        %v1727 = vadd.f32 %v1335, %v1689
        %v1728 = vadd.f32 %v1336, %v1694
        %s1729 = sadd.s32 %s224, 128
        %s1730 = scalar_lea.vmem %s215, %s1729
        %v1731 = vld [vmem:[%s1730] sm:$0xff]
        %v1732 = vld [vmem:[%s1730 + $0x8] sm:$0xff]
        %v1733 = vld [vmem:[%s1730 + $0x10] sm:$0xff]
        %v1734 = vld [vmem:[%s1730 + $0x18] sm:$0xff]
        %v1735 = vld [vmem:[%s1730 + $0x20] sm:$0xff]
        %v1736 = vld [vmem:[%s1730 + $0x28] sm:$0xff]
        %v1737 = vld [vmem:[%s1730 + $0x30] sm:$0xff]
        %v1738 = vld [vmem:[%s1730 + $0x38] sm:$0xff]
        %v1739 = vld [vmem:[%s1730 + $0x40] sm:$0xff]
        %v1740 = vld [vmem:[%s1730 + $0x48] sm:$0xff]
        %v1741 = vld [vmem:[%s1730 + $0x50] sm:$0xff]
        %v1742 = vld [vmem:[%s1730 + $0x58] sm:$0xff]
        %v1743 = vld [vmem:[%s1730 + $0x60] sm:$0xff]
        %v1744 = vld [vmem:[%s1730 + $0x68] sm:$0xff]
        %v1745 = vld [vmem:[%s1730 + $0x70] sm:$0xff]
        %v1746 = vld [vmem:[%s1730 + $0x78] sm:$0xff]
        %v1747 = vld [vmem:[%s1730 + $0x80] sm:$0xff]
        %v1748 = vld [vmem:[%s1730 + $0x88] sm:$0xff]
        %v1749 = vld [vmem:[%s1730 + $0x90] sm:$0xff]
        %v1750 = vld [vmem:[%s1730 + $0x98] sm:$0xff]
        %v1751 = vld [vmem:[%s1730 + $0xa0] sm:$0xff]
        %v1752 = vld [vmem:[%s1730 + $0xa8] sm:$0xff]
        %v1753 = vld [vmem:[%s1730 + $0xb0] sm:$0xff]
        %v1754 = vld [vmem:[%s1730 + $0xb8] sm:$0xff]
        %v1755 = vld [vmem:[%s1730 + $0xc0] sm:$0xff]
        %v1756 = vld [vmem:[%s1730 + $0xc8] sm:$0xff]
        %v1757 = vld [vmem:[%s1730 + $0xd0] sm:$0xff]
        %v1758 = vld [vmem:[%s1730 + $0xd8] sm:$0xff]
        %v1759 = vld [vmem:[%s1730 + $0xe0] sm:$0xff]
        %v1760 = vld [vmem:[%s1730 + $0xe8] sm:$0xff]
        %v1761 = vld [vmem:[%s1730 + $0xf0] sm:$0xff]
        %v1762 = vld [vmem:[%s1730 + $0xf8] sm:$0xff]
        %s1763 = scalar_lea.vmem %s219, 16
        %v1764 = vld [vmem:[%s1763] sm:$0xf]
        %v1766 = vsel %vm295, %v1731, 0
        %v1769 = vsel %vm295, %v1732, 0
        %v1772 = vsel %vm295, %v1733, 0
        %v1775 = vsel %vm295, %v1734, 0
        %v1778 = vsel %vm295, %v1735, 0
        %v1781 = vsel %vm295, %v1736, 0
        %v1784 = vsel %vm295, %v1737, 0
        %v1787 = vsel %vm295, %v1738, 0
        %v1790 = vsel %vm295, %v1739, 0
        %v1793 = vsel %vm295, %v1740, 0
        %v1796 = vsel %vm295, %v1741, 0
        %v1799 = vsel %vm295, %v1742, 0
        %v1802 = vsel %vm295, %v1743, 0
        %v1805 = vsel %vm295, %v1744, 0
        %v1808 = vsel %vm295, %v1745, 0
        %v1811 = vsel %vm295, %v1746, 0
        %v1814 = vsel %vm295, %v1747, 0
        %v1817 = vsel %vm295, %v1748, 0
        %v1820 = vsel %vm295, %v1749, 0
        %v1823 = vsel %vm295, %v1750, 0
        %v1826 = vsel %vm295, %v1751, 0
        %v1829 = vsel %vm295, %v1752, 0
        %v1832 = vsel %vm295, %v1753, 0
        %v1835 = vsel %vm295, %v1754, 0
        %v1838 = vsel %vm295, %v1755, 0
        %v1841 = vsel %vm295, %v1756, 0
        %v1844 = vsel %vm295, %v1757, 0
        %v1847 = vsel %vm295, %v1758, 0
        %v1850 = vsel %vm295, %v1759, 0
        %v1853 = vsel %vm295, %v1760, 0
        %v1856 = vsel %vm295, %v1761, 0
        %v1859 = vsel %vm295, %v1762, 0
        %v1862 = vsel %vm392, %v1764, 0
        %1864 = vmatprep.subr.mxu0 0.0
        %1865 = vmatpush1.msra.mxu0 %v1862
        %1866 = vmatprep.subr.mxu0 0.0
        %1867 = vmatpush1.msra.mxu0 0.0
        %1868 = vmatprep.subr.mxu0 0.0
        %1869 = vmatpush1.msra.mxu0 0.0
        %1870 = vmatprep.subr.mxu0 0.0
        %1871 = vmatpush1.msra.mxu0 0.0
        %1872 = vmatprep.subr.mxu0 0.0
        %1873 = vmatpush1.msra.mxu0 0.0
        %1874 = vmatprep.subr.mxu0 0.0
        %1875 = vmatpush1.msra.mxu0 0.0
        %1876 = vmatprep.subr.mxu0 0.0
        %1877 = vmatpush1.msra.mxu0 0.0
        %1878 = vmatprep.subr.mxu0 0.0
        %1879 = vmatpush1.msra.mxu0 0.0
        %1880 = vmatprep.subr.mxu0 0.0
        %1881 = vmatpush1.msra.mxu0 0.0
        %1882 = vmatprep.subr.mxu0 0.0
        %1883 = vmatpush1.msra.mxu0 0.0
        %1884 = vmatprep.subr.mxu0 0.0
        %1885 = vmatpush1.msra.mxu0 0.0
        %1886 = vmatprep.subr.mxu0 0.0
        %1887 = vmatpush1.msra.mxu0 0.0
        %1888 = vmatprep.subr.mxu0 0.0
        %1889 = vmatpush1.msra.mxu0 0.0
        %1890 = vmatprep.subr.mxu0 0.0
        %1891 = vmatpush1.msra.mxu0 0.0
        %1892 = vmatprep.subr.mxu0 0.0
        %1893 = vmatpush1.msra.mxu0 0.0
        %1894 = vmatprep.subr.mxu0 0.0
        %1895 = vmatpush1.msra.mxu0 0.0
        %1896 = vmatprep.subr.mxu0 0.0
        %1897 = vmatpush1.msra.mxu0 0.0
        %1898 = vmatprep.subr.mxu0 0.0
        %1899 = vmatpush1.msra.mxu0 0.0
        %1900 = vmatprep.subr.mxu0 0.0
        %1901 = vmatpush1.msra.mxu0 0.0
        %1902 = vmatprep.subr.mxu0 0.0
        %1903 = vmatpush1.msra.mxu0 0.0
        %1904 = vmatprep.subr.mxu0 0.0
        %1905 = vmatpush1.msra.mxu0 0.0
        %1906 = vmatprep.subr.mxu0 0.0
        %1907 = vmatpush1.msra.mxu0 0.0
        %1908 = vmatprep.subr.mxu0 0.0
        %1909 = vmatpush1.msra.mxu0 0.0
        %1910 = vmatprep.subr.mxu0 0.0
        %1911 = vmatpush1.msra.mxu0 0.0
        %1912 = vmatprep.subr.mxu0 0.0
        %1913 = vmatpush1.msra.mxu0 0.0
        %1914 = vmatprep.subr.mxu0 0.0
        %1915 = vmatpush1.msra.mxu0 0.0
        %1916 = vmatprep.subr.mxu0 0.0
        %1917 = vmatpush1.msra.mxu0 0.0
        %1918 = vmatprep.subr.mxu0 0.0
        %1919 = vmatpush1.msra.mxu0 0.0
        %1920 = vmatprep.subr.mxu0 0.0
        %1921 = vmatpush1.msra.mxu0 0.0
        %1922 = vmatprep.subr.mxu0 0.0
        %1923 = vmatpush1.msra.mxu0 0.0
        %1924 = vmatprep.subr.mxu0 0.0
        %1925 = vmatpush1.msra.mxu0 0.0
        %1926 = vmatprep.subr.mxu0 0.0
        %1927 = vmatpush1.msra.mxu0 0.0
        %1928 = vmatprep.mubr.f32.mxu0 0.0
        %1929 = vmatmul.mubr.f32.gmra.mrb[0].mxu0 %v1766
        %v1930 = vpop.f32.mrb[0].mxu0
        %v1931 = vadd.f32 0.0, %v1930
        %v1932 = vpop.f32.mrb[0].mxu0
        %1933 = vmatprep.mubr.f32.mxu0 0.0
        %1934 = vmatmul.mubr.f32.gmra.mrb[0].mxu0 %v1769
        %v1935 = vpop.f32.mrb[0].mxu0
        %v1936 = vadd.f32 0.0, %v1935
        %v1937 = vpop.f32.mrb[0].mxu0
        %1938 = vmatprep.mubr.f32.mxu0 0.0
        %1939 = vmatmul.mubr.f32.gmra.mrb[0].mxu0 %v1772
        %v1940 = vpop.f32.mrb[0].mxu0
        %v1941 = vadd.f32 0.0, %v1940
        %v1942 = vpop.f32.mrb[0].mxu0
        %1943 = vmatprep.mubr.f32.mxu0 0.0
        %1944 = vmatmul.mubr.f32.gmra.mrb[0].mxu0 %v1775
        %v1945 = vpop.f32.mrb[0].mxu0
        %v1946 = vadd.f32 0.0, %v1945
        %v1947 = vpop.f32.mrb[0].mxu0
        %1948 = vmatprep.mubr.f32.mxu0 0.0
        %1949 = vmatmul.mubr.f32.gmra.mrb[0].mxu0 %v1778
        %v1950 = vpop.f32.mrb[0].mxu0
        %v1951 = vadd.f32 0.0, %v1950
        %v1952 = vpop.f32.mrb[0].mxu0
        %1953 = vmatprep.mubr.f32.mxu0 0.0
        %1954 = vmatmul.mubr.f32.gmra.mrb[0].mxu0 %v1781
        %v1955 = vpop.f32.mrb[0].mxu0
        %v1956 = vadd.f32 0.0, %v1955
        %v1957 = vpop.f32.mrb[0].mxu0
        %1958 = vmatprep.mubr.f32.mxu0 0.0
        %1959 = vmatmul.mubr.f32.gmra.mrb[0].mxu0 %v1784
        %v1960 = vpop.f32.mrb[0].mxu0
        %v1961 = vadd.f32 0.0, %v1960
        %v1962 = vpop.f32.mrb[0].mxu0
        %1963 = vmatprep.mubr.f32.mxu0 0.0
        %1964 = vmatmul.mubr.f32.gmra.mrb[0].mxu0 %v1787
        %v1965 = vpop.f32.mrb[0].mxu0
        %v1966 = vadd.f32 0.0, %v1965
        %v1967 = vpop.f32.mrb[0].mxu0
        %1968 = vmatprep.mubr.f32.mxu0 0.0
        %1969 = vmatmul.mubr.f32.gmra.mrb[0].mxu0 %v1790
        %v1970 = vpop.f32.mrb[0].mxu0
        %v1971 = vadd.f32 0.0, %v1970
        %v1972 = vpop.f32.mrb[0].mxu0
        %1973 = vmatprep.mubr.f32.mxu0 0.0
        %1974 = vmatmul.mubr.f32.gmra.mrb[0].mxu0 %v1793
        %v1975 = vpop.f32.mrb[0].mxu0
        %v1976 = vadd.f32 0.0, %v1975
        %v1977 = vpop.f32.mrb[0].mxu0
        %1978 = vmatprep.mubr.f32.mxu0 0.0
        %1979 = vmatmul.mubr.f32.gmra.mrb[0].mxu0 %v1796
        %v1980 = vpop.f32.mrb[0].mxu0
        %v1981 = vadd.f32 0.0, %v1980
        %v1982 = vpop.f32.mrb[0].mxu0
        %1983 = vmatprep.mubr.f32.mxu0 0.0
        %1984 = vmatmul.mubr.f32.gmra.mrb[0].mxu0 %v1799
        %v1985 = vpop.f32.mrb[0].mxu0
        %v1986 = vadd.f32 0.0, %v1985
        %v1987 = vpop.f32.mrb[0].mxu0
        %1988 = vmatprep.mubr.f32.mxu0 0.0
        %1989 = vmatmul.mubr.f32.gmra.mrb[0].mxu0 %v1802
        %v1990 = vpop.f32.mrb[0].mxu0
        %v1991 = vadd.f32 0.0, %v1990
        %v1992 = vpop.f32.mrb[0].mxu0
        %1993 = vmatprep.mubr.f32.mxu0 0.0
        %1994 = vmatmul.mubr.f32.gmra.mrb[0].mxu0 %v1805
        %v1995 = vpop.f32.mrb[0].mxu0
        %v1996 = vadd.f32 0.0, %v1995
        %v1997 = vpop.f32.mrb[0].mxu0
        %1998 = vmatprep.mubr.f32.mxu0 0.0
        %1999 = vmatmul.mubr.f32.gmra.mrb[0].mxu0 %v1808
        %v2000 = vpop.f32.mrb[0].mxu0
        %v2001 = vadd.f32 0.0, %v2000
        %v2002 = vpop.f32.mrb[0].mxu0
        %2003 = vmatprep.mubr.f32.mxu0 0.0
        %2004 = vmatmul.mubr.f32.gmra.mrb[0].mxu0 %v1811
        %v2005 = vpop.f32.mrb[0].mxu0
        %v2006 = vadd.f32 0.0, %v2005
        %v2007 = vpop.f32.mrb[0].mxu0
        %2008 = vmatprep.mubr.f32.mxu0 0.0
        %2009 = vmatmul.mubr.f32.gmra.mrb[0].mxu0 %v1814
        %v2010 = vpop.f32.mrb[0].mxu0
        %v2011 = vadd.f32 0.0, %v2010
        %v2012 = vpop.f32.mrb[0].mxu0
        %2013 = vmatprep.mubr.f32.mxu0 0.0
        %2014 = vmatmul.mubr.f32.gmra.mrb[0].mxu0 %v1817
        %v2015 = vpop.f32.mrb[0].mxu0
        %v2016 = vadd.f32 0.0, %v2015
        %v2017 = vpop.f32.mrb[0].mxu0
        %2018 = vmatprep.mubr.f32.mxu0 0.0
        %2019 = vmatmul.mubr.f32.gmra.mrb[0].mxu0 %v1820
        %v2020 = vpop.f32.mrb[0].mxu0
        %v2021 = vadd.f32 0.0, %v2020
        %v2022 = vpop.f32.mrb[0].mxu0
        %2023 = vmatprep.mubr.f32.mxu0 0.0
        %2024 = vmatmul.mubr.f32.gmra.mrb[0].mxu0 %v1823
        %v2025 = vpop.f32.mrb[0].mxu0
        %v2026 = vadd.f32 0.0, %v2025
        %v2027 = vpop.f32.mrb[0].mxu0
        %2028 = vmatprep.mubr.f32.mxu0 0.0
        %2029 = vmatmul.mubr.f32.gmra.mrb[0].mxu0 %v1826
        %v2030 = vpop.f32.mrb[0].mxu0
        %v2031 = vadd.f32 0.0, %v2030
        %v2032 = vpop.f32.mrb[0].mxu0
        %2033 = vmatprep.mubr.f32.mxu0 0.0
        %2034 = vmatmul.mubr.f32.gmra.mrb[0].mxu0 %v1829
        %v2035 = vpop.f32.mrb[0].mxu0
        %v2036 = vadd.f32 0.0, %v2035
        %v2037 = vpop.f32.mrb[0].mxu0
        %2038 = vmatprep.mubr.f32.mxu0 0.0
        %2039 = vmatmul.mubr.f32.gmra.mrb[0].mxu0 %v1832
        %v2040 = vpop.f32.mrb[0].mxu0
        %v2041 = vadd.f32 0.0, %v2040
        %v2042 = vpop.f32.mrb[0].mxu0
        %2043 = vmatprep.mubr.f32.mxu0 0.0
        %2044 = vmatmul.mubr.f32.gmra.mrb[0].mxu0 %v1835
        %v2045 = vpop.f32.mrb[0].mxu0
        %v2046 = vadd.f32 0.0, %v2045
        %v2047 = vpop.f32.mrb[0].mxu0
        %2048 = vmatprep.mubr.f32.mxu0 0.0
        %2049 = vmatmul.mubr.f32.gmra.mrb[0].mxu0 %v1838
        %v2050 = vpop.f32.mrb[0].mxu0
        %v2051 = vadd.f32 0.0, %v2050
        %v2052 = vpop.f32.mrb[0].mxu0
        %2053 = vmatprep.mubr.f32.mxu0 0.0
        %2054 = vmatmul.mubr.f32.gmra.mrb[0].mxu0 %v1841
        %v2055 = vpop.f32.mrb[0].mxu0
        %v2056 = vadd.f32 0.0, %v2055
        %v2057 = vpop.f32.mrb[0].mxu0
        %2058 = vmatprep.mubr.f32.mxu0 0.0
        %2059 = vmatmul.mubr.f32.gmra.mrb[0].mxu0 %v1844
        %v2060 = vpop.f32.mrb[0].mxu0
        %v2061 = vadd.f32 0.0, %v2060
        %v2062 = vpop.f32.mrb[0].mxu0
        %2063 = vmatprep.mubr.f32.mxu0 0.0
        %2064 = vmatmul.mubr.f32.gmra.mrb[0].mxu0 %v1847
        %v2065 = vpop.f32.mrb[0].mxu0
        %v2066 = vadd.f32 0.0, %v2065
        %v2067 = vpop.f32.mrb[0].mxu0
        %2068 = vmatprep.mubr.f32.mxu0 0.0
        %2069 = vmatmul.mubr.f32.gmra.mrb[0].mxu0 %v1850
        %v2070 = vpop.f32.mrb[0].mxu0
        %v2071 = vadd.f32 0.0, %v2070
        %v2072 = vpop.f32.mrb[0].mxu0
        %2073 = vmatprep.mubr.f32.mxu0 0.0
        %2074 = vmatmul.mubr.f32.gmra.mrb[0].mxu0 %v1853
        %v2075 = vpop.f32.mrb[0].mxu0
        %v2076 = vadd.f32 0.0, %v2075
        %v2077 = vpop.f32.mrb[0].mxu0
        %2078 = vmatprep.mubr.f32.mxu0 0.0
        %2079 = vmatmul.mubr.f32.gmra.mrb[0].mxu0 %v1856
        %v2080 = vpop.f32.mrb[0].mxu0
        %v2081 = vadd.f32 0.0, %v2080
        %v2082 = vpop.f32.mrb[0].mxu0
        %2083 = vmatprep.mubr.f32.mxu0 0.0
        %2084 = vmatmul.mubr.f32.gmra.mrb[0].mxu0 %v1859
        %v2085 = vpop.f32.mrb[0].mxu0
        %v2086 = vadd.f32 0.0, %v2085
        %v2087 = vpop.f32.mrb[0].mxu0
        %2088 = vdwg.mxu0
        %v2089 = vadd.f32 %v1697, %v1931
        %v2090 = vadd.f32 %v1698, %v1936
        %v2091 = vadd.f32 %v1699, %v1941
        %v2092 = vadd.f32 %v1700, %v1946
        %v2093 = vadd.f32 %v1701, %v1951
        %v2094 = vadd.f32 %v1702, %v1956
        %v2095 = vadd.f32 %v1703, %v1961
        %v2096 = vadd.f32 %v1704, %v1966
        %v2097 = vadd.f32 %v1705, %v1971
        %v2098 = vadd.f32 %v1706, %v1976
        %v2099 = vadd.f32 %v1707, %v1981
        %v2100 = vadd.f32 %v1708, %v1986
        %v2101 = vadd.f32 %v1709, %v1991
        %v2102 = vadd.f32 %v1710, %v1996
        %v2103 = vadd.f32 %v1711, %v2001
        %v2104 = vadd.f32 %v1712, %v2006
        %v2105 = vadd.f32 %v1713, %v2011
        %v2106 = vadd.f32 %v1714, %v2016
        %v2107 = vadd.f32 %v1715, %v2021
        %v2108 = vadd.f32 %v1716, %v2026
        %v2109 = vadd.f32 %v1717, %v2031
        %v2110 = vadd.f32 %v1718, %v2036
        %v2111 = vadd.f32 %v1719, %v2041
        %v2112 = vadd.f32 %v1720, %v2046
        %v2113 = vadd.f32 %v1721, %v2051
        %v2114 = vadd.f32 %v1722, %v2056
        %v2115 = vadd.f32 %v1723, %v2061
        %v2116 = vadd.f32 %v1724, %v2066
        %v2117 = vadd.f32 %v1725, %v2071
        %v2118 = vadd.f32 %v1726, %v2076
        %v2119 = vadd.f32 %v1727, %v2081
        %v2120 = vadd.f32 %v1728, %v2086
        %s2121 = sadd.s32 %s224, 160
        %s2122 = scalar_lea.vmem %s215, %s2121
        %v2123 = vld [vmem:[%s2122] sm:$0xff]
        %v2124 = vld [vmem:[%s2122 + $0x8] sm:$0xff]
        %v2125 = vld [vmem:[%s2122 + $0x10] sm:$0xff]
        %v2126 = vld [vmem:[%s2122 + $0x18] sm:$0xff]
        %v2127 = vld [vmem:[%s2122 + $0x20] sm:$0xff]
        %v2128 = vld [vmem:[%s2122 + $0x28] sm:$0xff]
        %v2129 = vld [vmem:[%s2122 + $0x30] sm:$0xff]
        %v2130 = vld [vmem:[%s2122 + $0x38] sm:$0xff]
        %v2131 = vld [vmem:[%s2122 + $0x40] sm:$0xff]
        %v2132 = vld [vmem:[%s2122 + $0x48] sm:$0xff]
        %v2133 = vld [vmem:[%s2122 + $0x50] sm:$0xff]
        %v2134 = vld [vmem:[%s2122 + $0x58] sm:$0xff]
        %v2135 = vld [vmem:[%s2122 + $0x60] sm:$0xff]
        %v2136 = vld [vmem:[%s2122 + $0x68] sm:$0xff]
        %v2137 = vld [vmem:[%s2122 + $0x70] sm:$0xff]
        %v2138 = vld [vmem:[%s2122 + $0x78] sm:$0xff]
        %v2139 = vld [vmem:[%s2122 + $0x80] sm:$0xff]
        %v2140 = vld [vmem:[%s2122 + $0x88] sm:$0xff]
        %v2141 = vld [vmem:[%s2122 + $0x90] sm:$0xff]
        %v2142 = vld [vmem:[%s2122 + $0x98] sm:$0xff]
        %v2143 = vld [vmem:[%s2122 + $0xa0] sm:$0xff]
        %v2144 = vld [vmem:[%s2122 + $0xa8] sm:$0xff]
        %v2145 = vld [vmem:[%s2122 + $0xb0] sm:$0xff]
        %v2146 = vld [vmem:[%s2122 + $0xb8] sm:$0xff]
        %v2147 = vld [vmem:[%s2122 + $0xc0] sm:$0xff]
        %v2148 = vld [vmem:[%s2122 + $0xc8] sm:$0xff]
        %v2149 = vld [vmem:[%s2122 + $0xd0] sm:$0xff]
        %v2150 = vld [vmem:[%s2122 + $0xd8] sm:$0xff]
        %v2151 = vld [vmem:[%s2122 + $0xe0] sm:$0xff]
        %v2152 = vld [vmem:[%s2122 + $0xe8] sm:$0xff]
        %v2153 = vld [vmem:[%s2122 + $0xf0] sm:$0xff]
        %v2154 = vld [vmem:[%s2122 + $0xf8] sm:$0xff]
        %s2155 = scalar_lea.vmem %s219, 20
        %v2156 = vld [vmem:[%s2155] sm:$0xf]
        %v2158 = vsel %vm295, %v2123, 0
        %v2161 = vsel %vm295, %v2124, 0
        %v2164 = vsel %vm295, %v2125, 0
        %v2167 = vsel %vm295, %v2126, 0
        %v2170 = vsel %vm295, %v2127, 0
        %v2173 = vsel %vm295, %v2128, 0
        %v2176 = vsel %vm295, %v2129, 0
        %v2179 = vsel %vm295, %v2130, 0
        %v2182 = vsel %vm295, %v2131, 0
        %v2185 = vsel %vm295, %v2132, 0
        %v2188 = vsel %vm295, %v2133, 0
        %v2191 = vsel %vm295, %v2134, 0
        %v2194 = vsel %vm295, %v2135, 0
        %v2197 = vsel %vm295, %v2136, 0
        %v2200 = vsel %vm295, %v2137, 0
        %v2203 = vsel %vm295, %v2138, 0
        %v2206 = vsel %vm295, %v2139, 0
        %v2209 = vsel %vm295, %v2140, 0
        %v2212 = vsel %vm295, %v2141, 0
        %v2215 = vsel %vm295, %v2142, 0
        %v2218 = vsel %vm295, %v2143, 0
        %v2221 = vsel %vm295, %v2144, 0
        %v2224 = vsel %vm295, %v2145, 0
        %v2227 = vsel %vm295, %v2146, 0
        %v2230 = vsel %vm295, %v2147, 0
        %v2233 = vsel %vm295, %v2148, 0
        %v2236 = vsel %vm295, %v2149, 0
        %v2239 = vsel %vm295, %v2150, 0
        %v2242 = vsel %vm295, %v2151, 0
        %v2245 = vsel %vm295, %v2152, 0
        %v2248 = vsel %vm295, %v2153, 0
        %v2251 = vsel %vm295, %v2154, 0
        %v2254 = vsel %vm392, %v2156, 0
        %2256 = vmatprep.subr.mxu0 0.0
        %2257 = vmatpush1.msra.mxu0 %v2254
        %2258 = vmatprep.subr.mxu0 0.0
        %2259 = vmatpush1.msra.mxu0 0.0
        %2260 = vmatprep.subr.mxu0 0.0
        %2261 = vmatpush1.msra.mxu0 0.0
        %2262 = vmatprep.subr.mxu0 0.0
        %2263 = vmatpush1.msra.mxu0 0.0
        %2264 = vmatprep.subr.mxu0 0.0
        %2265 = vmatpush1.msra.mxu0 0.0
        %2266 = vmatprep.subr.mxu0 0.0
        %2267 = vmatpush1.msra.mxu0 0.0
        %2268 = vmatprep.subr.mxu0 0.0
        %2269 = vmatpush1.msra.mxu0 0.0
        %2270 = vmatprep.subr.mxu0 0.0
        %2271 = vmatpush1.msra.mxu0 0.0
        %2272 = vmatprep.subr.mxu0 0.0
        %2273 = vmatpush1.msra.mxu0 0.0
        %2274 = vmatprep.subr.mxu0 0.0
        %2275 = vmatpush1.msra.mxu0 0.0
        %2276 = vmatprep.subr.mxu0 0.0
        %2277 = vmatpush1.msra.mxu0 0.0
        %2278 = vmatprep.subr.mxu0 0.0
        %2279 = vmatpush1.msra.mxu0 0.0
        %2280 = vmatprep.subr.mxu0 0.0
        %2281 = vmatpush1.msra.mxu0 0.0
        %2282 = vmatprep.subr.mxu0 0.0
        %2283 = vmatpush1.msra.mxu0 0.0
        %2284 = vmatprep.subr.mxu0 0.0
        %2285 = vmatpush1.msra.mxu0 0.0
        %2286 = vmatprep.subr.mxu0 0.0
        %2287 = vmatpush1.msra.mxu0 0.0
        %2288 = vmatprep.subr.mxu0 0.0
        %2289 = vmatpush1.msra.mxu0 0.0
        %2290 = vmatprep.subr.mxu0 0.0
        %2291 = vmatpush1.msra.mxu0 0.0
        %2292 = vmatprep.subr.mxu0 0.0
        %2293 = vmatpush1.msra.mxu0 0.0
        %2294 = vmatprep.subr.mxu0 0.0
        %2295 = vmatpush1.msra.mxu0 0.0
        %2296 = vmatprep.subr.mxu0 0.0
        %2297 = vmatpush1.msra.mxu0 0.0
        %2298 = vmatprep.subr.mxu0 0.0
        %2299 = vmatpush1.msra.mxu0 0.0
        %2300 = vmatprep.subr.mxu0 0.0
        %2301 = vmatpush1.msra.mxu0 0.0
        %2302 = vmatprep.subr.mxu0 0.0
        %2303 = vmatpush1.msra.mxu0 0.0
        %2304 = vmatprep.subr.mxu0 0.0
        %2305 = vmatpush1.msra.mxu0 0.0
        %2306 = vmatprep.subr.mxu0 0.0
        %2307 = vmatpush1.msra.mxu0 0.0
        %2308 = vmatprep.subr.mxu0 0.0
        %2309 = vmatpush1.msra.mxu0 0.0
        %2310 = vmatprep.subr.mxu0 0.0
        %2311 = vmatpush1.msra.mxu0 0.0
        %2312 = vmatprep.subr.mxu0 0.0
        %2313 = vmatpush1.msra.mxu0 0.0
        %2314 = vmatprep.subr.mxu0 0.0
        %2315 = vmatpush1.msra.mxu0 0.0
        %2316 = vmatprep.subr.mxu0 0.0
        %2317 = vmatpush1.msra.mxu0 0.0
        %2318 = vmatprep.subr.mxu0 0.0
        %2319 = vmatpush1.msra.mxu0 0.0
        %2320 = vmatprep.mubr.f32.mxu0 0.0
        %2321 = vmatmul.mubr.f32.gmra.mrb[0].mxu0 %v2158
        %v2322 = vpop.f32.mrb[0].mxu0
        %v2323 = vadd.f32 0.0, %v2322
        %v2324 = vpop.f32.mrb[0].mxu0
        %2325 = vmatprep.mubr.f32.mxu0 0.0
        %2326 = vmatmul.mubr.f32.gmra.mrb[0].mxu0 %v2161
        %v2327 = vpop.f32.mrb[0].mxu0
        %v2328 = vadd.f32 0.0, %v2327
        %v2329 = vpop.f32.mrb[0].mxu0
        %2330 = vmatprep.mubr.f32.mxu0 0.0
        %2331 = vmatmul.mubr.f32.gmra.mrb[0].mxu0 %v2164
        %v2332 = vpop.f32.mrb[0].mxu0
        %v2333 = vadd.f32 0.0, %v2332
        %v2334 = vpop.f32.mrb[0].mxu0
        %2335 = vmatprep.mubr.f32.mxu0 0.0
        %2336 = vmatmul.mubr.f32.gmra.mrb[0].mxu0 %v2167
        %v2337 = vpop.f32.mrb[0].mxu0
        %v2338 = vadd.f32 0.0, %v2337
        %v2339 = vpop.f32.mrb[0].mxu0
        %2340 = vmatprep.mubr.f32.mxu0 0.0
        %2341 = vmatmul.mubr.f32.gmra.mrb[0].mxu0 %v2170
        %v2342 = vpop.f32.mrb[0].mxu0
        %v2343 = vadd.f32 0.0, %v2342
        %v2344 = vpop.f32.mrb[0].mxu0
        %2345 = vmatprep.mubr.f32.mxu0 0.0
        %2346 = vmatmul.mubr.f32.gmra.mrb[0].mxu0 %v2173
        %v2347 = vpop.f32.mrb[0].mxu0
        %v2348 = vadd.f32 0.0, %v2347
        %v2349 = vpop.f32.mrb[0].mxu0
        %2350 = vmatprep.mubr.f32.mxu0 0.0
        %2351 = vmatmul.mubr.f32.gmra.mrb[0].mxu0 %v2176
        %v2352 = vpop.f32.mrb[0].mxu0
        %v2353 = vadd.f32 0.0, %v2352
        %v2354 = vpop.f32.mrb[0].mxu0
        %2355 = vmatprep.mubr.f32.mxu0 0.0
        %2356 = vmatmul.mubr.f32.gmra.mrb[0].mxu0 %v2179
        %v2357 = vpop.f32.mrb[0].mxu0
        %v2358 = vadd.f32 0.0, %v2357
        %v2359 = vpop.f32.mrb[0].mxu0
        %2360 = vmatprep.mubr.f32.mxu0 0.0
        %2361 = vmatmul.mubr.f32.gmra.mrb[0].mxu0 %v2182
        %v2362 = vpop.f32.mrb[0].mxu0
        %v2363 = vadd.f32 0.0, %v2362
        %v2364 = vpop.f32.mrb[0].mxu0
        %2365 = vmatprep.mubr.f32.mxu0 0.0
        %2366 = vmatmul.mubr.f32.gmra.mrb[0].mxu0 %v2185
        %v2367 = vpop.f32.mrb[0].mxu0
        %v2368 = vadd.f32 0.0, %v2367
        %v2369 = vpop.f32.mrb[0].mxu0
        %2370 = vmatprep.mubr.f32.mxu0 0.0
        %2371 = vmatmul.mubr.f32.gmra.mrb[0].mxu0 %v2188
        %v2372 = vpop.f32.mrb[0].mxu0
        %v2373 = vadd.f32 0.0, %v2372
        %v2374 = vpop.f32.mrb[0].mxu0
        %2375 = vmatprep.mubr.f32.mxu0 0.0
        %2376 = vmatmul.mubr.f32.gmra.mrb[0].mxu0 %v2191
        %v2377 = vpop.f32.mrb[0].mxu0
        %v2378 = vadd.f32 0.0, %v2377
        %v2379 = vpop.f32.mrb[0].mxu0
        %2380 = vmatprep.mubr.f32.mxu0 0.0
        %2381 = vmatmul.mubr.f32.gmra.mrb[0].mxu0 %v2194
        %v2382 = vpop.f32.mrb[0].mxu0
        %v2383 = vadd.f32 0.0, %v2382
        %v2384 = vpop.f32.mrb[0].mxu0
        %2385 = vmatprep.mubr.f32.mxu0 0.0
        %2386 = vmatmul.mubr.f32.gmra.mrb[0].mxu0 %v2197
        %v2387 = vpop.f32.mrb[0].mxu0
        %v2388 = vadd.f32 0.0, %v2387
        %v2389 = vpop.f32.mrb[0].mxu0
        %2390 = vmatprep.mubr.f32.mxu0 0.0
        %2391 = vmatmul.mubr.f32.gmra.mrb[0].mxu0 %v2200
        %v2392 = vpop.f32.mrb[0].mxu0
        %v2393 = vadd.f32 0.0, %v2392
        %v2394 = vpop.f32.mrb[0].mxu0
        %2395 = vmatprep.mubr.f32.mxu0 0.0
        %2396 = vmatmul.mubr.f32.gmra.mrb[0].mxu0 %v2203
        %v2397 = vpop.f32.mrb[0].mxu0
        %v2398 = vadd.f32 0.0, %v2397
        %v2399 = vpop.f32.mrb[0].mxu0
        %2400 = vmatprep.mubr.f32.mxu0 0.0
        %2401 = vmatmul.mubr.f32.gmra.mrb[0].mxu0 %v2206
        %v2402 = vpop.f32.mrb[0].mxu0
        %v2403 = vadd.f32 0.0, %v2402
        %v2404 = vpop.f32.mrb[0].mxu0
        %2405 = vmatprep.mubr.f32.mxu0 0.0
        %2406 = vmatmul.mubr.f32.gmra.mrb[0].mxu0 %v2209
        %v2407 = vpop.f32.mrb[0].mxu0
        %v2408 = vadd.f32 0.0, %v2407
        %v2409 = vpop.f32.mrb[0].mxu0
        %2410 = vmatprep.mubr.f32.mxu0 0.0
        %2411 = vmatmul.mubr.f32.gmra.mrb[0].mxu0 %v2212
        %v2412 = vpop.f32.mrb[0].mxu0
        %v2413 = vadd.f32 0.0, %v2412
        %v2414 = vpop.f32.mrb[0].mxu0
        %2415 = vmatprep.mubr.f32.mxu0 0.0
        %2416 = vmatmul.mubr.f32.gmra.mrb[0].mxu0 %v2215
        %v2417 = vpop.f32.mrb[0].mxu0
        %v2418 = vadd.f32 0.0, %v2417
        %v2419 = vpop.f32.mrb[0].mxu0
        %2420 = vmatprep.mubr.f32.mxu0 0.0
        %2421 = vmatmul.mubr.f32.gmra.mrb[0].mxu0 %v2218
        %v2422 = vpop.f32.mrb[0].mxu0
        %v2423 = vadd.f32 0.0, %v2422
        %v2424 = vpop.f32.mrb[0].mxu0
        %2425 = vmatprep.mubr.f32.mxu0 0.0
        %2426 = vmatmul.mubr.f32.gmra.mrb[0].mxu0 %v2221
        %v2427 = vpop.f32.mrb[0].mxu0
        %v2428 = vadd.f32 0.0, %v2427
        %v2429 = vpop.f32.mrb[0].mxu0
        %2430 = vmatprep.mubr.f32.mxu0 0.0
        %2431 = vmatmul.mubr.f32.gmra.mrb[0].mxu0 %v2224
        %v2432 = vpop.f32.mrb[0].mxu0
        %v2433 = vadd.f32 0.0, %v2432
        %v2434 = vpop.f32.mrb[0].mxu0
        %2435 = vmatprep.mubr.f32.mxu0 0.0
        %2436 = vmatmul.mubr.f32.gmra.mrb[0].mxu0 %v2227
        %v2437 = vpop.f32.mrb[0].mxu0
        %v2438 = vadd.f32 0.0, %v2437
        %v2439 = vpop.f32.mrb[0].mxu0
        %2440 = vmatprep.mubr.f32.mxu0 0.0
        %2441 = vmatmul.mubr.f32.gmra.mrb[0].mxu0 %v2230
        %v2442 = vpop.f32.mrb[0].mxu0
        %v2443 = vadd.f32 0.0, %v2442
        %v2444 = vpop.f32.mrb[0].mxu0
        %2445 = vmatprep.mubr.f32.mxu0 0.0
        %2446 = vmatmul.mubr.f32.gmra.mrb[0].mxu0 %v2233
        %v2447 = vpop.f32.mrb[0].mxu0
        %v2448 = vadd.f32 0.0, %v2447
        %v2449 = vpop.f32.mrb[0].mxu0
        %2450 = vmatprep.mubr.f32.mxu0 0.0
        %2451 = vmatmul.mubr.f32.gmra.mrb[0].mxu0 %v2236
        %v2452 = vpop.f32.mrb[0].mxu0
        %v2453 = vadd.f32 0.0, %v2452
        %v2454 = vpop.f32.mrb[0].mxu0
        %2455 = vmatprep.mubr.f32.mxu0 0.0
        %2456 = vmatmul.mubr.f32.gmra.mrb[0].mxu0 %v2239
        %v2457 = vpop.f32.mrb[0].mxu0
        %v2458 = vadd.f32 0.0, %v2457
        %v2459 = vpop.f32.mrb[0].mxu0
        %2460 = vmatprep.mubr.f32.mxu0 0.0
        %2461 = vmatmul.mubr.f32.gmra.mrb[0].mxu0 %v2242
        %v2462 = vpop.f32.mrb[0].mxu0
        %v2463 = vadd.f32 0.0, %v2462
        %v2464 = vpop.f32.mrb[0].mxu0
        %2465 = vmatprep.mubr.f32.mxu0 0.0
        %2466 = vmatmul.mubr.f32.gmra.mrb[0].mxu0 %v2245
        %v2467 = vpop.f32.mrb[0].mxu0
        %v2468 = vadd.f32 0.0, %v2467
        %v2469 = vpop.f32.mrb[0].mxu0
        %2470 = vmatprep.mubr.f32.mxu0 0.0
        %2471 = vmatmul.mubr.f32.gmra.mrb[0].mxu0 %v2248
        %v2472 = vpop.f32.mrb[0].mxu0
        %v2473 = vadd.f32 0.0, %v2472
        %v2474 = vpop.f32.mrb[0].mxu0
        %2475 = vmatprep.mubr.f32.mxu0 0.0
        %2476 = vmatmul.mubr.f32.gmra.mrb[0].mxu0 %v2251
        %v2477 = vpop.f32.mrb[0].mxu0
        %v2478 = vadd.f32 0.0, %v2477
        %v2479 = vpop.f32.mrb[0].mxu0
        %2480 = vdwg.mxu0
        %v2481 = vadd.f32 %v2089, %v2323
        %v2482 = vadd.f32 %v2090, %v2328
        %v2483 = vadd.f32 %v2091, %v2333
        %v2484 = vadd.f32 %v2092, %v2338
        %v2485 = vadd.f32 %v2093, %v2343
        %v2486 = vadd.f32 %v2094, %v2348
        %v2487 = vadd.f32 %v2095, %v2353
        %v2488 = vadd.f32 %v2096, %v2358
        %v2489 = vadd.f32 %v2097, %v2363
        %v2490 = vadd.f32 %v2098, %v2368
        %v2491 = vadd.f32 %v2099, %v2373
        %v2492 = vadd.f32 %v2100, %v2378
        %v2493 = vadd.f32 %v2101, %v2383
        %v2494 = vadd.f32 %v2102, %v2388
        %v2495 = vadd.f32 %v2103, %v2393
        %v2496 = vadd.f32 %v2104, %v2398
        %v2497 = vadd.f32 %v2105, %v2403
        %v2498 = vadd.f32 %v2106, %v2408
        %v2499 = vadd.f32 %v2107, %v2413
        %v2500 = vadd.f32 %v2108, %v2418
        %v2501 = vadd.f32 %v2109, %v2423
        %v2502 = vadd.f32 %v2110, %v2428
        %v2503 = vadd.f32 %v2111, %v2433
        %v2504 = vadd.f32 %v2112, %v2438
        %v2505 = vadd.f32 %v2113, %v2443
        %v2506 = vadd.f32 %v2114, %v2448
        %v2507 = vadd.f32 %v2115, %v2453
        %v2508 = vadd.f32 %v2116, %v2458
        %v2509 = vadd.f32 %v2117, %v2463
        %v2510 = vadd.f32 %v2118, %v2468
        %v2511 = vadd.f32 %v2119, %v2473
        %v2512 = vadd.f32 %v2120, %v2478
        %s2513 = sadd.s32 %s224, 192
        %s2514 = scalar_lea.vmem %s215, %s2513
        %v2515 = vld [vmem:[%s2514] sm:$0xff]
        %v2516 = vld [vmem:[%s2514 + $0x8] sm:$0xff]
        %v2517 = vld [vmem:[%s2514 + $0x10] sm:$0xff]
        %v2518 = vld [vmem:[%s2514 + $0x18] sm:$0xff]
        %v2519 = vld [vmem:[%s2514 + $0x20] sm:$0xff]
        %v2520 = vld [vmem:[%s2514 + $0x28] sm:$0xff]
        %v2521 = vld [vmem:[%s2514 + $0x30] sm:$0xff]
        %v2522 = vld [vmem:[%s2514 + $0x38] sm:$0xff]
        %v2523 = vld [vmem:[%s2514 + $0x40] sm:$0xff]
        %v2524 = vld [vmem:[%s2514 + $0x48] sm:$0xff]
        %v2525 = vld [vmem:[%s2514 + $0x50] sm:$0xff]
        %v2526 = vld [vmem:[%s2514 + $0x58] sm:$0xff]
        %v2527 = vld [vmem:[%s2514 + $0x60] sm:$0xff]
        %v2528 = vld [vmem:[%s2514 + $0x68] sm:$0xff]
        %v2529 = vld [vmem:[%s2514 + $0x70] sm:$0xff]
        %v2530 = vld [vmem:[%s2514 + $0x78] sm:$0xff]
        %v2531 = vld [vmem:[%s2514 + $0x80] sm:$0xff]
        %v2532 = vld [vmem:[%s2514 + $0x88] sm:$0xff]
        %v2533 = vld [vmem:[%s2514 + $0x90] sm:$0xff]
        %v2534 = vld [vmem:[%s2514 + $0x98] sm:$0xff]
        %v2535 = vld [vmem:[%s2514 + $0xa0] sm:$0xff]
        %v2536 = vld [vmem:[%s2514 + $0xa8] sm:$0xff]
        %v2537 = vld [vmem:[%s2514 + $0xb0] sm:$0xff]
        %v2538 = vld [vmem:[%s2514 + $0xb8] sm:$0xff]
        %v2539 = vld [vmem:[%s2514 + $0xc0] sm:$0xff]
        %v2540 = vld [vmem:[%s2514 + $0xc8] sm:$0xff]
        %v2541 = vld [vmem:[%s2514 + $0xd0] sm:$0xff]
        %v2542 = vld [vmem:[%s2514 + $0xd8] sm:$0xff]
        %v2543 = vld [vmem:[%s2514 + $0xe0] sm:$0xff]
        %v2544 = vld [vmem:[%s2514 + $0xe8] sm:$0xff]
        %v2545 = vld [vmem:[%s2514 + $0xf0] sm:$0xff]
        %v2546 = vld [vmem:[%s2514 + $0xf8] sm:$0xff]
        %s2547 = scalar_lea.vmem %s219, 24
        %v2548 = vld [vmem:[%s2547] sm:$0xf]
        %v2550 = vsel %vm295, %v2515, 0
        %v2553 = vsel %vm295, %v2516, 0
        %v2556 = vsel %vm295, %v2517, 0
        %v2559 = vsel %vm295, %v2518, 0
        %v2562 = vsel %vm295, %v2519, 0
        %v2565 = vsel %vm295, %v2520, 0
        %v2568 = vsel %vm295, %v2521, 0
        %v2571 = vsel %vm295, %v2522, 0
        %v2574 = vsel %vm295, %v2523, 0
        %v2577 = vsel %vm295, %v2524, 0
        %v2580 = vsel %vm295, %v2525, 0
        %v2583 = vsel %vm295, %v2526, 0
        %v2586 = vsel %vm295, %v2527, 0
        %v2589 = vsel %vm295, %v2528, 0
        %v2592 = vsel %vm295, %v2529, 0
        %v2595 = vsel %vm295, %v2530, 0
        %v2598 = vsel %vm295, %v2531, 0
        %v2601 = vsel %vm295, %v2532, 0
        %v2604 = vsel %vm295, %v2533, 0
        %v2607 = vsel %vm295, %v2534, 0
        %v2610 = vsel %vm295, %v2535, 0
        %v2613 = vsel %vm295, %v2536, 0
        %v2616 = vsel %vm295, %v2537, 0
        %v2619 = vsel %vm295, %v2538, 0
        %v2622 = vsel %vm295, %v2539, 0
        %v2625 = vsel %vm295, %v2540, 0
        %v2628 = vsel %vm295, %v2541, 0
        %v2631 = vsel %vm295, %v2542, 0
        %v2634 = vsel %vm295, %v2543, 0
        %v2637 = vsel %vm295, %v2544, 0
        %v2640 = vsel %vm295, %v2545, 0
        %v2643 = vsel %vm295, %v2546, 0
        %v2646 = vsel %vm392, %v2548, 0
        %2648 = vmatprep.subr.mxu0 0.0
        %2649 = vmatpush1.msra.mxu0 %v2646
        %2650 = vmatprep.subr.mxu0 0.0
        %2651 = vmatpush1.msra.mxu0 0.0
        %2652 = vmatprep.subr.mxu0 0.0
        %2653 = vmatpush1.msra.mxu0 0.0
        %2654 = vmatprep.subr.mxu0 0.0
        %2655 = vmatpush1.msra.mxu0 0.0
        %2656 = vmatprep.subr.mxu0 0.0
        %2657 = vmatpush1.msra.mxu0 0.0
        %2658 = vmatprep.subr.mxu0 0.0
        %2659 = vmatpush1.msra.mxu0 0.0
        %2660 = vmatprep.subr.mxu0 0.0
        %2661 = vmatpush1.msra.mxu0 0.0
        %2662 = vmatprep.subr.mxu0 0.0
        %2663 = vmatpush1.msra.mxu0 0.0
        %2664 = vmatprep.subr.mxu0 0.0
        %2665 = vmatpush1.msra.mxu0 0.0
        %2666 = vmatprep.subr.mxu0 0.0
        %2667 = vmatpush1.msra.mxu0 0.0
        %2668 = vmatprep.subr.mxu0 0.0
        %2669 = vmatpush1.msra.mxu0 0.0
        %2670 = vmatprep.subr.mxu0 0.0
        %2671 = vmatpush1.msra.mxu0 0.0
        %2672 = vmatprep.subr.mxu0 0.0
        %2673 = vmatpush1.msra.mxu0 0.0
        %2674 = vmatprep.subr.mxu0 0.0
        %2675 = vmatpush1.msra.mxu0 0.0
        %2676 = vmatprep.subr.mxu0 0.0
        %2677 = vmatpush1.msra.mxu0 0.0
        %2678 = vmatprep.subr.mxu0 0.0
        %2679 = vmatpush1.msra.mxu0 0.0
        %2680 = vmatprep.subr.mxu0 0.0
        %2681 = vmatpush1.msra.mxu0 0.0
        %2682 = vmatprep.subr.mxu0 0.0
        %2683 = vmatpush1.msra.mxu0 0.0
        %2684 = vmatprep.subr.mxu0 0.0
        %2685 = vmatpush1.msra.mxu0 0.0
        %2686 = vmatprep.subr.mxu0 0.0
        %2687 = vmatpush1.msra.mxu0 0.0
        %2688 = vmatprep.subr.mxu0 0.0
        %2689 = vmatpush1.msra.mxu0 0.0
        %2690 = vmatprep.subr.mxu0 0.0
        %2691 = vmatpush1.msra.mxu0 0.0
        %2692 = vmatprep.subr.mxu0 0.0
        %2693 = vmatpush1.msra.mxu0 0.0
        %2694 = vmatprep.subr.mxu0 0.0
        %2695 = vmatpush1.msra.mxu0 0.0
        %2696 = vmatprep.subr.mxu0 0.0
        %2697 = vmatpush1.msra.mxu0 0.0
        %2698 = vmatprep.subr.mxu0 0.0
        %2699 = vmatpush1.msra.mxu0 0.0
        %2700 = vmatprep.subr.mxu0 0.0
        %2701 = vmatpush1.msra.mxu0 0.0
        %2702 = vmatprep.subr.mxu0 0.0
        %2703 = vmatpush1.msra.mxu0 0.0
        %2704 = vmatprep.subr.mxu0 0.0
        %2705 = vmatpush1.msra.mxu0 0.0
        %2706 = vmatprep.subr.mxu0 0.0
        %2707 = vmatpush1.msra.mxu0 0.0
        %2708 = vmatprep.subr.mxu0 0.0
        %2709 = vmatpush1.msra.mxu0 0.0
        %2710 = vmatprep.subr.mxu0 0.0
        %2711 = vmatpush1.msra.mxu0 0.0
        %2712 = vmatprep.mubr.f32.mxu0 0.0
        %2713 = vmatmul.mubr.f32.gmra.mrb[0].mxu0 %v2550
        %v2714 = vpop.f32.mrb[0].mxu0
        %v2715 = vadd.f32 0.0, %v2714
        %v2716 = vpop.f32.mrb[0].mxu0
        %2717 = vmatprep.mubr.f32.mxu0 0.0
        %2718 = vmatmul.mubr.f32.gmra.mrb[0].mxu0 %v2553
        %v2719 = vpop.f32.mrb[0].mxu0
        %v2720 = vadd.f32 0.0, %v2719
        %v2721 = vpop.f32.mrb[0].mxu0
        %2722 = vmatprep.mubr.f32.mxu0 0.0
        %2723 = vmatmul.mubr.f32.gmra.mrb[0].mxu0 %v2556
        %v2724 = vpop.f32.mrb[0].mxu0
        %v2725 = vadd.f32 0.0, %v2724
        %v2726 = vpop.f32.mrb[0].mxu0
        %2727 = vmatprep.mubr.f32.mxu0 0.0
        %2728 = vmatmul.mubr.f32.gmra.mrb[0].mxu0 %v2559
        %v2729 = vpop.f32.mrb[0].mxu0
        %v2730 = vadd.f32 0.0, %v2729
        %v2731 = vpop.f32.mrb[0].mxu0
        %2732 = vmatprep.mubr.f32.mxu0 0.0
        %2733 = vmatmul.mubr.f32.gmra.mrb[0].mxu0 %v2562
        %v2734 = vpop.f32.mrb[0].mxu0
        %v2735 = vadd.f32 0.0, %v2734
        %v2736 = vpop.f32.mrb[0].mxu0
        %2737 = vmatprep.mubr.f32.mxu0 0.0
        %2738 = vmatmul.mubr.f32.gmra.mrb[0].mxu0 %v2565
        %v2739 = vpop.f32.mrb[0].mxu0
        %v2740 = vadd.f32 0.0, %v2739
        %v2741 = vpop.f32.mrb[0].mxu0
        %2742 = vmatprep.mubr.f32.mxu0 0.0
        %2743 = vmatmul.mubr.f32.gmra.mrb[0].mxu0 %v2568
        %v2744 = vpop.f32.mrb[0].mxu0
        %v2745 = vadd.f32 0.0, %v2744
        %v2746 = vpop.f32.mrb[0].mxu0
        %2747 = vmatprep.mubr.f32.mxu0 0.0
        %2748 = vmatmul.mubr.f32.gmra.mrb[0].mxu0 %v2571
        %v2749 = vpop.f32.mrb[0].mxu0
        %v2750 = vadd.f32 0.0, %v2749
        %v2751 = vpop.f32.mrb[0].mxu0
        %2752 = vmatprep.mubr.f32.mxu0 0.0
        %2753 = vmatmul.mubr.f32.gmra.mrb[0].mxu0 %v2574
        %v2754 = vpop.f32.mrb[0].mxu0
        %v2755 = vadd.f32 0.0, %v2754
        %v2756 = vpop.f32.mrb[0].mxu0
        %2757 = vmatprep.mubr.f32.mxu0 0.0
        %2758 = vmatmul.mubr.f32.gmra.mrb[0].mxu0 %v2577
        %v2759 = vpop.f32.mrb[0].mxu0
        %v2760 = vadd.f32 0.0, %v2759
        %v2761 = vpop.f32.mrb[0].mxu0
        %2762 = vmatprep.mubr.f32.mxu0 0.0
        %2763 = vmatmul.mubr.f32.gmra.mrb[0].mxu0 %v2580
        %v2764 = vpop.f32.mrb[0].mxu0
        %v2765 = vadd.f32 0.0, %v2764
        %v2766 = vpop.f32.mrb[0].mxu0
        %2767 = vmatprep.mubr.f32.mxu0 0.0
        %2768 = vmatmul.mubr.f32.gmra.mrb[0].mxu0 %v2583
        %v2769 = vpop.f32.mrb[0].mxu0
        %v2770 = vadd.f32 0.0, %v2769
        %v2771 = vpop.f32.mrb[0].mxu0
        %2772 = vmatprep.mubr.f32.mxu0 0.0
        %2773 = vmatmul.mubr.f32.gmra.mrb[0].mxu0 %v2586
        %v2774 = vpop.f32.mrb[0].mxu0
        %v2775 = vadd.f32 0.0, %v2774
        %v2776 = vpop.f32.mrb[0].mxu0
        %2777 = vmatprep.mubr.f32.mxu0 0.0
        %2778 = vmatmul.mubr.f32.gmra.mrb[0].mxu0 %v2589
        %v2779 = vpop.f32.mrb[0].mxu0
        %v2780 = vadd.f32 0.0, %v2779
        %v2781 = vpop.f32.mrb[0].mxu0
        %2782 = vmatprep.mubr.f32.mxu0 0.0
        %2783 = vmatmul.mubr.f32.gmra.mrb[0].mxu0 %v2592
        %v2784 = vpop.f32.mrb[0].mxu0
        %v2785 = vadd.f32 0.0, %v2784
        %v2786 = vpop.f32.mrb[0].mxu0
        %2787 = vmatprep.mubr.f32.mxu0 0.0
        %2788 = vmatmul.mubr.f32.gmra.mrb[0].mxu0 %v2595
        %v2789 = vpop.f32.mrb[0].mxu0
        %v2790 = vadd.f32 0.0, %v2789
        %v2791 = vpop.f32.mrb[0].mxu0
        %2792 = vmatprep.mubr.f32.mxu0 0.0
        %2793 = vmatmul.mubr.f32.gmra.mrb[0].mxu0 %v2598
        %v2794 = vpop.f32.mrb[0].mxu0
        %v2795 = vadd.f32 0.0, %v2794
        %v2796 = vpop.f32.mrb[0].mxu0
        %2797 = vmatprep.mubr.f32.mxu0 0.0
        %2798 = vmatmul.mubr.f32.gmra.mrb[0].mxu0 %v2601
        %v2799 = vpop.f32.mrb[0].mxu0
        %v2800 = vadd.f32 0.0, %v2799
        %v2801 = vpop.f32.mrb[0].mxu0
        %2802 = vmatprep.mubr.f32.mxu0 0.0
        %2803 = vmatmul.mubr.f32.gmra.mrb[0].mxu0 %v2604
        %v2804 = vpop.f32.mrb[0].mxu0
        %v2805 = vadd.f32 0.0, %v2804
        %v2806 = vpop.f32.mrb[0].mxu0
        %2807 = vmatprep.mubr.f32.mxu0 0.0
        %2808 = vmatmul.mubr.f32.gmra.mrb[0].mxu0 %v2607
        %v2809 = vpop.f32.mrb[0].mxu0
        %v2810 = vadd.f32 0.0, %v2809
        %v2811 = vpop.f32.mrb[0].mxu0
        %2812 = vmatprep.mubr.f32.mxu0 0.0
        %2813 = vmatmul.mubr.f32.gmra.mrb[0].mxu0 %v2610
        %v2814 = vpop.f32.mrb[0].mxu0
        %v2815 = vadd.f32 0.0, %v2814
        %v2816 = vpop.f32.mrb[0].mxu0
        %2817 = vmatprep.mubr.f32.mxu0 0.0
        %2818 = vmatmul.mubr.f32.gmra.mrb[0].mxu0 %v2613
        %v2819 = vpop.f32.mrb[0].mxu0
        %v2820 = vadd.f32 0.0, %v2819
        %v2821 = vpop.f32.mrb[0].mxu0
        %2822 = vmatprep.mubr.f32.mxu0 0.0
        %2823 = vmatmul.mubr.f32.gmra.mrb[0].mxu0 %v2616
        %v2824 = vpop.f32.mrb[0].mxu0
        %v2825 = vadd.f32 0.0, %v2824
        %v2826 = vpop.f32.mrb[0].mxu0
        %2827 = vmatprep.mubr.f32.mxu0 0.0
        %2828 = vmatmul.mubr.f32.gmra.mrb[0].mxu0 %v2619
        %v2829 = vpop.f32.mrb[0].mxu0
        %v2830 = vadd.f32 0.0, %v2829
        %v2831 = vpop.f32.mrb[0].mxu0
        %2832 = vmatprep.mubr.f32.mxu0 0.0
        %2833 = vmatmul.mubr.f32.gmra.mrb[0].mxu0 %v2622
        %v2834 = vpop.f32.mrb[0].mxu0
        %v2835 = vadd.f32 0.0, %v2834
        %v2836 = vpop.f32.mrb[0].mxu0
        %2837 = vmatprep.mubr.f32.mxu0 0.0
        %2838 = vmatmul.mubr.f32.gmra.mrb[0].mxu0 %v2625
        %v2839 = vpop.f32.mrb[0].mxu0
        %v2840 = vadd.f32 0.0, %v2839
        %v2841 = vpop.f32.mrb[0].mxu0
        %2842 = vmatprep.mubr.f32.mxu0 0.0
        %2843 = vmatmul.mubr.f32.gmra.mrb[0].mxu0 %v2628
        %v2844 = vpop.f32.mrb[0].mxu0
        %v2845 = vadd.f32 0.0, %v2844
        %v2846 = vpop.f32.mrb[0].mxu0
        %2847 = vmatprep.mubr.f32.mxu0 0.0
        %2848 = vmatmul.mubr.f32.gmra.mrb[0].mxu0 %v2631
        %v2849 = vpop.f32.mrb[0].mxu0
        %v2850 = vadd.f32 0.0, %v2849
        %v2851 = vpop.f32.mrb[0].mxu0
        %2852 = vmatprep.mubr.f32.mxu0 0.0
        %2853 = vmatmul.mubr.f32.gmra.mrb[0].mxu0 %v2634
        %v2854 = vpop.f32.mrb[0].mxu0
        %v2855 = vadd.f32 0.0, %v2854
        %v2856 = vpop.f32.mrb[0].mxu0
        %2857 = vmatprep.mubr.f32.mxu0 0.0
        %2858 = vmatmul.mubr.f32.gmra.mrb[0].mxu0 %v2637
        %v2859 = vpop.f32.mrb[0].mxu0
        %v2860 = vadd.f32 0.0, %v2859
        %v2861 = vpop.f32.mrb[0].mxu0
        %2862 = vmatprep.mubr.f32.mxu0 0.0
        %2863 = vmatmul.mubr.f32.gmra.mrb[0].mxu0 %v2640
        %v2864 = vpop.f32.mrb[0].mxu0
        %v2865 = vadd.f32 0.0, %v2864
        %v2866 = vpop.f32.mrb[0].mxu0
        %2867 = vmatprep.mubr.f32.mxu0 0.0
        %2868 = vmatmul.mubr.f32.gmra.mrb[0].mxu0 %v2643
        %v2869 = vpop.f32.mrb[0].mxu0
        %v2870 = vadd.f32 0.0, %v2869
        %v2871 = vpop.f32.mrb[0].mxu0
        %2872 = vdwg.mxu0
        %v2873 = vadd.f32 %v2481, %v2715
        %v2874 = vadd.f32 %v2482, %v2720
        %v2875 = vadd.f32 %v2483, %v2725
        %v2876 = vadd.f32 %v2484, %v2730
        %v2877 = vadd.f32 %v2485, %v2735
        %v2878 = vadd.f32 %v2486, %v2740
        %v2879 = vadd.f32 %v2487, %v2745
        %v2880 = vadd.f32 %v2488, %v2750
        %v2881 = vadd.f32 %v2489, %v2755
        %v2882 = vadd.f32 %v2490, %v2760
        %v2883 = vadd.f32 %v2491, %v2765
        %v2884 = vadd.f32 %v2492, %v2770
        %v2885 = vadd.f32 %v2493, %v2775
        %v2886 = vadd.f32 %v2494, %v2780
        %v2887 = vadd.f32 %v2495, %v2785
        %v2888 = vadd.f32 %v2496, %v2790
        %v2889 = vadd.f32 %v2497, %v2795
        %v2890 = vadd.f32 %v2498, %v2800
        %v2891 = vadd.f32 %v2499, %v2805
        %v2892 = vadd.f32 %v2500, %v2810
        %v2893 = vadd.f32 %v2501, %v2815
        %v2894 = vadd.f32 %v2502, %v2820
        %v2895 = vadd.f32 %v2503, %v2825
        %v2896 = vadd.f32 %v2504, %v2830
        %v2897 = vadd.f32 %v2505, %v2835
        %v2898 = vadd.f32 %v2506, %v2840
        %v2899 = vadd.f32 %v2507, %v2845
        %v2900 = vadd.f32 %v2508, %v2850
        %v2901 = vadd.f32 %v2509, %v2855
        %v2902 = vadd.f32 %v2510, %v2860
        %v2903 = vadd.f32 %v2511, %v2865
        %v2904 = vadd.f32 %v2512, %v2870
        %s2905 = sadd.s32 %s224, 224
        %s2906 = scalar_lea.vmem %s215, %s2905
        %v2907 = vld [vmem:[%s2906] sm:$0xff]
        %v2908 = vld [vmem:[%s2906 + $0x8] sm:$0xff]
        %v2909 = vld [vmem:[%s2906 + $0x10] sm:$0xff]
        %v2910 = vld [vmem:[%s2906 + $0x18] sm:$0xff]
        %v2911 = vld [vmem:[%s2906 + $0x20] sm:$0xff]
        %v2912 = vld [vmem:[%s2906 + $0x28] sm:$0xff]
        %v2913 = vld [vmem:[%s2906 + $0x30] sm:$0xff]
        %v2914 = vld [vmem:[%s2906 + $0x38] sm:$0xff]
        %v2915 = vld [vmem:[%s2906 + $0x40] sm:$0xff]
        %v2916 = vld [vmem:[%s2906 + $0x48] sm:$0xff]
        %v2917 = vld [vmem:[%s2906 + $0x50] sm:$0xff]
        %v2918 = vld [vmem:[%s2906 + $0x58] sm:$0xff]
        %v2919 = vld [vmem:[%s2906 + $0x60] sm:$0xff]
        %v2920 = vld [vmem:[%s2906 + $0x68] sm:$0xff]
        %v2921 = vld [vmem:[%s2906 + $0x70] sm:$0xff]
        %v2922 = vld [vmem:[%s2906 + $0x78] sm:$0xff]
        %v2923 = vld [vmem:[%s2906 + $0x80] sm:$0xff]
        %v2924 = vld [vmem:[%s2906 + $0x88] sm:$0xff]
        %v2925 = vld [vmem:[%s2906 + $0x90] sm:$0xff]
        %v2926 = vld [vmem:[%s2906 + $0x98] sm:$0xff]
        %v2927 = vld [vmem:[%s2906 + $0xa0] sm:$0xff]
        %v2928 = vld [vmem:[%s2906 + $0xa8] sm:$0xff]
        %v2929 = vld [vmem:[%s2906 + $0xb0] sm:$0xff]
        %v2930 = vld [vmem:[%s2906 + $0xb8] sm:$0xff]
        %v2931 = vld [vmem:[%s2906 + $0xc0] sm:$0xff]
        %v2932 = vld [vmem:[%s2906 + $0xc8] sm:$0xff]
        %v2933 = vld [vmem:[%s2906 + $0xd0] sm:$0xff]
        %v2934 = vld [vmem:[%s2906 + $0xd8] sm:$0xff]
        %v2935 = vld [vmem:[%s2906 + $0xe0] sm:$0xff]
        %v2936 = vld [vmem:[%s2906 + $0xe8] sm:$0xff]
        %v2937 = vld [vmem:[%s2906 + $0xf0] sm:$0xff]
        %v2938 = vld [vmem:[%s2906 + $0xf8] sm:$0xff]
        %s2939 = scalar_lea.vmem %s219, 28
        %v2940 = vld [vmem:[%s2939] sm:$0xf]
        %v2942 = vsel %vm295, %v2907, 0
        %v2945 = vsel %vm295, %v2908, 0
        %v2948 = vsel %vm295, %v2909, 0
        %v2951 = vsel %vm295, %v2910, 0
        %v2954 = vsel %vm295, %v2911, 0
        %v2957 = vsel %vm295, %v2912, 0
        %v2960 = vsel %vm295, %v2913, 0
        %v2963 = vsel %vm295, %v2914, 0
        %v2966 = vsel %vm295, %v2915, 0
        %v2969 = vsel %vm295, %v2916, 0
        %v2972 = vsel %vm295, %v2917, 0
        %v2975 = vsel %vm295, %v2918, 0
        %v2978 = vsel %vm295, %v2919, 0
        %v2981 = vsel %vm295, %v2920, 0
        %v2984 = vsel %vm295, %v2921, 0
        %v2987 = vsel %vm295, %v2922, 0
        %v2990 = vsel %vm295, %v2923, 0
        %v2993 = vsel %vm295, %v2924, 0
        %v2996 = vsel %vm295, %v2925, 0
        %v2999 = vsel %vm295, %v2926, 0
        %v3002 = vsel %vm295, %v2927, 0
        %v3005 = vsel %vm295, %v2928, 0
        %v3008 = vsel %vm295, %v2929, 0
        %v3011 = vsel %vm295, %v2930, 0
        %v3014 = vsel %vm295, %v2931, 0
        %v3017 = vsel %vm295, %v2932, 0
        %v3020 = vsel %vm295, %v2933, 0
        %v3023 = vsel %vm295, %v2934, 0
        %v3026 = vsel %vm295, %v2935, 0
        %v3029 = vsel %vm295, %v2936, 0
        %v3032 = vsel %vm295, %v2937, 0
        %v3035 = vsel %vm295, %v2938, 0
        %v3038 = vsel %vm392, %v2940, 0
        %3040 = vmatprep.subr.mxu0 0.0
        %3041 = vmatpush1.msra.mxu0 %v3038
        %3042 = vmatprep.subr.mxu0 0.0
        %3043 = vmatpush1.msra.mxu0 0.0
        %3044 = vmatprep.subr.mxu0 0.0
        %3045 = vmatpush1.msra.mxu0 0.0
        %3046 = vmatprep.subr.mxu0 0.0
        %3047 = vmatpush1.msra.mxu0 0.0
        %3048 = vmatprep.subr.mxu0 0.0
        %3049 = vmatpush1.msra.mxu0 0.0
        %3050 = vmatprep.subr.mxu0 0.0
        %3051 = vmatpush1.msra.mxu0 0.0
        %3052 = vmatprep.subr.mxu0 0.0
        %3053 = vmatpush1.msra.mxu0 0.0
        %3054 = vmatprep.subr.mxu0 0.0
        %3055 = vmatpush1.msra.mxu0 0.0
        %3056 = vmatprep.subr.mxu0 0.0
        %3057 = vmatpush1.msra.mxu0 0.0
        %3058 = vmatprep.subr.mxu0 0.0
        %3059 = vmatpush1.msra.mxu0 0.0
        %3060 = vmatprep.subr.mxu0 0.0
        %3061 = vmatpush1.msra.mxu0 0.0
        %3062 = vmatprep.subr.mxu0 0.0
        %3063 = vmatpush1.msra.mxu0 0.0
        %3064 = vmatprep.subr.mxu0 0.0
        %3065 = vmatpush1.msra.mxu0 0.0
        %3066 = vmatprep.subr.mxu0 0.0
        %3067 = vmatpush1.msra.mxu0 0.0
        %3068 = vmatprep.subr.mxu0 0.0
        %3069 = vmatpush1.msra.mxu0 0.0
        %3070 = vmatprep.subr.mxu0 0.0
        %3071 = vmatpush1.msra.mxu0 0.0
        %3072 = vmatprep.subr.mxu0 0.0
        %3073 = vmatpush1.msra.mxu0 0.0
        %3074 = vmatprep.subr.mxu0 0.0
        %3075 = vmatpush1.msra.mxu0 0.0
        %3076 = vmatprep.subr.mxu0 0.0
        %3077 = vmatpush1.msra.mxu0 0.0
        %3078 = vmatprep.subr.mxu0 0.0
        %3079 = vmatpush1.msra.mxu0 0.0
        %3080 = vmatprep.subr.mxu0 0.0
        %3081 = vmatpush1.msra.mxu0 0.0
        %3082 = vmatprep.subr.mxu0 0.0
        %3083 = vmatpush1.msra.mxu0 0.0
        %3084 = vmatprep.subr.mxu0 0.0
        %3085 = vmatpush1.msra.mxu0 0.0
        %3086 = vmatprep.subr.mxu0 0.0
        %3087 = vmatpush1.msra.mxu0 0.0
        %3088 = vmatprep.subr.mxu0 0.0
        %3089 = vmatpush1.msra.mxu0 0.0
        %3090 = vmatprep.subr.mxu0 0.0
        %3091 = vmatpush1.msra.mxu0 0.0
        %3092 = vmatprep.subr.mxu0 0.0
        %3093 = vmatpush1.msra.mxu0 0.0
        %3094 = vmatprep.subr.mxu0 0.0
        %3095 = vmatpush1.msra.mxu0 0.0
        %3096 = vmatprep.subr.mxu0 0.0
        %3097 = vmatpush1.msra.mxu0 0.0
        %3098 = vmatprep.subr.mxu0 0.0
        %3099 = vmatpush1.msra.mxu0 0.0
        %3100 = vmatprep.subr.mxu0 0.0
        %3101 = vmatpush1.msra.mxu0 0.0
        %3102 = vmatprep.subr.mxu0 0.0
        %3103 = vmatpush1.msra.mxu0 0.0
        %3104 = vmatprep.mubr.f32.mxu0 0.0
        %3105 = vmatmul.mubr.f32.gmra.mrb[0].mxu0 %v2942
        %v3106 = vpop.f32.mrb[0].mxu0
        %v3107 = vadd.f32 0.0, %v3106
        %v3108 = vpop.f32.mrb[0].mxu0
        %3109 = vmatprep.mubr.f32.mxu0 0.0
        %3110 = vmatmul.mubr.f32.gmra.mrb[0].mxu0 %v2945
        %v3111 = vpop.f32.mrb[0].mxu0
        %v3112 = vadd.f32 0.0, %v3111
        %v3113 = vpop.f32.mrb[0].mxu0
        %3114 = vmatprep.mubr.f32.mxu0 0.0
        %3115 = vmatmul.mubr.f32.gmra.mrb[0].mxu0 %v2948
        %v3116 = vpop.f32.mrb[0].mxu0
        %v3117 = vadd.f32 0.0, %v3116
        %v3118 = vpop.f32.mrb[0].mxu0
        %3119 = vmatprep.mubr.f32.mxu0 0.0
        %3120 = vmatmul.mubr.f32.gmra.mrb[0].mxu0 %v2951
        %v3121 = vpop.f32.mrb[0].mxu0
        %v3122 = vadd.f32 0.0, %v3121
        %v3123 = vpop.f32.mrb[0].mxu0
        %3124 = vmatprep.mubr.f32.mxu0 0.0
        %3125 = vmatmul.mubr.f32.gmra.mrb[0].mxu0 %v2954
        %v3126 = vpop.f32.mrb[0].mxu0
        %v3127 = vadd.f32 0.0, %v3126
        %v3128 = vpop.f32.mrb[0].mxu0
        %3129 = vmatprep.mubr.f32.mxu0 0.0
        %3130 = vmatmul.mubr.f32.gmra.mrb[0].mxu0 %v2957
        %v3131 = vpop.f32.mrb[0].mxu0
        %v3132 = vadd.f32 0.0, %v3131
        %v3133 = vpop.f32.mrb[0].mxu0
        %3134 = vmatprep.mubr.f32.mxu0 0.0
        %3135 = vmatmul.mubr.f32.gmra.mrb[0].mxu0 %v2960
        %v3136 = vpop.f32.mrb[0].mxu0
        %v3137 = vadd.f32 0.0, %v3136
        %v3138 = vpop.f32.mrb[0].mxu0
        %3139 = vmatprep.mubr.f32.mxu0 0.0
        %3140 = vmatmul.mubr.f32.gmra.mrb[0].mxu0 %v2963
        %v3141 = vpop.f32.mrb[0].mxu0
        %v3142 = vadd.f32 0.0, %v3141
        %v3143 = vpop.f32.mrb[0].mxu0
        %3144 = vmatprep.mubr.f32.mxu0 0.0
        %3145 = vmatmul.mubr.f32.gmra.mrb[0].mxu0 %v2966
        %v3146 = vpop.f32.mrb[0].mxu0
        %v3147 = vadd.f32 0.0, %v3146
        %v3148 = vpop.f32.mrb[0].mxu0
        %3149 = vmatprep.mubr.f32.mxu0 0.0
        %3150 = vmatmul.mubr.f32.gmra.mrb[0].mxu0 %v2969
        %v3151 = vpop.f32.mrb[0].mxu0
        %v3152 = vadd.f32 0.0, %v3151
        %v3153 = vpop.f32.mrb[0].mxu0
        %3154 = vmatprep.mubr.f32.mxu0 0.0
        %3155 = vmatmul.mubr.f32.gmra.mrb[0].mxu0 %v2972
        %v3156 = vpop.f32.mrb[0].mxu0
        %v3157 = vadd.f32 0.0, %v3156
        %v3158 = vpop.f32.mrb[0].mxu0
        %3159 = vmatprep.mubr.f32.mxu0 0.0
        %3160 = vmatmul.mubr.f32.gmra.mrb[0].mxu0 %v2975
        %v3161 = vpop.f32.mrb[0].mxu0
        %v3162 = vadd.f32 0.0, %v3161
        %v3163 = vpop.f32.mrb[0].mxu0
        %3164 = vmatprep.mubr.f32.mxu0 0.0
        %3165 = vmatmul.mubr.f32.gmra.mrb[0].mxu0 %v2978
        %v3166 = vpop.f32.mrb[0].mxu0
        %v3167 = vadd.f32 0.0, %v3166
        %v3168 = vpop.f32.mrb[0].mxu0
        %3169 = vmatprep.mubr.f32.mxu0 0.0
        %3170 = vmatmul.mubr.f32.gmra.mrb[0].mxu0 %v2981
        %v3171 = vpop.f32.mrb[0].mxu0
        %v3172 = vadd.f32 0.0, %v3171
        %v3173 = vpop.f32.mrb[0].mxu0
        %3174 = vmatprep.mubr.f32.mxu0 0.0
        %3175 = vmatmul.mubr.f32.gmra.mrb[0].mxu0 %v2984
        %v3176 = vpop.f32.mrb[0].mxu0
        %v3177 = vadd.f32 0.0, %v3176
        %v3178 = vpop.f32.mrb[0].mxu0
        %3179 = vmatprep.mubr.f32.mxu0 0.0
        %3180 = vmatmul.mubr.f32.gmra.mrb[0].mxu0 %v2987
        %v3181 = vpop.f32.mrb[0].mxu0
        %v3182 = vadd.f32 0.0, %v3181
        %v3183 = vpop.f32.mrb[0].mxu0
        %3184 = vmatprep.mubr.f32.mxu0 0.0
        %3185 = vmatmul.mubr.f32.gmra.mrb[0].mxu0 %v2990
        %v3186 = vpop.f32.mrb[0].mxu0
        %v3187 = vadd.f32 0.0, %v3186
        %v3188 = vpop.f32.mrb[0].mxu0
        %3189 = vmatprep.mubr.f32.mxu0 0.0
        %3190 = vmatmul.mubr.f32.gmra.mrb[0].mxu0 %v2993
        %v3191 = vpop.f32.mrb[0].mxu0
        %v3192 = vadd.f32 0.0, %v3191
        %v3193 = vpop.f32.mrb[0].mxu0
        %3194 = vmatprep.mubr.f32.mxu0 0.0
        %3195 = vmatmul.mubr.f32.gmra.mrb[0].mxu0 %v2996
        %v3196 = vpop.f32.mrb[0].mxu0
        %v3197 = vadd.f32 0.0, %v3196
        %v3198 = vpop.f32.mrb[0].mxu0
        %3199 = vmatprep.mubr.f32.mxu0 0.0
        %3200 = vmatmul.mubr.f32.gmra.mrb[0].mxu0 %v2999
        %v3201 = vpop.f32.mrb[0].mxu0
        %v3202 = vadd.f32 0.0, %v3201
        %v3203 = vpop.f32.mrb[0].mxu0
        %3204 = vmatprep.mubr.f32.mxu0 0.0
        %3205 = vmatmul.mubr.f32.gmra.mrb[0].mxu0 %v3002
        %v3206 = vpop.f32.mrb[0].mxu0
        %v3207 = vadd.f32 0.0, %v3206
        %v3208 = vpop.f32.mrb[0].mxu0
        %3209 = vmatprep.mubr.f32.mxu0 0.0
        %3210 = vmatmul.mubr.f32.gmra.mrb[0].mxu0 %v3005
        %v3211 = vpop.f32.mrb[0].mxu0
        %v3212 = vadd.f32 0.0, %v3211
        %v3213 = vpop.f32.mrb[0].mxu0
        %3214 = vmatprep.mubr.f32.mxu0 0.0
        %3215 = vmatmul.mubr.f32.gmra.mrb[0].mxu0 %v3008
        %v3216 = vpop.f32.mrb[0].mxu0
        %v3217 = vadd.f32 0.0, %v3216
        %v3218 = vpop.f32.mrb[0].mxu0
        %3219 = vmatprep.mubr.f32.mxu0 0.0
        %3220 = vmatmul.mubr.f32.gmra.mrb[0].mxu0 %v3011
        %v3221 = vpop.f32.mrb[0].mxu0
        %v3222 = vadd.f32 0.0, %v3221
        %v3223 = vpop.f32.mrb[0].mxu0
        %3224 = vmatprep.mubr.f32.mxu0 0.0
        %3225 = vmatmul.mubr.f32.gmra.mrb[0].mxu0 %v3014
        %v3226 = vpop.f32.mrb[0].mxu0
        %v3227 = vadd.f32 0.0, %v3226
        %v3228 = vpop.f32.mrb[0].mxu0
        %3229 = vmatprep.mubr.f32.mxu0 0.0
        %3230 = vmatmul.mubr.f32.gmra.mrb[0].mxu0 %v3017
        %v3231 = vpop.f32.mrb[0].mxu0
        %v3232 = vadd.f32 0.0, %v3231
        %v3233 = vpop.f32.mrb[0].mxu0
        %3234 = vmatprep.mubr.f32.mxu0 0.0
        %3235 = vmatmul.mubr.f32.gmra.mrb[0].mxu0 %v3020
        %v3236 = vpop.f32.mrb[0].mxu0
        %v3237 = vadd.f32 0.0, %v3236
        %v3238 = vpop.f32.mrb[0].mxu0
        %3239 = vmatprep.mubr.f32.mxu0 0.0
        %3240 = vmatmul.mubr.f32.gmra.mrb[0].mxu0 %v3023
        %v3241 = vpop.f32.mrb[0].mxu0
        %v3242 = vadd.f32 0.0, %v3241
        %v3243 = vpop.f32.mrb[0].mxu0
        %3244 = vmatprep.mubr.f32.mxu0 0.0
        %3245 = vmatmul.mubr.f32.gmra.mrb[0].mxu0 %v3026
        %v3246 = vpop.f32.mrb[0].mxu0
        %v3247 = vadd.f32 0.0, %v3246
        %v3248 = vpop.f32.mrb[0].mxu0
        %3249 = vmatprep.mubr.f32.mxu0 0.0
        %3250 = vmatmul.mubr.f32.gmra.mrb[0].mxu0 %v3029
        %v3251 = vpop.f32.mrb[0].mxu0
        %v3252 = vadd.f32 0.0, %v3251
        %v3253 = vpop.f32.mrb[0].mxu0
        %3254 = vmatprep.mubr.f32.mxu0 0.0
        %3255 = vmatmul.mubr.f32.gmra.mrb[0].mxu0 %v3032
        %v3256 = vpop.f32.mrb[0].mxu0
        %v3257 = vadd.f32 0.0, %v3256
        %v3258 = vpop.f32.mrb[0].mxu0
        %3259 = vmatprep.mubr.f32.mxu0 0.0
        %3260 = vmatmul.mubr.f32.gmra.mrb[0].mxu0 %v3035
        %v3261 = vpop.f32.mrb[0].mxu0
        %v3262 = vadd.f32 0.0, %v3261
        %v3263 = vpop.f32.mrb[0].mxu0
        %3264 = vdwg.mxu0
        %v3265 = vadd.f32 %v2873, %v3107
        %v3266 = vadd.f32 %v2874, %v3112
        %v3267 = vadd.f32 %v2875, %v3117
        %v3268 = vadd.f32 %v2876, %v3122
        %v3269 = vadd.f32 %v2877, %v3127
        %v3270 = vadd.f32 %v2878, %v3132
        %v3271 = vadd.f32 %v2879, %v3137
        %v3272 = vadd.f32 %v2880, %v3142
        %v3273 = vadd.f32 %v2881, %v3147
        %v3274 = vadd.f32 %v2882, %v3152
        %v3275 = vadd.f32 %v2883, %v3157
        %v3276 = vadd.f32 %v2884, %v3162
        %v3277 = vadd.f32 %v2885, %v3167
        %v3278 = vadd.f32 %v2886, %v3172
        %v3279 = vadd.f32 %v2887, %v3177
        %v3280 = vadd.f32 %v2888, %v3182
        %v3281 = vadd.f32 %v2889, %v3187
        %v3282 = vadd.f32 %v2890, %v3192
        %v3283 = vadd.f32 %v2891, %v3197
        %v3284 = vadd.f32 %v2892, %v3202
        %v3285 = vadd.f32 %v2893, %v3207
        %v3286 = vadd.f32 %v2894, %v3212
        %v3287 = vadd.f32 %v2895, %v3217
        %v3288 = vadd.f32 %v2896, %v3222
        %v3289 = vadd.f32 %v2897, %v3227
        %v3290 = vadd.f32 %v2898, %v3232
        %v3291 = vadd.f32 %v2899, %v3237
        %v3292 = vadd.f32 %v2900, %v3242
        %v3293 = vadd.f32 %v2901, %v3247
        %v3294 = vadd.f32 %v2902, %v3252
        %v3295 = vadd.f32 %v2903, %v3257
        %v3296 = vadd.f32 %v2904, %v3262
        %s3297 = sadd.s32 %s224, 256
        %s3298 = scalar_lea.vmem %s215, %s3297
        %v3299 = vld [vmem:[%s3298] sm:$0xff]
        %v3300 = vld [vmem:[%s3298 + $0x8] sm:$0xff]
        %v3301 = vld [vmem:[%s3298 + $0x10] sm:$0xff]
        %v3302 = vld [vmem:[%s3298 + $0x18] sm:$0xff]
        %v3303 = vld [vmem:[%s3298 + $0x20] sm:$0xff]
        %v3304 = vld [vmem:[%s3298 + $0x28] sm:$0xff]
        %v3305 = vld [vmem:[%s3298 + $0x30] sm:$0xff]
        %v3306 = vld [vmem:[%s3298 + $0x38] sm:$0xff]
        %v3307 = vld [vmem:[%s3298 + $0x40] sm:$0xff]
        %v3308 = vld [vmem:[%s3298 + $0x48] sm:$0xff]
        %v3309 = vld [vmem:[%s3298 + $0x50] sm:$0xff]
        %v3310 = vld [vmem:[%s3298 + $0x58] sm:$0xff]
        %v3311 = vld [vmem:[%s3298 + $0x60] sm:$0xff]
        %v3312 = vld [vmem:[%s3298 + $0x68] sm:$0xff]
        %v3313 = vld [vmem:[%s3298 + $0x70] sm:$0xff]
        %v3314 = vld [vmem:[%s3298 + $0x78] sm:$0xff]
        %v3315 = vld [vmem:[%s3298 + $0x80] sm:$0xff]
        %v3316 = vld [vmem:[%s3298 + $0x88] sm:$0xff]
        %v3317 = vld [vmem:[%s3298 + $0x90] sm:$0xff]
        %v3318 = vld [vmem:[%s3298 + $0x98] sm:$0xff]
        %v3319 = vld [vmem:[%s3298 + $0xa0] sm:$0xff]
        %v3320 = vld [vmem:[%s3298 + $0xa8] sm:$0xff]
        %v3321 = vld [vmem:[%s3298 + $0xb0] sm:$0xff]
        %v3322 = vld [vmem:[%s3298 + $0xb8] sm:$0xff]
        %v3323 = vld [vmem:[%s3298 + $0xc0] sm:$0xff]
        %v3324 = vld [vmem:[%s3298 + $0xc8] sm:$0xff]
        %v3325 = vld [vmem:[%s3298 + $0xd0] sm:$0xff]
        %v3326 = vld [vmem:[%s3298 + $0xd8] sm:$0xff]
        %v3327 = vld [vmem:[%s3298 + $0xe0] sm:$0xff]
        %v3328 = vld [vmem:[%s3298 + $0xe8] sm:$0xff]
        %v3329 = vld [vmem:[%s3298 + $0xf0] sm:$0xff]
        %v3330 = vld [vmem:[%s3298 + $0xf8] sm:$0xff]
        %s3331 = scalar_lea.vmem %s219, 32
        %v3332 = vld [vmem:[%s3331] sm:$0xf]
        %v3334 = vsel %vm295, %v3299, 0
        %v3337 = vsel %vm295, %v3300, 0
        %v3340 = vsel %vm295, %v3301, 0
        %v3343 = vsel %vm295, %v3302, 0
        %v3346 = vsel %vm295, %v3303, 0
        %v3349 = vsel %vm295, %v3304, 0
        %v3352 = vsel %vm295, %v3305, 0
        %v3355 = vsel %vm295, %v3306, 0
        %v3358 = vsel %vm295, %v3307, 0
        %v3361 = vsel %vm295, %v3308, 0
        %v3364 = vsel %vm295, %v3309, 0
        %v3367 = vsel %vm295, %v3310, 0
        %v3370 = vsel %vm295, %v3311, 0
        %v3373 = vsel %vm295, %v3312, 0
        %v3376 = vsel %vm295, %v3313, 0
        %v3379 = vsel %vm295, %v3314, 0
        %v3382 = vsel %vm295, %v3315, 0
        %v3385 = vsel %vm295, %v3316, 0
        %v3388 = vsel %vm295, %v3317, 0
        %v3391 = vsel %vm295, %v3318, 0
        %v3394 = vsel %vm295, %v3319, 0
        %v3397 = vsel %vm295, %v3320, 0
        %v3400 = vsel %vm295, %v3321, 0
        %v3403 = vsel %vm295, %v3322, 0
        %v3406 = vsel %vm295, %v3323, 0
        %v3409 = vsel %vm295, %v3324, 0
        %v3412 = vsel %vm295, %v3325, 0
        %v3415 = vsel %vm295, %v3326, 0
        %v3418 = vsel %vm295, %v3327, 0
        %v3421 = vsel %vm295, %v3328, 0
        %v3424 = vsel %vm295, %v3329, 0
        %v3427 = vsel %vm295, %v3330, 0
        %v3430 = vsel %vm392, %v3332, 0
        %3432 = vmatprep.subr.mxu0 0.0
        %3433 = vmatpush1.msra.mxu0 %v3430
        %3434 = vmatprep.subr.mxu0 0.0
        %3435 = vmatpush1.msra.mxu0 0.0
        %3436 = vmatprep.subr.mxu0 0.0
        %3437 = vmatpush1.msra.mxu0 0.0
        %3438 = vmatprep.subr.mxu0 0.0
        %3439 = vmatpush1.msra.mxu0 0.0
        %3440 = vmatprep.subr.mxu0 0.0
        %3441 = vmatpush1.msra.mxu0 0.0
        %3442 = vmatprep.subr.mxu0 0.0
        %3443 = vmatpush1.msra.mxu0 0.0
        %3444 = vmatprep.subr.mxu0 0.0
        %3445 = vmatpush1.msra.mxu0 0.0
        %3446 = vmatprep.subr.mxu0 0.0
        %3447 = vmatpush1.msra.mxu0 0.0
        %3448 = vmatprep.subr.mxu0 0.0
        %3449 = vmatpush1.msra.mxu0 0.0
        %3450 = vmatprep.subr.mxu0 0.0
        %3451 = vmatpush1.msra.mxu0 0.0
        %3452 = vmatprep.subr.mxu0 0.0
        %3453 = vmatpush1.msra.mxu0 0.0
        %3454 = vmatprep.subr.mxu0 0.0
        %3455 = vmatpush1.msra.mxu0 0.0
        %3456 = vmatprep.subr.mxu0 0.0
        %3457 = vmatpush1.msra.mxu0 0.0
        %3458 = vmatprep.subr.mxu0 0.0
        %3459 = vmatpush1.msra.mxu0 0.0
        %3460 = vmatprep.subr.mxu0 0.0
        %3461 = vmatpush1.msra.mxu0 0.0
        %3462 = vmatprep.subr.mxu0 0.0
        %3463 = vmatpush1.msra.mxu0 0.0
        %3464 = vmatprep.subr.mxu0 0.0
        %3465 = vmatpush1.msra.mxu0 0.0
        %3466 = vmatprep.subr.mxu0 0.0
        %3467 = vmatpush1.msra.mxu0 0.0
        %3468 = vmatprep.subr.mxu0 0.0
        %3469 = vmatpush1.msra.mxu0 0.0
        %3470 = vmatprep.subr.mxu0 0.0
        %3471 = vmatpush1.msra.mxu0 0.0
        %3472 = vmatprep.subr.mxu0 0.0
        %3473 = vmatpush1.msra.mxu0 0.0
        %3474 = vmatprep.subr.mxu0 0.0
        %3475 = vmatpush1.msra.mxu0 0.0
        %3476 = vmatprep.subr.mxu0 0.0
        %3477 = vmatpush1.msra.mxu0 0.0
        %3478 = vmatprep.subr.mxu0 0.0
        %3479 = vmatpush1.msra.mxu0 0.0
        %3480 = vmatprep.subr.mxu0 0.0
        %3481 = vmatpush1.msra.mxu0 0.0
        %3482 = vmatprep.subr.mxu0 0.0
        %3483 = vmatpush1.msra.mxu0 0.0
        %3484 = vmatprep.subr.mxu0 0.0
        %3485 = vmatpush1.msra.mxu0 0.0
        %3486 = vmatprep.subr.mxu0 0.0
        %3487 = vmatpush1.msra.mxu0 0.0
        %3488 = vmatprep.subr.mxu0 0.0
        %3489 = vmatpush1.msra.mxu0 0.0
        %3490 = vmatprep.subr.mxu0 0.0
        %3491 = vmatpush1.msra.mxu0 0.0
        %3492 = vmatprep.subr.mxu0 0.0
        %3493 = vmatpush1.msra.mxu0 0.0
        %3494 = vmatprep.subr.mxu0 0.0
        %3495 = vmatpush1.msra.mxu0 0.0
        %3496 = vmatprep.mubr.f32.mxu0 0.0
        %3497 = vmatmul.mubr.f32.gmra.mrb[0].mxu0 %v3334
        %v3498 = vpop.f32.mrb[0].mxu0
        %v3499 = vadd.f32 0.0, %v3498
        %v3500 = vpop.f32.mrb[0].mxu0
        %3501 = vmatprep.mubr.f32.mxu0 0.0
        %3502 = vmatmul.mubr.f32.gmra.mrb[0].mxu0 %v3337
        %v3503 = vpop.f32.mrb[0].mxu0
        %v3504 = vadd.f32 0.0, %v3503
        %v3505 = vpop.f32.mrb[0].mxu0
        %3506 = vmatprep.mubr.f32.mxu0 0.0
        %3507 = vmatmul.mubr.f32.gmra.mrb[0].mxu0 %v3340
        %v3508 = vpop.f32.mrb[0].mxu0
        %v3509 = vadd.f32 0.0, %v3508
        %v3510 = vpop.f32.mrb[0].mxu0
        %3511 = vmatprep.mubr.f32.mxu0 0.0
        %3512 = vmatmul.mubr.f32.gmra.mrb[0].mxu0 %v3343
        %v3513 = vpop.f32.mrb[0].mxu0
        %v3514 = vadd.f32 0.0, %v3513
        %v3515 = vpop.f32.mrb[0].mxu0
        %3516 = vmatprep.mubr.f32.mxu0 0.0
        %3517 = vmatmul.mubr.f32.gmra.mrb[0].mxu0 %v3346
        %v3518 = vpop.f32.mrb[0].mxu0
        %v3519 = vadd.f32 0.0, %v3518
        %v3520 = vpop.f32.mrb[0].mxu0
        %3521 = vmatprep.mubr.f32.mxu0 0.0
        %3522 = vmatmul.mubr.f32.gmra.mrb[0].mxu0 %v3349
        %v3523 = vpop.f32.mrb[0].mxu0
        %v3524 = vadd.f32 0.0, %v3523
        %v3525 = vpop.f32.mrb[0].mxu0
        %3526 = vmatprep.mubr.f32.mxu0 0.0
        %3527 = vmatmul.mubr.f32.gmra.mrb[0].mxu0 %v3352
        %v3528 = vpop.f32.mrb[0].mxu0
        %v3529 = vadd.f32 0.0, %v3528
        %v3530 = vpop.f32.mrb[0].mxu0
        %3531 = vmatprep.mubr.f32.mxu0 0.0
        %3532 = vmatmul.mubr.f32.gmra.mrb[0].mxu0 %v3355
        %v3533 = vpop.f32.mrb[0].mxu0
        %v3534 = vadd.f32 0.0, %v3533
        %v3535 = vpop.f32.mrb[0].mxu0
        %3536 = vmatprep.mubr.f32.mxu0 0.0
        %3537 = vmatmul.mubr.f32.gmra.mrb[0].mxu0 %v3358
        %v3538 = vpop.f32.mrb[0].mxu0
        %v3539 = vadd.f32 0.0, %v3538
        %v3540 = vpop.f32.mrb[0].mxu0
        %3541 = vmatprep.mubr.f32.mxu0 0.0
        %3542 = vmatmul.mubr.f32.gmra.mrb[0].mxu0 %v3361
        %v3543 = vpop.f32.mrb[0].mxu0
        %v3544 = vadd.f32 0.0, %v3543
        %v3545 = vpop.f32.mrb[0].mxu0
        %3546 = vmatprep.mubr.f32.mxu0 0.0
        %3547 = vmatmul.mubr.f32.gmra.mrb[0].mxu0 %v3364
        %v3548 = vpop.f32.mrb[0].mxu0
        %v3549 = vadd.f32 0.0, %v3548
        %v3550 = vpop.f32.mrb[0].mxu0
        %3551 = vmatprep.mubr.f32.mxu0 0.0
        %3552 = vmatmul.mubr.f32.gmra.mrb[0].mxu0 %v3367
        %v3553 = vpop.f32.mrb[0].mxu0
        %v3554 = vadd.f32 0.0, %v3553
        %v3555 = vpop.f32.mrb[0].mxu0
        %3556 = vmatprep.mubr.f32.mxu0 0.0
        %3557 = vmatmul.mubr.f32.gmra.mrb[0].mxu0 %v3370
        %v3558 = vpop.f32.mrb[0].mxu0
        %v3559 = vadd.f32 0.0, %v3558
        %v3560 = vpop.f32.mrb[0].mxu0
        %3561 = vmatprep.mubr.f32.mxu0 0.0
        %3562 = vmatmul.mubr.f32.gmra.mrb[0].mxu0 %v3373
        %v3563 = vpop.f32.mrb[0].mxu0
        %v3564 = vadd.f32 0.0, %v3563
        %v3565 = vpop.f32.mrb[0].mxu0
        %3566 = vmatprep.mubr.f32.mxu0 0.0
        %3567 = vmatmul.mubr.f32.gmra.mrb[0].mxu0 %v3376
        %v3568 = vpop.f32.mrb[0].mxu0
        %v3569 = vadd.f32 0.0, %v3568
        %v3570 = vpop.f32.mrb[0].mxu0
        %3571 = vmatprep.mubr.f32.mxu0 0.0
        %3572 = vmatmul.mubr.f32.gmra.mrb[0].mxu0 %v3379
        %v3573 = vpop.f32.mrb[0].mxu0
        %v3574 = vadd.f32 0.0, %v3573
        %v3575 = vpop.f32.mrb[0].mxu0
        %3576 = vmatprep.mubr.f32.mxu0 0.0
        %3577 = vmatmul.mubr.f32.gmra.mrb[0].mxu0 %v3382
        %v3578 = vpop.f32.mrb[0].mxu0
        %v3579 = vadd.f32 0.0, %v3578
        %v3580 = vpop.f32.mrb[0].mxu0
        %3581 = vmatprep.mubr.f32.mxu0 0.0
        %3582 = vmatmul.mubr.f32.gmra.mrb[0].mxu0 %v3385
        %v3583 = vpop.f32.mrb[0].mxu0
        %v3584 = vadd.f32 0.0, %v3583
        %v3585 = vpop.f32.mrb[0].mxu0
        %3586 = vmatprep.mubr.f32.mxu0 0.0
        %3587 = vmatmul.mubr.f32.gmra.mrb[0].mxu0 %v3388
        %v3588 = vpop.f32.mrb[0].mxu0
        %v3589 = vadd.f32 0.0, %v3588
        %v3590 = vpop.f32.mrb[0].mxu0
        %3591 = vmatprep.mubr.f32.mxu0 0.0
        %3592 = vmatmul.mubr.f32.gmra.mrb[0].mxu0 %v3391
        %v3593 = vpop.f32.mrb[0].mxu0
        %v3594 = vadd.f32 0.0, %v3593
        %v3595 = vpop.f32.mrb[0].mxu0
        %3596 = vmatprep.mubr.f32.mxu0 0.0
        %3597 = vmatmul.mubr.f32.gmra.mrb[0].mxu0 %v3394
        %v3598 = vpop.f32.mrb[0].mxu0
        %v3599 = vadd.f32 0.0, %v3598
        %v3600 = vpop.f32.mrb[0].mxu0
        %3601 = vmatprep.mubr.f32.mxu0 0.0
        %3602 = vmatmul.mubr.f32.gmra.mrb[0].mxu0 %v3397
        %v3603 = vpop.f32.mrb[0].mxu0
        %v3604 = vadd.f32 0.0, %v3603
        %v3605 = vpop.f32.mrb[0].mxu0
        %3606 = vmatprep.mubr.f32.mxu0 0.0
        %3607 = vmatmul.mubr.f32.gmra.mrb[0].mxu0 %v3400
        %v3608 = vpop.f32.mrb[0].mxu0
        %v3609 = vadd.f32 0.0, %v3608
        %v3610 = vpop.f32.mrb[0].mxu0
        %3611 = vmatprep.mubr.f32.mxu0 0.0
        %3612 = vmatmul.mubr.f32.gmra.mrb[0].mxu0 %v3403
        %v3613 = vpop.f32.mrb[0].mxu0
        %v3614 = vadd.f32 0.0, %v3613
        %v3615 = vpop.f32.mrb[0].mxu0
        %3616 = vmatprep.mubr.f32.mxu0 0.0
        %3617 = vmatmul.mubr.f32.gmra.mrb[0].mxu0 %v3406
        %v3618 = vpop.f32.mrb[0].mxu0
        %v3619 = vadd.f32 0.0, %v3618
        %v3620 = vpop.f32.mrb[0].mxu0
        %3621 = vmatprep.mubr.f32.mxu0 0.0
        %3622 = vmatmul.mubr.f32.gmra.mrb[0].mxu0 %v3409
        %v3623 = vpop.f32.mrb[0].mxu0
        %v3624 = vadd.f32 0.0, %v3623
        %v3625 = vpop.f32.mrb[0].mxu0
        %3626 = vmatprep.mubr.f32.mxu0 0.0
        %3627 = vmatmul.mubr.f32.gmra.mrb[0].mxu0 %v3412
        %v3628 = vpop.f32.mrb[0].mxu0
        %v3629 = vadd.f32 0.0, %v3628
        %v3630 = vpop.f32.mrb[0].mxu0
        %3631 = vmatprep.mubr.f32.mxu0 0.0
        %3632 = vmatmul.mubr.f32.gmra.mrb[0].mxu0 %v3415
        %v3633 = vpop.f32.mrb[0].mxu0
        %v3634 = vadd.f32 0.0, %v3633
        %v3635 = vpop.f32.mrb[0].mxu0
        %3636 = vmatprep.mubr.f32.mxu0 0.0
        %3637 = vmatmul.mubr.f32.gmra.mrb[0].mxu0 %v3418
        %v3638 = vpop.f32.mrb[0].mxu0
        %v3639 = vadd.f32 0.0, %v3638
        %v3640 = vpop.f32.mrb[0].mxu0
        %3641 = vmatprep.mubr.f32.mxu0 0.0
        %3642 = vmatmul.mubr.f32.gmra.mrb[0].mxu0 %v3421
        %v3643 = vpop.f32.mrb[0].mxu0
        %v3644 = vadd.f32 0.0, %v3643
        %v3645 = vpop.f32.mrb[0].mxu0
        %3646 = vmatprep.mubr.f32.mxu0 0.0
        %3647 = vmatmul.mubr.f32.gmra.mrb[0].mxu0 %v3424
        %v3648 = vpop.f32.mrb[0].mxu0
        %v3649 = vadd.f32 0.0, %v3648
        %v3650 = vpop.f32.mrb[0].mxu0
        %3651 = vmatprep.mubr.f32.mxu0 0.0
        %3652 = vmatmul.mubr.f32.gmra.mrb[0].mxu0 %v3427
        %v3653 = vpop.f32.mrb[0].mxu0
        %v3654 = vadd.f32 0.0, %v3653
        %v3655 = vpop.f32.mrb[0].mxu0
        %3656 = vdwg.mxu0
        %v3657 = vadd.f32 %v3265, %v3499
        %v3658 = vadd.f32 %v3266, %v3504
        %v3659 = vadd.f32 %v3267, %v3509
        %v3660 = vadd.f32 %v3268, %v3514
        %v3661 = vadd.f32 %v3269, %v3519
        %v3662 = vadd.f32 %v3270, %v3524
        %v3663 = vadd.f32 %v3271, %v3529
        %v3664 = vadd.f32 %v3272, %v3534
        %v3665 = vadd.f32 %v3273, %v3539
        %v3666 = vadd.f32 %v3274, %v3544
        %v3667 = vadd.f32 %v3275, %v3549
        %v3668 = vadd.f32 %v3276, %v3554
        %v3669 = vadd.f32 %v3277, %v3559
        %v3670 = vadd.f32 %v3278, %v3564
        %v3671 = vadd.f32 %v3279, %v3569
        %v3672 = vadd.f32 %v3280, %v3574
        %v3673 = vadd.f32 %v3281, %v3579
        %v3674 = vadd.f32 %v3282, %v3584
        %v3675 = vadd.f32 %v3283, %v3589
        %v3676 = vadd.f32 %v3284, %v3594
        %v3677 = vadd.f32 %v3285, %v3599
        %v3678 = vadd.f32 %v3286, %v3604
        %v3679 = vadd.f32 %v3287, %v3609
        %v3680 = vadd.f32 %v3288, %v3614
        %v3681 = vadd.f32 %v3289, %v3619
        %v3682 = vadd.f32 %v3290, %v3624
        %v3683 = vadd.f32 %v3291, %v3629
        %v3684 = vadd.f32 %v3292, %v3634
        %v3685 = vadd.f32 %v3293, %v3639
        %v3686 = vadd.f32 %v3294, %v3644
        %v3687 = vadd.f32 %v3295, %v3649
        %v3688 = vadd.f32 %v3296, %v3654
        %v3689 = vld [vmem:[%s222] sm:$0x1]
        %v3691 = vlaneseq
        %v3692 = vshrl.u32 %v3691, 7
        %v3693 = vsub.s32 0, %v3692
        %v3694 = vrot.slane %v3689, %v3693
        %v3696 = vadd.f32 %v3657, %v3694
        %v3697 = vadd.f32 %v3658, %v3694
        %v3698 = vadd.f32 %v3659, %v3694
        %v3699 = vadd.f32 %v3660, %v3694
        %v3700 = vadd.f32 %v3661, %v3694
        %v3701 = vadd.f32 %v3662, %v3694
        %v3702 = vadd.f32 %v3663, %v3694
        %v3703 = vadd.f32 %v3664, %v3694
        %v3704 = vadd.f32 %v3665, %v3694
        %v3705 = vadd.f32 %v3666, %v3694
        %v3706 = vadd.f32 %v3667, %v3694
        %v3707 = vadd.f32 %v3668, %v3694
        %v3708 = vadd.f32 %v3669, %v3694
        %v3709 = vadd.f32 %v3670, %v3694
        %v3710 = vadd.f32 %v3671, %v3694
        %v3711 = vadd.f32 %v3672, %v3694
        %v3712 = vadd.f32 %v3673, %v3694
        %v3713 = vadd.f32 %v3674, %v3694
        %v3714 = vadd.f32 %v3675, %v3694
        %v3715 = vadd.f32 %v3676, %v3694
        %v3716 = vadd.f32 %v3677, %v3694
        %v3717 = vadd.f32 %v3678, %v3694
        %v3718 = vadd.f32 %v3679, %v3694
        %v3719 = vadd.f32 %v3680, %v3694
        %v3720 = vadd.f32 %v3681, %v3694
        %v3721 = vadd.f32 %v3682, %v3694
        %v3722 = vadd.f32 %v3683, %v3694
        %v3723 = vadd.f32 %v3684, %v3694
        %v3724 = vadd.f32 %v3685, %v3694
        %v3725 = vadd.f32 %v3686, %v3694
        %v3726 = vadd.f32 %v3687, %v3694
        %v3727 = vadd.f32 %v3688, %v3694
        %3728 = vst [vmem:[%s210] sm:$0xff] %v3696
        %3729 = vst [vmem:[%s210 + $0x8] sm:$0xff] %v3697
        %3730 = vst [vmem:[%s210 + $0x10] sm:$0xff] %v3698
        %3731 = vst [vmem:[%s210 + $0x18] sm:$0xff] %v3699
        %3732 = vst [vmem:[%s210 + $0x20] sm:$0xff] %v3700
        %3733 = vst [vmem:[%s210 + $0x28] sm:$0xff] %v3701
        %3734 = vst [vmem:[%s210 + $0x30] sm:$0xff] %v3702
        %3735 = vst [vmem:[%s210 + $0x38] sm:$0xff] %v3703
        %3736 = vst [vmem:[%s210 + $0x40] sm:$0xff] %v3704
        %3737 = vst [vmem:[%s210 + $0x48] sm:$0xff] %v3705
        %3738 = vst [vmem:[%s210 + $0x50] sm:$0xff] %v3706
        %3739 = vst [vmem:[%s210 + $0x58] sm:$0xff] %v3707
        %3740 = vst [vmem:[%s210 + $0x60] sm:$0xff] %v3708
        %3741 = vst [vmem:[%s210 + $0x68] sm:$0xff] %v3709
        %3742 = vst [vmem:[%s210 + $0x70] sm:$0xff] %v3710
        %3743 = vst [vmem:[%s210 + $0x78] sm:$0xff] %v3711
        %3744 = vst [vmem:[%s210 + $0x80] sm:$0xff] %v3712
        %3745 = vst [vmem:[%s210 + $0x88] sm:$0xff] %v3713
        %3746 = vst [vmem:[%s210 + $0x90] sm:$0xff] %v3714
        %3747 = vst [vmem:[%s210 + $0x98] sm:$0xff] %v3715
        %3748 = vst [vmem:[%s210 + $0xa0] sm:$0xff] %v3716
        %3749 = vst [vmem:[%s210 + $0xa8] sm:$0xff] %v3717
        %3750 = vst [vmem:[%s210 + $0xb0] sm:$0xff] %v3718
        %3751 = vst [vmem:[%s210 + $0xb8] sm:$0xff] %v3719
        %3752 = vst [vmem:[%s210 + $0xc0] sm:$0xff] %v3720
        %3753 = vst [vmem:[%s210 + $0xc8] sm:$0xff] %v3721
        %3754 = vst [vmem:[%s210 + $0xd0] sm:$0xff] %v3722
        %3755 = vst [vmem:[%s210 + $0xd8] sm:$0xff] %v3723
        %3756 = vst [vmem:[%s210 + $0xe0] sm:$0xff] %v3724
        %3757 = vst [vmem:[%s210 + $0xe8] sm:$0xff] %v3725
        %3758 = vst [vmem:[%s210 + $0xf0] sm:$0xff] %v3726
        %3759 = vst [vmem:[%s210 + $0xf8] sm:$0xff] %v3727
        %s3760 = sand.u32 %s126, 1
        %s3761 = scalar_lea.sflag [#allocation3], %s3760
        %s3762 = sand.u32 %s126, 1
        %s3763 = smul.addr %s3762, 256
        %s3764 = scalar_lea.vmem [#allocation2], %s3763
        // Predicated region
        $region33: #{tpu_custom_call.1} parent=31 // pred_check
          %p3765 = pneg %p136
        $region34: #{tpu_custom_call.1} parent=31 // pred_check_branch
          %3767 = sbr.rel (%p3765) target = $region36
        $region35: #{tpu_custom_call.1} parent=31 // pred_region
          %s3768 = smul.u32 32, %s24
          %s3770 = ssub.s32 4096, 4096
          %3771 = vsyncadd %s3761, %s3770
          %s3772 = sadd.s32 %s23, %s3768
          %s3773 = smul.addr %s22, 64
          %s3774 = sadd.s32 %s3772, %s3773
          %s3775 = smul.addr %s3774, 128
          %s3776 = scalar_lea.hbm %s3, %s3775
          %s3777 = sshll.u32 %s3764, 4
          %s3778 = int_to_ptr.vmem [resolvable:$true] %s3777
          %3783 = dma.vmem_to_hbm [thread:$0]  %s3778, 4096, %s3776, %s3761, 128, 128, 8
        $region36: #{tpu_custom_call.1} parent=31 // pred_fallthru
          _
      $region32: #{tpu_custom_call.1} parent=5 // pred_fallthru
        _
      %p3784 = scmp.le.s32.totalorder 2, %s12
      // Predicated region
      $region37: #{tpu_custom_call.1} parent=5 // pred_check
        %p3785 = pneg %p3784
      $region38: #{tpu_custom_call.1} parent=5 // pred_check_branch
        %3787 = sbr.rel (%p3785) target = $region40
      $region39: #{tpu_custom_call.1} parent=5 // pred_region
        %s3788 = ssub.s32 %s12, 2
        // Predicated region
        $region41: #{tpu_custom_call.1} parent=39 // pred_check
          %p3789 = pneg %p142
        $region42: #{tpu_custom_call.1} parent=39 // pred_check_branch
          %3791 = sbr.rel (%p3789) target = $region44
        $region43: #{tpu_custom_call.1} parent=39 // pred_region
          %s3792 = sand.u32 %s127, 1
          %s3793 = scalar_lea.sflag [#allocation3], %s3792
          %s3794 = sand.u32 %s127, 1
          %s3795 = smul.addr %s3794, 256
          %s3796 = scalar_lea.vmem [#allocation2], %s3795
          %3797 = dma.done %s3793, 4096
        $region44: #{tpu_custom_call.1} parent=39 // pred_fallthru
          _
      $region40: #{tpu_custom_call.1} parent=5 // pred_fallthru
        _
    $region6: #{tpu_custom_call.1} parent=1 // loop_footer
      %s16 = sadd.s32 1, %s12
    $region7: #{tpu_custom_call.1} parent=1 // loop_footer_branch
      %11 = sbr.rel target = $region3
    $region8: #{tpu_custom_call.1} parent=1 // loop_exit
      _
    %3798 = vsyncpa [#allocation3], 1
    %s3799 = scalar_lea.sflag [#allocation3], 1
    %3800 = vsyncpa %s3799, 1

</llo_original>
